<compile_context>
chip_gen: v7x
topology: tpu7x:2x2x1
jax: 0.10.0
libtpu: 0.0.40
codegen_flags: <defaults>
</compile_context>

<pallas_src>
import jax
import jax.numpy as jnp
from jax import lax
from jax.experimental import pallas as pl
from jax.experimental.pallas import tpu as pltpu

# Geometry implied by the module (fc1 expects 900 = 4*15*15).
H = 15
W = 15
C_IN = 6
C1 = 8           # conv1 out channels
C2 = 4           # conv2 out channels
K1 = 7           # conv1 kernel
K2 = 5           # conv2 kernel
PAD1 = K1 // 2   # 3
LANE = 128
ROWS_PAD = H + 2 * PAD1          # 21 vertically padded rows
SLAB = K1 * LANE                 # 896: input slab consumed per output row
H1_LANES = H * LANE              # 1920: conv1 output lanes, (y, co, x) + pad


# --------------------------------------------------------------------------- #
# Kernel: 15 aligned banded matmuls (conv1) + 2 dense matmuls (conv2∘fc1, fc2) #
# --------------------------------------------------------------------------- #
def _cnn_kernel(x_ref, th_ref, tb1_ref, wc_ref, bc_ref, wf2_ref, bf2_ref,
                o_ref, h1_ref):
    th = th_ref[...].astype(jnp.float32)            # (896, 128) banded conv1 op
    b1 = tb1_ref[...]                               # (1, 128)
    # conv1 + ReLU: output row y uses input rows y..y+6 (vertically pre-padded).
    # Columns of each 128-block are ordered (co, xo) with 8 zero pad lanes.
    for y in range(H):
        s = jnp.dot(x_ref[:, y * LANE: y * LANE + SLAB], th,
                    preferred_element_type=jnp.float32)          # (TB, 128)
        h1_ref[:, y * LANE:(y + 1) * LANE] = jnp.maximum(s + b1, 0.0)
    # conv2 + fc1 (pre-composed, no nonlinearity between them) + ReLU
    wc = wc_ref[...].astype(jnp.float32)            # (1920, hidden)
    h3 = jnp.maximum(
        jnp.dot(h1_ref[...], wc, preferred_element_type=jnp.float32)
        + bc_ref[...], 0.0)
    # fc2 + tanh (constrain_out=True)
    o_ref[...] = jnp.tanh(
        jnp.dot(h3, wf2_ref[...], preferred_element_type=jnp.float32)
        + bf2_ref[...])


# --------------------------------------------------------------------------- #
# One-time weight transformations (off the inference path)                     #
# --------------------------------------------------------------------------- #
def build_conv1_banded(w1, b1):
    """conv1 (Cout=8, Cin=6, 7x7, 'same') -> small banded operator Th (896, 128).
    Row index: dy*128 + (ci*15 + xi)  [lanes 90..127 of each group are zero].
    Col index: co*15 + xo             [lanes 120..127 are zero]."""
    Cout, Cin, Kh, Kw = w1.shape
    assert Kh % 2 == 1 and Kw % 2 == 1, "only odd 'same' kernels supported"
    pw = Kw // 2
    xi = jnp.arange(W)[:, None]
    xo = jnp.arange(W)[None, :]
    kx = xi - xo + pw
    valid = (kx >= 0) & (kx < Kw)
    kxc = jnp.clip(kx, 0, Kw - 1)
    t = w1[:, :, :, kxc]                                  # (Cout,Cin,Kh,W,W) [co,ci,dy,xi,xo]
    t = t * valid.astype(w1.dtype)[None, None, None]
    t = t.transpose(2, 1, 3, 0, 4)                        # (Kh, Cin, W, Cout, W)
    t = t.reshape(Kh, Cin * W, Cout * W)                  # (7, 90, 120)
    t = jnp.pad(t, ((0, 0), (0, LANE - Cin * W), (0, LANE - Cout * W)))
    th = t.reshape(Kh * LANE, LANE)                       # (896, 128)
    tb1 = jnp.pad(jnp.repeat(b1, W), (0, LANE - Cout * W))[None, :]   # (1, 128)
    return th, tb1


def build_conv2_fc1_composed(w2, b2, wf1, bf1):
    """conv2 (4<-8, 5x5, 'same') composed with fc1 (900->hidden): no nonlinearity
    between them, so Wc = T2 @ wf1 with T2 rows ordered (y, c1, x) [+8 zero pad
    lanes per y] to match the kernel's conv1 output layout, cols = torch's
    channel-major .view(B,-1) ordering of h2."""
    Cd, Cs, Kh, Kw = w2.shape
    assert Kh % 2 == 1 and Kw % 2 == 1, "only odd 'same' kernels supported"
    ph, pw = Kh // 2, Kw // 2
    yi = jnp.arange(H)[:, None]; yo = jnp.arange(H)[None, :]
    ky = yi - yo + ph; vy = (ky >= 0) & (ky < Kh); kyc = jnp.clip(ky, 0, Kh - 1)
    xi = jnp.arange(W)[:, None]; xo = jnp.arange(W)[None, :]
    kx = xi - xo + pw; vx = (kx >= 0) & (kx < Kw); kxc = jnp.clip(kx, 0, Kw - 1)
    t = w2[:, :, kyc, :]                                  # (Cd,Cs,H,H,Kw)
    t = t[:, :, :, :, kxc]                                # (Cd,Cs,H,H,W,W) [c2,c1,y,y2,x,x2]
    mask = (vy[:, :, None, None] & vx[None, None, :, :]).astype(w2.dtype)
    t = t * mask[None, None]
    t = t.transpose(2, 1, 4, 0, 3, 5)                     # (H, Cs, W, Cd, H, W)
    t = t.reshape(H, Cs * W, Cd * H * W)                  # (15, 120, 900)
    t = jnp.pad(t, ((0, 0), (0, LANE - Cs * W), (0, 0)))
    t2p = t.reshape(H * LANE, Cd * H * W)                 # (1920, 900)
    wc = jnp.dot(t2p, wf1, precision=lax.Precision.HIGHEST)         # (1920, hidden)
    bc = jnp.dot(jnp.repeat(b2, H * W), wf1,
                 precision=lax.Precision.HIGHEST) + bf1             # (hidden,)
    return wc, bc[None, :]


def pack_params(params):
    """Kernel-ready operands (built once). Large operators stored in bf16."""
    w1, b1, w2, b2, wf1, bf1, wf2, bf2 = params
    th, tb1 = build_conv1_banded(w1, b1)
    wc, bc = build_conv2_fc1_composed(w2, b2, wf1, bf1)
    return (th.astype(jnp.bfloat16), tb1, wc.astype(jnp.bfloat16), bc,
            wf2, bf2[None, :])


def _prep_input(x):
    """(B, 6, 15, 15) -> (B, 21*128): vertical zero-pad for conv1, lanes ordered
    (ci*15 + x) and zero-padded 90 -> 128 per row.  Layout plumbing only."""
    B = x.shape[0]
    xv = jnp.pad(x, ((0, 0), (0, 0), (PAD1, PAD1), (0, 0)))      # (B, 6, 21, 15)
    xt = xv.transpose(0, 2, 1, 3).reshape(B, ROWS_PAD, C_IN * W)  # (B, 21, 90)
    xt = jnp.pad(xt, ((0, 0), (0, 0), (0, LANE - C_IN * W)))      # (B, 21, 128)
    return xt.reshape(B, ROWS_PAD * LANE)                          # (B, 2688)


@jax.jit
def cnn_forward(x, packed):
    """x: (B, 6, 15, 15) -> (B, out_dim); torch's empty second return is omitted."""
    th, tb1, wc, bc, wf2, bf2 = packed
    B = x.shape[0]
    out_dim = wf2.shape[1]
    xin = _prep_input(x)

    TB = B if B <= 128 else 128          # batch tile (sublane-friendly, B % TB == 0)
    assert B % TB == 0 and TB % 8 == 0, "demo assumes batch a multiple of 8"
    grid = (B // TB,)

    return pl.pallas_call(
        _cnn_kernel,
        out_shape=jax.ShapeDtypeStruct((B, out_dim), jnp.float32),
        grid_spec=pltpu.PrefetchScalarGridSpec(
            num_scalar_prefetch=0,
            grid=grid,
            in_specs=[
                pl.BlockSpec((TB, ROWS_PAD * LANE), lambda i: (i, 0)),   # input block
                pl.BlockSpec(th.shape, lambda i: (0, 0)),   # weights: constant block
                pl.BlockSpec(tb1.shape, lambda i: (0, 0)),  # -> stay VMEM-resident
                pl.BlockSpec(wc.shape, lambda i: (0, 0)),
                pl.BlockSpec(bc.shape, lambda i: (0, 0)),
                pl.BlockSpec(wf2.shape, lambda i: (0, 0)),
                pl.BlockSpec(bf2.shape, lambda i: (0, 0)),
            ],
            out_specs=pl.BlockSpec((TB, out_dim), lambda i: (i, 0)),
            scratch_shapes=[pltpu.VMEM((TB, H1_LANES), jnp.float32)],
        ),
        compiler_params=pltpu.CompilerParams(
            dimension_semantics=("parallel",)),
    )(xin, th, tb1, wc, bc, wf2, bf2)


# --------------------------------------------------------------------------- #
# Pure-JAX reference (torch semantics) and parameter init                      #
# --------------------------------------------------------------------------- #
def _conv_same_ref(x, w, b):
    pad = w.shape[-1] // 2
    y = lax.conv_general_dilated(
        x, w, window_strides=(1, 1), padding=[(pad, pad), (pad, pad)],
        dimension_numbers=('NCHW', 'OIHW', 'NCHW'),
        precision=lax.Precision.HIGHEST)
    return y + b[None, :, None, None]


def reference_forward(x, params):
    w1, b1, w2, b2, wf1, bf1, wf2, bf2 = params
    h1 = jnp.maximum(_conv_same_ref(x, w1, b1), 0.0)
    h2 = _conv_same_ref(h1, w2, b2)
    h2f = h2.reshape(x.shape[0], -1)
    h3 = jnp.maximum(
        jnp.dot(h2f, wf1, precision=lax.Precision.HIGHEST) + bf1, 0.0)
    return jnp.tanh(jnp.dot(h3, wf2, precision=lax.Precision.HIGHEST) + bf2)


def init_params(key, hidden_dim, out_dim):
    ks = jax.random.split(key, 8)
    w1 = 0.1 * jax.random.normal(ks[0], (C1, C_IN, K1, K1), jnp.float32)  # conv1 OIHW
    b1 = 0.1 * jax.random.normal(ks[1], (C1,), jnp.float32)
    w2 = 0.1 * jax.random.normal(ks[2], (C2, C1, K2, K2), jnp.float32)    # conv2 OIHW
    b2 = 0.1 * jax.random.normal(ks[3], (C2,), jnp.float32)
    # fc weights stored transposed vs nn.Linear so the forward computes x @ W.
    wf1 = 0.05 * jax.random.normal(ks[4], (C2 * H * W, hidden_dim), jnp.float32)
    bf1 = 0.05 * jax.random.normal(ks[5], (hidden_dim,), jnp.float32)
    # constrain_out=True: fc2 weight ~ U(-0.003, 0.003), output passes through tanh.
    wf2 = jax.random.uniform(ks[6], (hidden_dim, out_dim), jnp.float32, -0.003, 0.003)
    bf2 = 0.05 * jax.random.normal(ks[7], (out_dim,), jnp.float32)
    return (w1, b1, w2, b2, wf1, bf1, wf2, bf2)


if __name__ == "__main__":
    B = 8                       # batch fills one full sublane group
    hidden_dim = 64
    out_dim = 8

    key = jax.random.PRNGKey(0)
    k_param, k_x = jax.random.split(key)
    params = init_params(k_param, hidden_dim, out_dim)
    x = jax.random.normal(k_x, (B, C_IN, H, W), jnp.float32)

    packed = pack_params(params)            # one-time weight transformation
    out = cnn_forward(x, packed)
    jax.block_until_ready(out)

    ref = reference_forward(x, params)
    assert out.shape == (B, out_dim)
    assert bool(jnp.all(jnp.isfinite(out)))
    max_err = float(jnp.max(jnp.abs(out - ref)))
    assert bool(jnp.allclose(out, ref, rtol=2e-2, atol=2e-3)), max_err
    print("KERNEL_OK")
</pallas_src>

<mosaic_0001>
module attributes {stable_mosaic.version = 11 : i64} {
  func.func @_cnn_kernel(%arg0: i32, %arg1: memref<8x2688xf32, #tpu.memory_space<vmem>>, %arg2: memref<896x128xbf16, #tpu.memory_space<vmem>>, %arg3: memref<1x128xf32, #tpu.memory_space<vmem>>, %arg4: memref<1920x64xbf16, #tpu.memory_space<vmem>>, %arg5: memref<1x64xf32, #tpu.memory_space<vmem>>, %arg6: memref<64x8xf32, #tpu.memory_space<vmem>>, %arg7: memref<1x8xf32, #tpu.memory_space<vmem>>, %arg8: memref<8x8xf32, #tpu.memory_space<vmem>>, %arg9: memref<8x1920xf32, #tpu.memory_space<vmem>>) attributes {dimension_semantics = [#tpu.dimension_semantics<parallel>], iteration_bounds = array<i64: 1>, scalar_prefetch = 0 : i64, scratch_operands = 1 : i64, tpu.core_type = #tpu.core_type<tc>, window_params = [{transform_indices = @transform_0, window_bounds = array<i64: 8, 2688>}, {pipeline_mode = #tpu.pipeline_mode<synchronous>, transform_indices = @transform_1, window_bounds = array<i64: 896, 128>}, {pipeline_mode = #tpu.pipeline_mode<synchronous>, transform_indices = @transform_2, window_bounds = array<i64: 1, 128>}, {pipeline_mode = #tpu.pipeline_mode<synchronous>, transform_indices = @transform_3, window_bounds = array<i64: 1920, 64>}, {pipeline_mode = #tpu.pipeline_mode<synchronous>, transform_indices = @transform_4, window_bounds = array<i64: 1, 64>}, {pipeline_mode = #tpu.pipeline_mode<synchronous>, transform_indices = @transform_5, window_bounds = array<i64: 64, 8>}, {pipeline_mode = #tpu.pipeline_mode<synchronous>, transform_indices = @transform_6, window_bounds = array<i64: 1, 8>}, {transform_indices = @transform_7, window_bounds = array<i64: 8, 8>}]} {
    %c0 = arith.constant 0 : index
    %c0_0 = arith.constant 0 : index
    %0 = vector.load %arg2[%c0, %c0_0] : memref<896x128xbf16, #tpu.memory_space<vmem>>, vector<896x128xbf16>
    %1 = arith.extf %0 : vector<896x128xbf16> to vector<896x128xf32>
    %c0_1 = arith.constant 0 : index
    %c0_2 = arith.constant 0 : index
    %2 = vector.load %arg3[%c0_1, %c0_2] : memref<1x128xf32, #tpu.memory_space<vmem>>, vector<1x128xf32>
    %c0_3 = arith.constant 0 : index
    %c0_4 = arith.constant 0 : index
    %3 = vector.load %arg1[%c0_3, %c0_4] : memref<8x2688xf32, #tpu.memory_space<vmem>>, vector<8x896xf32>
    %cst = arith.constant dense<0.000000e+00> : vector<8x128xf32>
    %4 = tpu.matmul %3, %1, %cst {dimension_numbers = #tpu.dot_dimension_numbers<[1], [0], [0], [1], [0, 0, 1, 1], [], []>} : vector<8x896xf32>, vector<896x128xf32>, vector<8x128xf32> -> vector<8x128xf32>
    %5 = vector.broadcast %2 : vector<1x128xf32> to vector<8x128xf32>
    %6 = arith.addf %4, %5 : vector<8x128xf32>
    %cst_5 = arith.constant 0.000000e+00 : f32
    %7 = vector.broadcast %cst_5 : f32 to vector<8x128xf32>
    %8 = arith.maximumf %6, %7 : vector<8x128xf32>
    %c0_6 = arith.constant 0 : index
    %c0_7 = arith.constant 0 : index
    %9 = vector.load %arg9[%c0_6, %c0_7] : memref<8x1920xf32, #tpu.memory_space<vmem>>, vector<8x128xf32>
    tpu.vector_store %arg9[%c0_6, %c0_7], %8 {strides = array<i32>} : memref<8x1920xf32, #tpu.memory_space<vmem>>, vector<8x128xf32>,
    %c0_8 = arith.constant 0 : index
    %c128 = arith.constant 128 : index
    %10 = vector.load %arg1[%c0_8, %c128] : memref<8x2688xf32, #tpu.memory_space<vmem>>, vector<8x896xf32>
    %cst_9 = arith.constant dense<0.000000e+00> : vector<8x128xf32>
    %11 = tpu.matmul %10, %1, %cst_9 {dimension_numbers = #tpu.dot_dimension_numbers<[1], [0], [0], [1], [0, 0, 1, 1], [], []>} : vector<8x896xf32>, vector<896x128xf32>, vector<8x128xf32> -> vector<8x128xf32>
    %12 = vector.broadcast %2 : vector<1x128xf32> to vector<8x128xf32>
    %13 = arith.addf %11, %12 : vector<8x128xf32>
    %cst_10 = arith.constant 0.000000e+00 : f32
    %14 = vector.broadcast %cst_10 : f32 to vector<8x128xf32>
    %15 = arith.maximumf %13, %14 : vector<8x128xf32>
    %c0_11 = arith.constant 0 : index
    %c128_12 = arith.constant 128 : index
    %16 = vector.load %arg9[%c0_11, %c128_12] : memref<8x1920xf32, #tpu.memory_space<vmem>>, vector<8x128xf32>
    tpu.vector_store %arg9[%c0_11, %c128_12], %15 {strides = array<i32>} : memref<8x1920xf32, #tpu.memory_space<vmem>>, vector<8x128xf32>,
    %c0_13 = arith.constant 0 : index
    %c256 = arith.constant 256 : index
    %17 = vector.load %arg1[%c0_13, %c256] : memref<8x2688xf32, #tpu.memory_space<vmem>>, vector<8x896xf32>
    %cst_14 = arith.constant dense<0.000000e+00> : vector<8x128xf32>
    %18 = tpu.matmul %17, %1, %cst_14 {dimension_numbers = #tpu.dot_dimension_numbers<[1], [0], [0], [1], [0, 0, 1, 1], [], []>} : vector<8x896xf32>, vector<896x128xf32>, vector<8x128xf32> -> vector<8x128xf32>
    %19 = vector.broadcast %2 : vector<1x128xf32> to vector<8x128xf32>
    %20 = arith.addf %18, %19 : vector<8x128xf32>
    %cst_15 = arith.constant 0.000000e+00 : f32
    %21 = vector.broadcast %cst_15 : f32 to vector<8x128xf32>
    %22 = arith.maximumf %20, %21 : vector<8x128xf32>
    %c0_16 = arith.constant 0 : index
    %c256_17 = arith.constant 256 : index
    %23 = vector.load %arg9[%c0_16, %c256_17] : memref<8x1920xf32, #tpu.memory_space<vmem>>, vector<8x128xf32>
    tpu.vector_store %arg9[%c0_16, %c256_17], %22 {strides = array<i32>} : memref<8x1920xf32, #tpu.memory_space<vmem>>, vector<8x128xf32>,
    %c0_18 = arith.constant 0 : index
    %c384 = arith.constant 384 : index
    %24 = vector.load %arg1[%c0_18, %c384] : memref<8x2688xf32, #tpu.memory_space<vmem>>, vector<8x896xf32>
    %cst_19 = arith.constant dense<0.000000e+00> : vector<8x128xf32>
    %25 = tpu.matmul %24, %1, %cst_19 {dimension_numbers = #tpu.dot_dimension_numbers<[1], [0], [0], [1], [0, 0, 1, 1], [], []>} : vector<8x896xf32>, vector<896x128xf32>, vector<8x128xf32> -> vector<8x128xf32>
    %26 = vector.broadcast %2 : vector<1x128xf32> to vector<8x128xf32>
    %27 = arith.addf %25, %26 : vector<8x128xf32>
    %cst_20 = arith.constant 0.000000e+00 : f32
    %28 = vector.broadcast %cst_20 : f32 to vector<8x128xf32>
    %29 = arith.maximumf %27, %28 : vector<8x128xf32>
    %c0_21 = arith.constant 0 : index
    %c384_22 = arith.constant 384 : index
    %30 = vector.load %arg9[%c0_21, %c384_22] : memref<8x1920xf32, #tpu.memory_space<vmem>>, vector<8x128xf32>
    tpu.vector_store %arg9[%c0_21, %c384_22], %29 {strides = array<i32>} : memref<8x1920xf32, #tpu.memory_space<vmem>>, vector<8x128xf32>,
    %c0_23 = arith.constant 0 : index
    %c512 = arith.constant 512 : index
    %31 = vector.load %arg1[%c0_23, %c512] : memref<8x2688xf32, #tpu.memory_space<vmem>>, vector<8x896xf32>
    %cst_24 = arith.constant dense<0.000000e+00> : vector<8x128xf32>
    %32 = tpu.matmul %31, %1, %cst_24 {dimension_numbers = #tpu.dot_dimension_numbers<[1], [0], [0], [1], [0, 0, 1, 1], [], []>} : vector<8x896xf32>, vector<896x128xf32>, vector<8x128xf32> -> vector<8x128xf32>
    %33 = vector.broadcast %2 : vector<1x128xf32> to vector<8x128xf32>
    %34 = arith.addf %32, %33 : vector<8x128xf32>
    %cst_25 = arith.constant 0.000000e+00 : f32
    %35 = vector.broadcast %cst_25 : f32 to vector<8x128xf32>
    %36 = arith.maximumf %34, %35 : vector<8x128xf32>
    %c0_26 = arith.constant 0 : index
    %c512_27 = arith.constant 512 : index
    %37 = vector.load %arg9[%c0_26, %c512_27] : memref<8x1920xf32, #tpu.memory_space<vmem>>, vector<8x128xf32>
    tpu.vector_store %arg9[%c0_26, %c512_27], %36 {strides = array<i32>} : memref<8x1920xf32, #tpu.memory_space<vmem>>, vector<8x128xf32>,
    %c0_28 = arith.constant 0 : index
    %c640 = arith.constant 640 : index
    %38 = vector.load %arg1[%c0_28, %c640] : memref<8x2688xf32, #tpu.memory_space<vmem>>, vector<8x896xf32>
    %cst_29 = arith.constant dense<0.000000e+00> : vector<8x128xf32>
    %39 = tpu.matmul %38, %1, %cst_29 {dimension_numbers = #tpu.dot_dimension_numbers<[1], [0], [0], [1], [0, 0, 1, 1], [], []>} : vector<8x896xf32>, vector<896x128xf32>, vector<8x128xf32> -> vector<8x128xf32>
    %40 = vector.broadcast %2 : vector<1x128xf32> to vector<8x128xf32>
    %41 = arith.addf %39, %40 : vector<8x128xf32>
    %cst_30 = arith.constant 0.000000e+00 : f32
    %42 = vector.broadcast %cst_30 : f32 to vector<8x128xf32>
    %43 = arith.maximumf %41, %42 : vector<8x128xf32>
    %c0_31 = arith.constant 0 : index
    %c640_32 = arith.constant 640 : index
    %44 = vector.load %arg9[%c0_31, %c640_32] : memref<8x1920xf32, #tpu.memory_space<vmem>>, vector<8x128xf32>
    tpu.vector_store %arg9[%c0_31, %c640_32], %43 {strides = array<i32>} : memref<8x1920xf32, #tpu.memory_space<vmem>>, vector<8x128xf32>,
    %c0_33 = arith.constant 0 : index
    %c768 = arith.constant 768 : index
    %45 = vector.load %arg1[%c0_33, %c768] : memref<8x2688xf32, #tpu.memory_space<vmem>>, vector<8x896xf32>
    %cst_34 = arith.constant dense<0.000000e+00> : vector<8x128xf32>
    %46 = tpu.matmul %45, %1, %cst_34 {dimension_numbers = #tpu.dot_dimension_numbers<[1], [0], [0], [1], [0, 0, 1, 1], [], []>} : vector<8x896xf32>, vector<896x128xf32>, vector<8x128xf32> -> vector<8x128xf32>
    %47 = vector.broadcast %2 : vector<1x128xf32> to vector<8x128xf32>
    %48 = arith.addf %46, %47 : vector<8x128xf32>
    %cst_35 = arith.constant 0.000000e+00 : f32
    %49 = vector.broadcast %cst_35 : f32 to vector<8x128xf32>
    %50 = arith.maximumf %48, %49 : vector<8x128xf32>
    %c0_36 = arith.constant 0 : index
    %c768_37 = arith.constant 768 : index
    %51 = vector.load %arg9[%c0_36, %c768_37] : memref<8x1920xf32, #tpu.memory_space<vmem>>, vector<8x128xf32>
    tpu.vector_store %arg9[%c0_36, %c768_37], %50 {strides = array<i32>} : memref<8x1920xf32, #tpu.memory_space<vmem>>, vector<8x128xf32>,
    %c0_38 = arith.constant 0 : index
    %c896 = arith.constant 896 : index
    %52 = vector.load %arg1[%c0_38, %c896] : memref<8x2688xf32, #tpu.memory_space<vmem>>, vector<8x896xf32>
    %cst_39 = arith.constant dense<0.000000e+00> : vector<8x128xf32>
    %53 = tpu.matmul %52, %1, %cst_39 {dimension_numbers = #tpu.dot_dimension_numbers<[1], [0], [0], [1], [0, 0, 1, 1], [], []>} : vector<8x896xf32>, vector<896x128xf32>, vector<8x128xf32> -> vector<8x128xf32>
    %54 = vector.broadcast %2 : vector<1x128xf32> to vector<8x128xf32>
    %55 = arith.addf %53, %54 : vector<8x128xf32>
    %cst_40 = arith.constant 0.000000e+00 : f32
    %56 = vector.broadcast %cst_40 : f32 to vector<8x128xf32>
    %57 = arith.maximumf %55, %56 : vector<8x128xf32>
    %c0_41 = arith.constant 0 : index
    %c896_42 = arith.constant 896 : index
    %58 = vector.load %arg9[%c0_41, %c896_42] : memref<8x1920xf32, #tpu.memory_space<vmem>>, vector<8x128xf32>
    tpu.vector_store %arg9[%c0_41, %c896_42], %57 {strides = array<i32>} : memref<8x1920xf32, #tpu.memory_space<vmem>>, vector<8x128xf32>,
    %c0_43 = arith.constant 0 : index
    %c1024 = arith.constant 1024 : index
    %59 = vector.load %arg1[%c0_43, %c1024] : memref<8x2688xf32, #tpu.memory_space<vmem>>, vector<8x896xf32>
    %cst_44 = arith.constant dense<0.000000e+00> : vector<8x128xf32>
    %60 = tpu.matmul %59, %1, %cst_44 {dimension_numbers = #tpu.dot_dimension_numbers<[1], [0], [0], [1], [0, 0, 1, 1], [], []>} : vector<8x896xf32>, vector<896x128xf32>, vector<8x128xf32> -> vector<8x128xf32>
    %61 = vector.broadcast %2 : vector<1x128xf32> to vector<8x128xf32>
    %62 = arith.addf %60, %61 : vector<8x128xf32>
    %cst_45 = arith.constant 0.000000e+00 : f32
    %63 = vector.broadcast %cst_45 : f32 to vector<8x128xf32>
    %64 = arith.maximumf %62, %63 : vector<8x128xf32>
    %c0_46 = arith.constant 0 : index
    %c1024_47 = arith.constant 1024 : index
    %65 = vector.load %arg9[%c0_46, %c1024_47] : memref<8x1920xf32, #tpu.memory_space<vmem>>, vector<8x128xf32>
    tpu.vector_store %arg9[%c0_46, %c1024_47], %64 {strides = array<i32>} : memref<8x1920xf32, #tpu.memory_space<vmem>>, vector<8x128xf32>,
    %c0_48 = arith.constant 0 : index
    %c1152 = arith.constant 1152 : index
    %66 = vector.load %arg1[%c0_48, %c1152] : memref<8x2688xf32, #tpu.memory_space<vmem>>, vector<8x896xf32>
    %cst_49 = arith.constant dense<0.000000e+00> : vector<8x128xf32>
    %67 = tpu.matmul %66, %1, %cst_49 {dimension_numbers = #tpu.dot_dimension_numbers<[1], [0], [0], [1], [0, 0, 1, 1], [], []>} : vector<8x896xf32>, vector<896x128xf32>, vector<8x128xf32> -> vector<8x128xf32>
    %68 = vector.broadcast %2 : vector<1x128xf32> to vector<8x128xf32>
    %69 = arith.addf %67, %68 : vector<8x128xf32>
    %cst_50 = arith.constant 0.000000e+00 : f32
    %70 = vector.broadcast %cst_50 : f32 to vector<8x128xf32>
    %71 = arith.maximumf %69, %70 : vector<8x128xf32>
    %c0_51 = arith.constant 0 : index
    %c1152_52 = arith.constant 1152 : index
    %72 = vector.load %arg9[%c0_51, %c1152_52] : memref<8x1920xf32, #tpu.memory_space<vmem>>, vector<8x128xf32>
    tpu.vector_store %arg9[%c0_51, %c1152_52], %71 {strides = array<i32>} : memref<8x1920xf32, #tpu.memory_space<vmem>>, vector<8x128xf32>,
    %c0_53 = arith.constant 0 : index
    %c1280 = arith.constant 1280 : index
    %73 = vector.load %arg1[%c0_53, %c1280] : memref<8x2688xf32, #tpu.memory_space<vmem>>, vector<8x896xf32>
    %cst_54 = arith.constant dense<0.000000e+00> : vector<8x128xf32>
    %74 = tpu.matmul %73, %1, %cst_54 {dimension_numbers = #tpu.dot_dimension_numbers<[1], [0], [0], [1], [0, 0, 1, 1], [], []>} : vector<8x896xf32>, vector<896x128xf32>, vector<8x128xf32> -> vector<8x128xf32>
    %75 = vector.broadcast %2 : vector<1x128xf32> to vector<8x128xf32>
    %76 = arith.addf %74, %75 : vector<8x128xf32>
    %cst_55 = arith.constant 0.000000e+00 : f32
    %77 = vector.broadcast %cst_55 : f32 to vector<8x128xf32>
    %78 = arith.maximumf %76, %77 : vector<8x128xf32>
    %c0_56 = arith.constant 0 : index
    %c1280_57 = arith.constant 1280 : index
    %79 = vector.load %arg9[%c0_56, %c1280_57] : memref<8x1920xf32, #tpu.memory_space<vmem>>, vector<8x128xf32>
    tpu.vector_store %arg9[%c0_56, %c1280_57], %78 {strides = array<i32>} : memref<8x1920xf32, #tpu.memory_space<vmem>>, vector<8x128xf32>,
    %c0_58 = arith.constant 0 : index
    %c1408 = arith.constant 1408 : index
    %80 = vector.load %arg1[%c0_58, %c1408] : memref<8x2688xf32, #tpu.memory_space<vmem>>, vector<8x896xf32>
    %cst_59 = arith.constant dense<0.000000e+00> : vector<8x128xf32>
    %81 = tpu.matmul %80, %1, %cst_59 {dimension_numbers = #tpu.dot_dimension_numbers<[1], [0], [0], [1], [0, 0, 1, 1], [], []>} : vector<8x896xf32>, vector<896x128xf32>, vector<8x128xf32> -> vector<8x128xf32>
    %82 = vector.broadcast %2 : vector<1x128xf32> to vector<8x128xf32>
    %83 = arith.addf %81, %82 : vector<8x128xf32>
    %cst_60 = arith.constant 0.000000e+00 : f32
    %84 = vector.broadcast %cst_60 : f32 to vector<8x128xf32>
    %85 = arith.maximumf %83, %84 : vector<8x128xf32>
    %c0_61 = arith.constant 0 : index
    %c1408_62 = arith.constant 1408 : index
    %86 = vector.load %arg9[%c0_61, %c1408_62] : memref<8x1920xf32, #tpu.memory_space<vmem>>, vector<8x128xf32>
    tpu.vector_store %arg9[%c0_61, %c1408_62], %85 {strides = array<i32>} : memref<8x1920xf32, #tpu.memory_space<vmem>>, vector<8x128xf32>,
    %c0_63 = arith.constant 0 : index
    %c1536 = arith.constant 1536 : index
    %87 = vector.load %arg1[%c0_63, %c1536] : memref<8x2688xf32, #tpu.memory_space<vmem>>, vector<8x896xf32>
    %cst_64 = arith.constant dense<0.000000e+00> : vector<8x128xf32>
    %88 = tpu.matmul %87, %1, %cst_64 {dimension_numbers = #tpu.dot_dimension_numbers<[1], [0], [0], [1], [0, 0, 1, 1], [], []>} : vector<8x896xf32>, vector<896x128xf32>, vector<8x128xf32> -> vector<8x128xf32>
    %89 = vector.broadcast %2 : vector<1x128xf32> to vector<8x128xf32>
    %90 = arith.addf %88, %89 : vector<8x128xf32>
    %cst_65 = arith.constant 0.000000e+00 : f32
    %91 = vector.broadcast %cst_65 : f32 to vector<8x128xf32>
    %92 = arith.maximumf %90, %91 : vector<8x128xf32>
    %c0_66 = arith.constant 0 : index
    %c1536_67 = arith.constant 1536 : index
    %93 = vector.load %arg9[%c0_66, %c1536_67] : memref<8x1920xf32, #tpu.memory_space<vmem>>, vector<8x128xf32>
    tpu.vector_store %arg9[%c0_66, %c1536_67], %92 {strides = array<i32>} : memref<8x1920xf32, #tpu.memory_space<vmem>>, vector<8x128xf32>,
    %c0_68 = arith.constant 0 : index
    %c1664 = arith.constant 1664 : index
    %94 = vector.load %arg1[%c0_68, %c1664] : memref<8x2688xf32, #tpu.memory_space<vmem>>, vector<8x896xf32>
    %cst_69 = arith.constant dense<0.000000e+00> : vector<8x128xf32>
    %95 = tpu.matmul %94, %1, %cst_69 {dimension_numbers = #tpu.dot_dimension_numbers<[1], [0], [0], [1], [0, 0, 1, 1], [], []>} : vector<8x896xf32>, vector<896x128xf32>, vector<8x128xf32> -> vector<8x128xf32>
    %96 = vector.broadcast %2 : vector<1x128xf32> to vector<8x128xf32>
    %97 = arith.addf %95, %96 : vector<8x128xf32>
    %cst_70 = arith.constant 0.000000e+00 : f32
    %98 = vector.broadcast %cst_70 : f32 to vector<8x128xf32>
    %99 = arith.maximumf %97, %98 : vector<8x128xf32>
    %c0_71 = arith.constant 0 : index
    %c1664_72 = arith.constant 1664 : index
    %100 = vector.load %arg9[%c0_71, %c1664_72] : memref<8x1920xf32, #tpu.memory_space<vmem>>, vector<8x128xf32>
    tpu.vector_store %arg9[%c0_71, %c1664_72], %99 {strides = array<i32>} : memref<8x1920xf32, #tpu.memory_space<vmem>>, vector<8x128xf32>,
    %c0_73 = arith.constant 0 : index
    %c1792 = arith.constant 1792 : index
    %101 = vector.load %arg1[%c0_73, %c1792] : memref<8x2688xf32, #tpu.memory_space<vmem>>, vector<8x896xf32>
    %cst_74 = arith.constant dense<0.000000e+00> : vector<8x128xf32>
    %102 = tpu.matmul %101, %1, %cst_74 {dimension_numbers = #tpu.dot_dimension_numbers<[1], [0], [0], [1], [0, 0, 1, 1], [], []>} : vector<8x896xf32>, vector<896x128xf32>, vector<8x128xf32> -> vector<8x128xf32>
    %103 = vector.broadcast %2 : vector<1x128xf32> to vector<8x128xf32>
    %104 = arith.addf %102, %103 : vector<8x128xf32>
    %cst_75 = arith.constant 0.000000e+00 : f32
    %105 = vector.broadcast %cst_75 : f32 to vector<8x128xf32>
    %106 = arith.maximumf %104, %105 : vector<8x128xf32>
    %c0_76 = arith.constant 0 : index
    %c1792_77 = arith.constant 1792 : index
    %107 = vector.load %arg9[%c0_76, %c1792_77] : memref<8x1920xf32, #tpu.memory_space<vmem>>, vector<8x128xf32>
    tpu.vector_store %arg9[%c0_76, %c1792_77], %106 {strides = array<i32>} : memref<8x1920xf32, #tpu.memory_space<vmem>>, vector<8x128xf32>,
    %c0_78 = arith.constant 0 : index
    %c0_79 = arith.constant 0 : index
    %108 = vector.load %arg4[%c0_78, %c0_79] : memref<1920x64xbf16, #tpu.memory_space<vmem>>, vector<1920x64xbf16>
    %109 = arith.extf %108 : vector<1920x64xbf16> to vector<1920x64xf32>
    %c0_80 = arith.constant 0 : index
    %c0_81 = arith.constant 0 : index
    %110 = vector.load %arg9[%c0_80, %c0_81] : memref<8x1920xf32, #tpu.memory_space<vmem>>, vector<8x1920xf32>
    %cst_82 = arith.constant dense<0.000000e+00> : vector<8x64xf32>
    %111 = tpu.matmul %110, %109, %cst_82 {dimension_numbers = #tpu.dot_dimension_numbers<[1], [0], [0], [1], [0, 0, 1, 1], [], []>} : vector<8x1920xf32>, vector<1920x64xf32>, vector<8x64xf32> -> vector<8x64xf32>
    %c0_83 = arith.constant 0 : index
    %c0_84 = arith.constant 0 : index
    %112 = vector.load %arg5[%c0_83, %c0_84] : memref<1x64xf32, #tpu.memory_space<vmem>>, vector<1x64xf32>
    %113 = vector.broadcast %112 : vector<1x64xf32> to vector<8x64xf32>
    %114 = arith.addf %111, %113 : vector<8x64xf32>
    %cst_85 = arith.constant 0.000000e+00 : f32
    %115 = vector.broadcast %cst_85 : f32 to vector<8x64xf32>
    %116 = arith.maximumf %114, %115 : vector<8x64xf32>
    %c0_86 = arith.constant 0 : index
    %c0_87 = arith.constant 0 : index
    %117 = vector.load %arg6[%c0_86, %c0_87] : memref<64x8xf32, #tpu.memory_space<vmem>>, vector<64x8xf32>
    %cst_88 = arith.constant dense<0.000000e+00> : vector<8x8xf32>
    %118 = tpu.matmul %116, %117, %cst_88 {dimension_numbers = #tpu.dot_dimension_numbers<[1], [0], [0], [1], [0, 0, 1, 1], [], []>} : vector<8x64xf32>, vector<64x8xf32>, vector<8x8xf32> -> vector<8x8xf32>
    %c0_89 = arith.constant 0 : index
    %c0_90 = arith.constant 0 : index
    %119 = vector.load %arg7[%c0_89, %c0_90] : memref<1x8xf32, #tpu.memory_space<vmem>>, vector<1x8xf32>
    %120 = vector.broadcast %119 : vector<1x8xf32> to vector<8x8xf32>
    %121 = arith.addf %118, %120 : vector<8x8xf32>
    %122 = math.tanh %121 : vector<8x8xf32>
    %c0_91 = arith.constant 0 : index
    %c0_92 = arith.constant 0 : index
    %123 = vector.load %arg8[%c0_91, %c0_92] : memref<8x8xf32, #tpu.memory_space<vmem>>, vector<8x8xf32>
    tpu.vector_store %arg8[%c0_91, %c0_92], %122 {strides = array<i32>} : memref<8x8xf32, #tpu.memory_space<vmem>>, vector<8x8xf32>,
    return
  }
  func.func @transform_0(%arg0: i32) -> (i32, i32) {
    %c0_i32 = arith.constant 0 : i32
    %c0_i32_0 = arith.constant 0 : i32
    return %arg0, %c0_i32 : i32, i32
  }
  func.func @transform_1(%arg0: i32) -> (i32, i32) {
    %c0_i32 = arith.constant 0 : i32
    %c0_i32_0 = arith.constant 0 : i32
    %c0_i32_1 = arith.constant 0 : i32
    return %c0_i32, %c0_i32_0 : i32, i32
  }
  func.func @transform_2(%arg0: i32) -> (i32, i32) {
    %c0_i32 = arith.constant 0 : i32
    %c0_i32_0 = arith.constant 0 : i32
    %c0_i32_1 = arith.constant 0 : i32
    return %c0_i32, %c0_i32_0 : i32, i32
  }
  func.func @transform_3(%arg0: i32) -> (i32, i32) {
    %c0_i32 = arith.constant 0 : i32
    %c0_i32_0 = arith.constant 0 : i32
    %c0_i32_1 = arith.constant 0 : i32
    return %c0_i32, %c0_i32_0 : i32, i32
  }
  func.func @transform_4(%arg0: i32) -> (i32, i32) {
    %c0_i32 = arith.constant 0 : i32
    %c0_i32_0 = arith.constant 0 : i32
    %c0_i32_1 = arith.constant 0 : i32
    return %c0_i32, %c0_i32_0 : i32, i32
  }
  func.func @transform_5(%arg0: i32) -> (i32, i32) {
    %c0_i32 = arith.constant 0 : i32
    %c0_i32_0 = arith.constant 0 : i32
    %c0_i32_1 = arith.constant 0 : i32
    return %c0_i32, %c0_i32_0 : i32, i32
  }
  func.func @transform_6(%arg0: i32) -> (i32, i32) {
    %c0_i32 = arith.constant 0 : i32
    %c0_i32_0 = arith.constant 0 : i32
    %c0_i32_1 = arith.constant 0 : i32
    return %c0_i32, %c0_i32_0 : i32, i32
  }
  func.func @transform_7(%arg0: i32) -> (i32, i32) {
    %c0_i32 = arith.constant 0 : i32
    %c0_i32_0 = arith.constant 0 : i32
    return %arg0, %c0_i32 : i32, i32
  }
}

</mosaic_0001>

<llo_original>
// kernel: cnn_forward.1
$region0: #{cnn_forward.1}
  #allocation0 [shape = 'u32[]', space=smem, size = 0x4, offset = 0x4, fixed_abs, tag = 'smem constant byte address 0x4 - core index']
  #allocation1 [shape = 'u32[144,128]{1,0:T(1,128)}', space=vmem, size = 0x12000, scoped, tag = 'internal scratch']
  #allocation2 [shape = 'f32[8,1920]{1,0:T(8,128)}', space=vmem, size = 0xf000, scoped, tag = 'scratch operand']
  %s0 = inlined_call_operand.vmem [shape: f32[8,2688], index: 0, kind: input, shape index: {}]
  %s1 = inlined_call_operand.vmem [shape: bf16[896,128], index: 1, kind: input, shape index: {}]
  %s2 = inlined_call_operand.vmem [shape: f32[1,128], index: 2, kind: input, shape index: {}]
  %s3 = inlined_call_operand.vmem [shape: bf16[1920,64], index: 3, kind: input, shape index: {}]
  %s4 = inlined_call_operand.vmem [shape: f32[1,64], index: 4, kind: input, shape index: {}]
  %s5 = inlined_call_operand.vmem [shape: f32[64,8], index: 5, kind: input, shape index: {}]
  %s6 = inlined_call_operand.vmem [shape: f32[1,8], index: 6, kind: input, shape index: {}]
  %s7 = inlined_call_operand.hbm [shape: f32[8,8], index: 7, kind: output, shape index: {}]
  %s8 = sld [smem:[#allocation0]]
  $region38: #{cnn_forward.1} parent=0
    _
  %s10 = ssub.s32 1, %s8
  %s11 = scalar_select 0, %s10, %s8
  $region1: #{cnn_forward.1} parent=0
    #allocation3 [shape = 'u8[4096]{0}', space=vmem, size = 0x1000, scoped, tag = 'output window, operand 0, single buffered']
    #allocation4 [shape = 's32[1]{0}', space=sflag, size = 0x4, scoped, tag = 'scoped memory for cnn_forward.1']
    %12 = vsyncpa [#allocation4], 0
    // Predicated region
    $region2: #{cnn_forward.1} parent=1 // pred_check
      _
    $region3: #{cnn_forward.1} parent=1 // pred_check_branch
      %14 = sbr.rel (0) target = $region5
    $region4: #{cnn_forward.1} parent=1 // pred_region
      _
    $region5: #{cnn_forward.1} parent=1 // pred_fallthru
      _
    // Predicated region
    $region6: #{cnn_forward.1} parent=1 // pred_check
      _
    $region7: #{cnn_forward.1} parent=1 // pred_check_branch
      %16 = sbr.rel (0) target = $region9
    $region8: #{cnn_forward.1} parent=1 // pred_region
      _
    $region9: #{cnn_forward.1} parent=1 // pred_fallthru
      _
    // Predicated region
    $region10: #{cnn_forward.1} parent=1 // pred_check
      _
    $region11: #{cnn_forward.1} parent=1 // pred_check_branch
      %18 = sbr.rel (0) target = $region13
    $region12: #{cnn_forward.1} parent=1 // pred_region
      _
    $region13: #{cnn_forward.1} parent=1 // pred_fallthru
      _
    // Predicated region
    $region14: #{cnn_forward.1} parent=1 // pred_check
      _
    $region15: #{cnn_forward.1} parent=1 // pred_check_branch
      %20 = sbr.rel (0) target = $region17
    $region16: #{cnn_forward.1} parent=1 // pred_region
      _
    $region17: #{cnn_forward.1} parent=1 // pred_fallthru
      _
    // Predicated region
    $region18: #{cnn_forward.1} parent=1 // pred_check
      _
    $region19: #{cnn_forward.1} parent=1 // pred_check_branch
      %22 = sbr.rel (0) target = $region21
    $region20: #{cnn_forward.1} parent=1 // pred_region
      _
    $region21: #{cnn_forward.1} parent=1 // pred_fallthru
      _
    // Predicated region
    $region22: #{cnn_forward.1} parent=1 // pred_check
      _
    $region23: #{cnn_forward.1} parent=1 // pred_check_branch
      %24 = sbr.rel (0) target = $region25
    $region24: #{cnn_forward.1} parent=1 // pred_region
      _
    $region25: #{cnn_forward.1} parent=1 // pred_fallthru
      _
    // Predicated region
    $region26: #{cnn_forward.1} parent=1 // pred_check
      _
    $region27: #{cnn_forward.1} parent=1 // pred_check_branch
      %26 = sbr.rel (0) target = $region29
    $region28: #{cnn_forward.1} parent=1 // pred_region
      _
    $region29: #{cnn_forward.1} parent=1 // pred_fallthru
      _
    %v27 = vld [vmem:[%s1] sm:$0xf]
    %v28 = vld [vmem:[%s1 + $0x4] sm:$0xf]
    %v29 = vld [vmem:[%s1 + $0x8] sm:$0xf]
    %v30 = vld [vmem:[%s1 + $0xc] sm:$0xf]
    %v31 = vld [vmem:[%s1 + $0x10] sm:$0xf]
    %v32 = vld [vmem:[%s1 + $0x14] sm:$0xf]
    %v33 = vld [vmem:[%s1 + $0x18] sm:$0xf]
    %v34 = vld [vmem:[%s1 + $0x1c] sm:$0xf]
    %v35 = vld [vmem:[%s1 + $0x20] sm:$0xf]
    %v36 = vld [vmem:[%s1 + $0x24] sm:$0xf]
    %v37 = vld [vmem:[%s1 + $0x28] sm:$0xf]
    %v38 = vld [vmem:[%s1 + $0x2c] sm:$0xf]
    %v39 = vld [vmem:[%s1 + $0x30] sm:$0xf]
    %v40 = vld [vmem:[%s1 + $0x34] sm:$0xf]
    %v41 = vld [vmem:[%s1 + $0x38] sm:$0xf]
    %v42 = vld [vmem:[%s1 + $0x3c] sm:$0xf]
    %v43 = vld [vmem:[%s1 + $0x40] sm:$0xf]
    %v44 = vld [vmem:[%s1 + $0x44] sm:$0xf]
    %v45 = vld [vmem:[%s1 + $0x48] sm:$0xf]
    %v46 = vld [vmem:[%s1 + $0x4c] sm:$0xf]
    %v47 = vld [vmem:[%s1 + $0x50] sm:$0xf]
    %v48 = vld [vmem:[%s1 + $0x54] sm:$0xf]
    %v49 = vld [vmem:[%s1 + $0x58] sm:$0xf]
    %v50 = vld [vmem:[%s1 + $0x5c] sm:$0xf]
    %v51 = vld [vmem:[%s1 + $0x60] sm:$0xf]
    %v52 = vld [vmem:[%s1 + $0x64] sm:$0xf]
    %v53 = vld [vmem:[%s1 + $0x68] sm:$0xf]
    %v54 = vld [vmem:[%s1 + $0x6c] sm:$0xf]
    %v55 = vld [vmem:[%s1 + $0x70] sm:$0xf]
    %v56 = vld [vmem:[%s1 + $0x74] sm:$0xf]
    %v57 = vld [vmem:[%s1 + $0x78] sm:$0xf]
    %v58 = vld [vmem:[%s1 + $0x7c] sm:$0xf]
    %v59 = vld [vmem:[%s1 + $0x80] sm:$0xf]
    %v60 = vld [vmem:[%s1 + $0x84] sm:$0xf]
    %v61 = vld [vmem:[%s1 + $0x88] sm:$0xf]
    %v62 = vld [vmem:[%s1 + $0x8c] sm:$0xf]
    %v63 = vld [vmem:[%s1 + $0x90] sm:$0xf]
    %v64 = vld [vmem:[%s1 + $0x94] sm:$0xf]
    %v65 = vld [vmem:[%s1 + $0x98] sm:$0xf]
    %v66 = vld [vmem:[%s1 + $0x9c] sm:$0xf]
    %v67 = vld [vmem:[%s1 + $0xa0] sm:$0xf]
    %v68 = vld [vmem:[%s1 + $0xa4] sm:$0xf]
    %v69 = vld [vmem:[%s1 + $0xa8] sm:$0xf]
    %v70 = vld [vmem:[%s1 + $0xac] sm:$0xf]
    %v71 = vld [vmem:[%s1 + $0xb0] sm:$0xf]
    %v72 = vld [vmem:[%s1 + $0xb4] sm:$0xf]
    %v73 = vld [vmem:[%s1 + $0xb8] sm:$0xf]
    %v74 = vld [vmem:[%s1 + $0xbc] sm:$0xf]
    %v75 = vld [vmem:[%s1 + $0xc0] sm:$0xf]
    %v76 = vld [vmem:[%s1 + $0xc4] sm:$0xf]
    %v77 = vld [vmem:[%s1 + $0xc8] sm:$0xf]
    %v78 = vld [vmem:[%s1 + $0xcc] sm:$0xf]
    %v79 = vld [vmem:[%s1 + $0xd0] sm:$0xf]
    %v80 = vld [vmem:[%s1 + $0xd4] sm:$0xf]
    %v81 = vld [vmem:[%s1 + $0xd8] sm:$0xf]
    %v82 = vld [vmem:[%s1 + $0xdc] sm:$0xf]
    %v83 = vld [vmem:[%s1 + $0xe0] sm:$0xf]
    %v84 = vld [vmem:[%s1 + $0xe4] sm:$0xf]
    %v85 = vld [vmem:[%s1 + $0xe8] sm:$0xf]
    %v86 = vld [vmem:[%s1 + $0xec] sm:$0xf]
    %v87 = vld [vmem:[%s1 + $0xf0] sm:$0xf]
    %v88 = vld [vmem:[%s1 + $0xf4] sm:$0xf]
    %v89 = vld [vmem:[%s1 + $0xf8] sm:$0xf]
    %v90 = vld [vmem:[%s1 + $0xfc] sm:$0xf]
    %v91 = vld [vmem:[%s1 + $0x100] sm:$0xf]
    %v92 = vld [vmem:[%s1 + $0x104] sm:$0xf]
    %v93 = vld [vmem:[%s1 + $0x108] sm:$0xf]
    %v94 = vld [vmem:[%s1 + $0x10c] sm:$0xf]
    %v95 = vld [vmem:[%s1 + $0x110] sm:$0xf]
    %v96 = vld [vmem:[%s1 + $0x114] sm:$0xf]
    %v97 = vld [vmem:[%s1 + $0x118] sm:$0xf]
    %v98 = vld [vmem:[%s1 + $0x11c] sm:$0xf]
    %v99 = vld [vmem:[%s1 + $0x120] sm:$0xf]
    %v100 = vld [vmem:[%s1 + $0x124] sm:$0xf]
    %v101 = vld [vmem:[%s1 + $0x128] sm:$0xf]
    %v102 = vld [vmem:[%s1 + $0x12c] sm:$0xf]
    %v103 = vld [vmem:[%s1 + $0x130] sm:$0xf]
    %v104 = vld [vmem:[%s1 + $0x134] sm:$0xf]
    %v105 = vld [vmem:[%s1 + $0x138] sm:$0xf]
    %v106 = vld [vmem:[%s1 + $0x13c] sm:$0xf]
    %v107 = vld [vmem:[%s1 + $0x140] sm:$0xf]
    %v108 = vld [vmem:[%s1 + $0x144] sm:$0xf]
    %v109 = vld [vmem:[%s1 + $0x148] sm:$0xf]
    %v110 = vld [vmem:[%s1 + $0x14c] sm:$0xf]
    %v111 = vld [vmem:[%s1 + $0x150] sm:$0xf]
    %v112 = vld [vmem:[%s1 + $0x154] sm:$0xf]
    %v113 = vld [vmem:[%s1 + $0x158] sm:$0xf]
    %v114 = vld [vmem:[%s1 + $0x15c] sm:$0xf]
    %v115 = vld [vmem:[%s1 + $0x160] sm:$0xf]
    %v116 = vld [vmem:[%s1 + $0x164] sm:$0xf]
    %v117 = vld [vmem:[%s1 + $0x168] sm:$0xf]
    %v118 = vld [vmem:[%s1 + $0x16c] sm:$0xf]
    %v119 = vld [vmem:[%s1 + $0x170] sm:$0xf]
    %v120 = vld [vmem:[%s1 + $0x174] sm:$0xf]
    %v121 = vld [vmem:[%s1 + $0x178] sm:$0xf]
    %v122 = vld [vmem:[%s1 + $0x17c] sm:$0xf]
    %v123 = vld [vmem:[%s1 + $0x180] sm:$0xf]
    %v124 = vld [vmem:[%s1 + $0x184] sm:$0xf]
    %v125 = vld [vmem:[%s1 + $0x188] sm:$0xf]
    %v126 = vld [vmem:[%s1 + $0x18c] sm:$0xf]
    %v127 = vld [vmem:[%s1 + $0x190] sm:$0xf]
    %v128 = vld [vmem:[%s1 + $0x194] sm:$0xf]
    %v129 = vld [vmem:[%s1 + $0x198] sm:$0xf]
    %v130 = vld [vmem:[%s1 + $0x19c] sm:$0xf]
    %v131 = vld [vmem:[%s1 + $0x1a0] sm:$0xf]
    %v132 = vld [vmem:[%s1 + $0x1a4] sm:$0xf]
    %v133 = vld [vmem:[%s1 + $0x1a8] sm:$0xf]
    %v134 = vld [vmem:[%s1 + $0x1ac] sm:$0xf]
    %v135 = vld [vmem:[%s1 + $0x1b0] sm:$0xf]
    %v136 = vld [vmem:[%s1 + $0x1b4] sm:$0xf]
    %v137 = vld [vmem:[%s1 + $0x1b8] sm:$0xf]
    %v138 = vld [vmem:[%s1 + $0x1bc] sm:$0xf]
    %v139 = vunpack.c.l.bf16 %v27
    %v140 = vunpack.c.l.bf16 %v28
    %v141 = vunpack.c.l.bf16 %v29
    %v142 = vunpack.c.l.bf16 %v30
    %v143 = vunpack.c.l.bf16 %v31
    %v144 = vunpack.c.l.bf16 %v32
    %v145 = vunpack.c.l.bf16 %v33
    %v146 = vunpack.c.l.bf16 %v34
    %v147 = vunpack.c.l.bf16 %v35
    %v148 = vunpack.c.l.bf16 %v36
    %v149 = vunpack.c.l.bf16 %v37
    %v150 = vunpack.c.l.bf16 %v38
    %v151 = vunpack.c.l.bf16 %v39
    %v152 = vunpack.c.l.bf16 %v40
    %v153 = vunpack.c.l.bf16 %v41
    %v154 = vunpack.c.l.bf16 %v42
    %v155 = vunpack.c.l.bf16 %v43
    %v156 = vunpack.c.l.bf16 %v44
    %v157 = vunpack.c.l.bf16 %v45
    %v158 = vunpack.c.l.bf16 %v46
    %v159 = vunpack.c.l.bf16 %v47
    %v160 = vunpack.c.l.bf16 %v48
    %v161 = vunpack.c.l.bf16 %v49
    %v162 = vunpack.c.l.bf16 %v50
    %v163 = vunpack.c.l.bf16 %v51
    %v164 = vunpack.c.l.bf16 %v52
    %v165 = vunpack.c.l.bf16 %v53
    %v166 = vunpack.c.l.bf16 %v54
    %v167 = vunpack.c.l.bf16 %v55
    %v168 = vunpack.c.l.bf16 %v56
    %v169 = vunpack.c.l.bf16 %v57
    %v170 = vunpack.c.l.bf16 %v58
    %v171 = vunpack.c.l.bf16 %v59
    %v172 = vunpack.c.l.bf16 %v60
    %v173 = vunpack.c.l.bf16 %v61
    %v174 = vunpack.c.l.bf16 %v62
    %v175 = vunpack.c.l.bf16 %v63
    %v176 = vunpack.c.l.bf16 %v64
    %v177 = vunpack.c.l.bf16 %v65
    %v178 = vunpack.c.l.bf16 %v66
    %v179 = vunpack.c.l.bf16 %v67
    %v180 = vunpack.c.l.bf16 %v68
    %v181 = vunpack.c.l.bf16 %v69
    %v182 = vunpack.c.l.bf16 %v70
    %v183 = vunpack.c.l.bf16 %v71
    %v184 = vunpack.c.l.bf16 %v72
    %v185 = vunpack.c.l.bf16 %v73
    %v186 = vunpack.c.l.bf16 %v74
    %v187 = vunpack.c.l.bf16 %v75
    %v188 = vunpack.c.l.bf16 %v76
    %v189 = vunpack.c.l.bf16 %v77
    %v190 = vunpack.c.l.bf16 %v78
    %v191 = vunpack.c.l.bf16 %v79
    %v192 = vunpack.c.l.bf16 %v80
    %v193 = vunpack.c.l.bf16 %v81
    %v194 = vunpack.c.l.bf16 %v82
    %v195 = vunpack.c.l.bf16 %v83
    %v196 = vunpack.c.l.bf16 %v84
    %v197 = vunpack.c.l.bf16 %v85
    %v198 = vunpack.c.l.bf16 %v86
    %v199 = vunpack.c.l.bf16 %v87
    %v200 = vunpack.c.l.bf16 %v88
    %v201 = vunpack.c.l.bf16 %v89
    %v202 = vunpack.c.l.bf16 %v90
    %v203 = vunpack.c.l.bf16 %v91
    %v204 = vunpack.c.l.bf16 %v92
    %v205 = vunpack.c.l.bf16 %v93
    %v206 = vunpack.c.l.bf16 %v94
    %v207 = vunpack.c.l.bf16 %v95
    %v208 = vunpack.c.l.bf16 %v96
    %v209 = vunpack.c.l.bf16 %v97
    %v210 = vunpack.c.l.bf16 %v98
    %v211 = vunpack.c.l.bf16 %v99
    %v212 = vunpack.c.l.bf16 %v100
    %v213 = vunpack.c.l.bf16 %v101
    %v214 = vunpack.c.l.bf16 %v102
    %v215 = vunpack.c.l.bf16 %v103
    %v216 = vunpack.c.l.bf16 %v104
    %v217 = vunpack.c.l.bf16 %v105
    %v218 = vunpack.c.l.bf16 %v106
    %v219 = vunpack.c.l.bf16 %v107
    %v220 = vunpack.c.l.bf16 %v108
    %v221 = vunpack.c.l.bf16 %v109
    %v222 = vunpack.c.l.bf16 %v110
    %v223 = vunpack.c.l.bf16 %v111
    %v224 = vunpack.c.l.bf16 %v112
    %v225 = vunpack.c.l.bf16 %v113
    %v226 = vunpack.c.l.bf16 %v114
    %v227 = vunpack.c.l.bf16 %v115
    %v228 = vunpack.c.l.bf16 %v116
    %v229 = vunpack.c.l.bf16 %v117
    %v230 = vunpack.c.l.bf16 %v118
    %v231 = vunpack.c.l.bf16 %v119
    %v232 = vunpack.c.l.bf16 %v120
    %v233 = vunpack.c.l.bf16 %v121
    %v234 = vunpack.c.l.bf16 %v122
    %v235 = vunpack.c.l.bf16 %v123
    %v236 = vunpack.c.l.bf16 %v124
    %v237 = vunpack.c.l.bf16 %v125
    %v238 = vunpack.c.l.bf16 %v126
    %v239 = vunpack.c.l.bf16 %v127
    %v240 = vunpack.c.l.bf16 %v128
    %v241 = vunpack.c.l.bf16 %v129
    %v242 = vunpack.c.l.bf16 %v130
    %v243 = vunpack.c.l.bf16 %v131
    %v244 = vunpack.c.l.bf16 %v132
    %v245 = vunpack.c.l.bf16 %v133
    %v246 = vunpack.c.l.bf16 %v134
    %v247 = vunpack.c.l.bf16 %v135
    %v248 = vunpack.c.l.bf16 %v136
    %v249 = vunpack.c.l.bf16 %v137
    %v250 = vunpack.c.l.bf16 %v138
    %v251 = vld [vmem:[%s2] sm:$0x1]
    %v252 = vld [vmem:[%s0] sm:$0xff]
    %v253 = vld [vmem:[%s0 + $0x8] sm:$0xff]
    %v254 = vld [vmem:[%s0 + $0x10] sm:$0xff]
    %v255 = vld [vmem:[%s0 + $0x18] sm:$0xff]
    %v256 = vld [vmem:[%s0 + $0x20] sm:$0xff]
    %v257 = vld [vmem:[%s0 + $0x28] sm:$0xff]
    %v258 = vld [vmem:[%s0 + $0x30] sm:$0xff]
    %v260 = vlaneseq
    %v261 = vshrl.u32 %v260, 7
    %v262 = vsub.s32 0, %v261
    %v263 = vrot.slane %v251, %v262
    %265 = vmatprep.subr.mxu0 0.0
    %266 = vmatpush1.msra.mxu0 %v139
    %267 = vmatprep.subr.mxu0 0.0
    %268 = vmatpush1.msra.mxu0 %v140
    %269 = vmatprep.subr.mxu0 0.0
    %270 = vmatpush1.msra.mxu0 %v141
    %271 = vmatprep.subr.mxu0 0.0
    %272 = vmatpush1.msra.mxu0 %v142
    %273 = vmatprep.subr.mxu0 0.0
    %274 = vmatpush1.msra.mxu0 %v143
    %275 = vmatprep.subr.mxu0 0.0
    %276 = vmatpush1.msra.mxu0 %v144
    %277 = vmatprep.subr.mxu0 0.0
    %278 = vmatpush1.msra.mxu0 %v145
    %279 = vmatprep.subr.mxu0 0.0
    %280 = vmatpush1.msra.mxu0 %v146
    %281 = vmatprep.subr.mxu0 0.0
    %282 = vmatpush1.msra.mxu0 %v147
    %283 = vmatprep.subr.mxu0 0.0
    %284 = vmatpush1.msra.mxu0 %v148
    %285 = vmatprep.subr.mxu0 0.0
    %286 = vmatpush1.msra.mxu0 %v149
    %287 = vmatprep.subr.mxu0 0.0
    %288 = vmatpush1.msra.mxu0 %v150
    %289 = vmatprep.subr.mxu0 0.0
    %290 = vmatpush1.msra.mxu0 %v151
    %291 = vmatprep.subr.mxu0 0.0
    %292 = vmatpush1.msra.mxu0 %v152
    %293 = vmatprep.subr.mxu0 0.0
    %294 = vmatpush1.msra.mxu0 %v153
    %295 = vmatprep.subr.mxu0 0.0
    %296 = vmatpush1.msra.mxu0 %v154
    %297 = vmatprep.subr.mxu0 0.0
    %298 = vmatpush1.msra.mxu0 %v155
    %299 = vmatprep.subr.mxu0 0.0
    %300 = vmatpush1.msra.mxu0 %v156
    %301 = vmatprep.subr.mxu0 0.0
    %302 = vmatpush1.msra.mxu0 %v157
    %303 = vmatprep.subr.mxu0 0.0
    %304 = vmatpush1.msra.mxu0 %v158
    %305 = vmatprep.subr.mxu0 0.0
    %306 = vmatpush1.msra.mxu0 %v159
    %307 = vmatprep.subr.mxu0 0.0
    %308 = vmatpush1.msra.mxu0 %v160
    %309 = vmatprep.subr.mxu0 0.0
    %310 = vmatpush1.msra.mxu0 %v161
    %311 = vmatprep.subr.mxu0 0.0
    %312 = vmatpush1.msra.mxu0 %v162
    %313 = vmatprep.subr.mxu0 0.0
    %314 = vmatpush1.msra.mxu0 %v163
    %315 = vmatprep.subr.mxu0 0.0
    %316 = vmatpush1.msra.mxu0 %v164
    %317 = vmatprep.subr.mxu0 0.0
    %318 = vmatpush1.msra.mxu0 %v165
    %319 = vmatprep.subr.mxu0 0.0
    %320 = vmatpush1.msra.mxu0 %v166
    %321 = vmatprep.subr.mxu0 0.0
    %322 = vmatpush1.msra.mxu0 %v167
    %323 = vmatprep.subr.mxu0 0.0
    %324 = vmatpush1.msra.mxu0 %v168
    %325 = vmatprep.subr.mxu0 0.0
    %326 = vmatpush1.msra.mxu0 %v169
    %327 = vmatprep.subr.mxu0 0.0
    %328 = vmatpush1.msra.mxu0 %v170
    %329 = vmatprep.mubr.f32.mxu0 %v253
    %330 = vmatmul.mubr.f32.gmra.mrb[0].mxu0 %v252
    %v331 = vpop.f32.mrb[0].mxu0
    %v332 = vadd.f32 %v263, %v331
    %v333 = vpop.f32.mrb[0].mxu0
    %334 = vdwg.mxu0
    %335 = vmatprep.subr.mxu0 0.0
    %336 = vmatpush1.msra.mxu0 %v171
    %337 = vmatprep.subr.mxu0 0.0
    %338 = vmatpush1.msra.mxu0 %v172
    %339 = vmatprep.subr.mxu0 0.0
    %340 = vmatpush1.msra.mxu0 %v173
    %341 = vmatprep.subr.mxu0 0.0
    %342 = vmatpush1.msra.mxu0 %v174
    %343 = vmatprep.subr.mxu0 0.0
    %344 = vmatpush1.msra.mxu0 %v175
    %345 = vmatprep.subr.mxu0 0.0
    %346 = vmatpush1.msra.mxu0 %v176
    %347 = vmatprep.subr.mxu0 0.0
    %348 = vmatpush1.msra.mxu0 %v177
    %349 = vmatprep.subr.mxu0 0.0
    %350 = vmatpush1.msra.mxu0 %v178
    %351 = vmatprep.subr.mxu0 0.0
    %352 = vmatpush1.msra.mxu0 %v179
    %353 = vmatprep.subr.mxu0 0.0
    %354 = vmatpush1.msra.mxu0 %v180
    %355 = vmatprep.subr.mxu0 0.0
    %356 = vmatpush1.msra.mxu0 %v181
    %357 = vmatprep.subr.mxu0 0.0
    %358 = vmatpush1.msra.mxu0 %v182
    %359 = vmatprep.subr.mxu0 0.0
    %360 = vmatpush1.msra.mxu0 %v183
    %361 = vmatprep.subr.mxu0 0.0
    %362 = vmatpush1.msra.mxu0 %v184
    %363 = vmatprep.subr.mxu0 0.0
    %364 = vmatpush1.msra.mxu0 %v185
    %365 = vmatprep.subr.mxu0 0.0
    %366 = vmatpush1.msra.mxu0 %v186
    %367 = vmatprep.subr.mxu0 0.0
    %368 = vmatpush1.msra.mxu0 %v187
    %369 = vmatprep.subr.mxu0 0.0
    %370 = vmatpush1.msra.mxu0 %v188
    %371 = vmatprep.subr.mxu0 0.0
    %372 = vmatpush1.msra.mxu0 %v189
    %373 = vmatprep.subr.mxu0 0.0
    %374 = vmatpush1.msra.mxu0 %v190
    %375 = vmatprep.subr.mxu0 0.0
    %376 = vmatpush1.msra.mxu0 %v191
    %377 = vmatprep.subr.mxu0 0.0
    %378 = vmatpush1.msra.mxu0 %v192
    %379 = vmatprep.subr.mxu0 0.0
    %380 = vmatpush1.msra.mxu0 %v193
    %381 = vmatprep.subr.mxu0 0.0
    %382 = vmatpush1.msra.mxu0 %v194
    %383 = vmatprep.subr.mxu0 0.0
    %384 = vmatpush1.msra.mxu0 %v195
    %385 = vmatprep.subr.mxu0 0.0
    %386 = vmatpush1.msra.mxu0 %v196
    %387 = vmatprep.subr.mxu0 0.0
    %388 = vmatpush1.msra.mxu0 %v197
    %389 = vmatprep.subr.mxu0 0.0
    %390 = vmatpush1.msra.mxu0 %v198
    %391 = vmatprep.subr.mxu0 0.0
    %392 = vmatpush1.msra.mxu0 %v199
    %393 = vmatprep.subr.mxu0 0.0
    %394 = vmatpush1.msra.mxu0 %v200
    %395 = vmatprep.subr.mxu0 0.0
    %396 = vmatpush1.msra.mxu0 %v201
    %397 = vmatprep.subr.mxu0 0.0
    %398 = vmatpush1.msra.mxu0 %v202
    %399 = vmatprep.mubr.f32.mxu0 %v255
    %400 = vmatmul.mubr.f32.gmra.mrb[0].mxu0 %v254
    %v401 = vpop.f32.mrb[0].mxu0
    %v402 = vadd.f32 %v332, %v401
    %v403 = vpop.f32.mrb[0].mxu0
    %404 = vdwg.mxu0
    %405 = vmatprep.subr.mxu0 0.0
    %406 = vmatpush1.msra.mxu0 %v203
    %407 = vmatprep.subr.mxu0 0.0
    %408 = vmatpush1.msra.mxu0 %v204
    %409 = vmatprep.subr.mxu0 0.0
    %410 = vmatpush1.msra.mxu0 %v205
    %411 = vmatprep.subr.mxu0 0.0
    %412 = vmatpush1.msra.mxu0 %v206
    %413 = vmatprep.subr.mxu0 0.0
    %414 = vmatpush1.msra.mxu0 %v207
    %415 = vmatprep.subr.mxu0 0.0
    %416 = vmatpush1.msra.mxu0 %v208
    %417 = vmatprep.subr.mxu0 0.0
    %418 = vmatpush1.msra.mxu0 %v209
    %419 = vmatprep.subr.mxu0 0.0
    %420 = vmatpush1.msra.mxu0 %v210
    %421 = vmatprep.subr.mxu0 0.0
    %422 = vmatpush1.msra.mxu0 %v211
    %423 = vmatprep.subr.mxu0 0.0
    %424 = vmatpush1.msra.mxu0 %v212
    %425 = vmatprep.subr.mxu0 0.0
    %426 = vmatpush1.msra.mxu0 %v213
    %427 = vmatprep.subr.mxu0 0.0
    %428 = vmatpush1.msra.mxu0 %v214
    %429 = vmatprep.subr.mxu0 0.0
    %430 = vmatpush1.msra.mxu0 %v215
    %431 = vmatprep.subr.mxu0 0.0
    %432 = vmatpush1.msra.mxu0 %v216
    %433 = vmatprep.subr.mxu0 0.0
    %434 = vmatpush1.msra.mxu0 %v217
    %435 = vmatprep.subr.mxu0 0.0
    %436 = vmatpush1.msra.mxu0 %v218
    %437 = vmatprep.subr.mxu0 0.0
    %438 = vmatpush1.msra.mxu0 %v219
    %439 = vmatprep.subr.mxu0 0.0
    %440 = vmatpush1.msra.mxu0 %v220
    %441 = vmatprep.subr.mxu0 0.0
    %442 = vmatpush1.msra.mxu0 %v221
    %443 = vmatprep.subr.mxu0 0.0
    %444 = vmatpush1.msra.mxu0 %v222
    %445 = vmatprep.subr.mxu0 0.0
    %446 = vmatpush1.msra.mxu0 %v223
    %447 = vmatprep.subr.mxu0 0.0
    %448 = vmatpush1.msra.mxu0 %v224
    %449 = vmatprep.subr.mxu0 0.0
    %450 = vmatpush1.msra.mxu0 %v225
    %451 = vmatprep.subr.mxu0 0.0
    %452 = vmatpush1.msra.mxu0 %v226
    %453 = vmatprep.subr.mxu0 0.0
    %454 = vmatpush1.msra.mxu0 %v227
    %455 = vmatprep.subr.mxu0 0.0
    %456 = vmatpush1.msra.mxu0 %v228
    %457 = vmatprep.subr.mxu0 0.0
    %458 = vmatpush1.msra.mxu0 %v229
    %459 = vmatprep.subr.mxu0 0.0
    %460 = vmatpush1.msra.mxu0 %v230
    %461 = vmatprep.subr.mxu0 0.0
    %462 = vmatpush1.msra.mxu0 %v231
    %463 = vmatprep.subr.mxu0 0.0
    %464 = vmatpush1.msra.mxu0 %v232
    %465 = vmatprep.subr.mxu0 0.0
    %466 = vmatpush1.msra.mxu0 %v233
    %467 = vmatprep.subr.mxu0 0.0
    %468 = vmatpush1.msra.mxu0 %v234
    %469 = vmatprep.mubr.f32.mxu0 %v257
    %470 = vmatmul.mubr.f32.gmra.mrb[0].mxu0 %v256
    %v471 = vpop.f32.mrb[0].mxu0
    %v472 = vadd.f32 %v402, %v471
    %v473 = vpop.f32.mrb[0].mxu0
    %474 = vdwg.mxu0
    %475 = vmatprep.subr.mxu0 0.0
    %476 = vmatpush1.msra.mxu0 %v235
    %477 = vmatprep.subr.mxu0 0.0
    %478 = vmatpush1.msra.mxu0 %v236
    %479 = vmatprep.subr.mxu0 0.0
    %480 = vmatpush1.msra.mxu0 %v237
    %481 = vmatprep.subr.mxu0 0.0
    %482 = vmatpush1.msra.mxu0 %v238
    %483 = vmatprep.subr.mxu0 0.0
    %484 = vmatpush1.msra.mxu0 %v239
    %485 = vmatprep.subr.mxu0 0.0
    %486 = vmatpush1.msra.mxu0 %v240
    %487 = vmatprep.subr.mxu0 0.0
    %488 = vmatpush1.msra.mxu0 %v241
    %489 = vmatprep.subr.mxu0 0.0
    %490 = vmatpush1.msra.mxu0 %v242
    %491 = vmatprep.subr.mxu0 0.0
    %492 = vmatpush1.msra.mxu0 %v243
    %493 = vmatprep.subr.mxu0 0.0
    %494 = vmatpush1.msra.mxu0 %v244
    %495 = vmatprep.subr.mxu0 0.0
    %496 = vmatpush1.msra.mxu0 %v245
    %497 = vmatprep.subr.mxu0 0.0
    %498 = vmatpush1.msra.mxu0 %v246
    %499 = vmatprep.subr.mxu0 0.0
    %500 = vmatpush1.msra.mxu0 %v247
    %501 = vmatprep.subr.mxu0 0.0
    %502 = vmatpush1.msra.mxu0 %v248
    %503 = vmatprep.subr.mxu0 0.0
    %504 = vmatpush1.msra.mxu0 %v249
    %505 = vmatprep.subr.mxu0 0.0
    %506 = vmatpush1.msra.mxu0 %v250
    %507 = vmatprep.subr.mxu0 0.0
    %508 = vmatpush1.msra.mxu0 0.0
    %509 = vmatprep.subr.mxu0 0.0
    %510 = vmatpush1.msra.mxu0 0.0
    %511 = vmatprep.subr.mxu0 0.0
    %512 = vmatpush1.msra.mxu0 0.0
    %513 = vmatprep.subr.mxu0 0.0
    %514 = vmatpush1.msra.mxu0 0.0
    %515 = vmatprep.subr.mxu0 0.0
    %516 = vmatpush1.msra.mxu0 0.0
    %517 = vmatprep.subr.mxu0 0.0
    %518 = vmatpush1.msra.mxu0 0.0
    %519 = vmatprep.subr.mxu0 0.0
    %520 = vmatpush1.msra.mxu0 0.0
    %521 = vmatprep.subr.mxu0 0.0
    %522 = vmatpush1.msra.mxu0 0.0
    %523 = vmatprep.subr.mxu0 0.0
    %524 = vmatpush1.msra.mxu0 0.0
    %525 = vmatprep.subr.mxu0 0.0
    %526 = vmatpush1.msra.mxu0 0.0
    %527 = vmatprep.subr.mxu0 0.0
    %528 = vmatpush1.msra.mxu0 0.0
    %529 = vmatprep.subr.mxu0 0.0
    %530 = vmatpush1.msra.mxu0 0.0
    %531 = vmatprep.subr.mxu0 0.0
    %532 = vmatpush1.msra.mxu0 0.0
    %533 = vmatprep.subr.mxu0 0.0
    %534 = vmatpush1.msra.mxu0 0.0
    %535 = vmatprep.subr.mxu0 0.0
    %536 = vmatpush1.msra.mxu0 0.0
    %537 = vmatprep.subr.mxu0 0.0
    %538 = vmatpush1.msra.mxu0 0.0
    %539 = vmatprep.mubr.f32.mxu0 0.0
    %540 = vmatmul.mubr.f32.gmra.mrb[0].mxu0 %v258
    %v541 = vpop.f32.mrb[0].mxu0
    %v542 = vadd.f32 %v472, %v541
    %v543 = vpop.f32.mrb[0].mxu0
    %544 = vdwg.mxu0
    %v545 = vmax.f32 %v542, 0.0
    %546 = vst [vmem:[#allocation2] sm:$0xff] %v545
    %v547 = vld [vmem:[%s0 + $0x8] sm:$0xff]
    %v548 = vld [vmem:[%s0 + $0x10] sm:$0xff]
    %v549 = vld [vmem:[%s0 + $0x18] sm:$0xff]
    %v550 = vld [vmem:[%s0 + $0x20] sm:$0xff]
    %v551 = vld [vmem:[%s0 + $0x28] sm:$0xff]
    %v552 = vld [vmem:[%s0 + $0x30] sm:$0xff]
    %v553 = vld [vmem:[%s0 + $0x38] sm:$0xff]
    %554 = vmatprep.subr.mxu0 0.0
    %555 = vmatpush1.msra.mxu0 %v139
    %556 = vmatprep.subr.mxu0 0.0
    %557 = vmatpush1.msra.mxu0 %v140
    %558 = vmatprep.subr.mxu0 0.0
    %559 = vmatpush1.msra.mxu0 %v141
    %560 = vmatprep.subr.mxu0 0.0
    %561 = vmatpush1.msra.mxu0 %v142
    %562 = vmatprep.subr.mxu0 0.0
    %563 = vmatpush1.msra.mxu0 %v143
    %564 = vmatprep.subr.mxu0 0.0
    %565 = vmatpush1.msra.mxu0 %v144
    %566 = vmatprep.subr.mxu0 0.0
    %567 = vmatpush1.msra.mxu0 %v145
    %568 = vmatprep.subr.mxu0 0.0
    %569 = vmatpush1.msra.mxu0 %v146
    %570 = vmatprep.subr.mxu0 0.0
    %571 = vmatpush1.msra.mxu0 %v147
    %572 = vmatprep.subr.mxu0 0.0
    %573 = vmatpush1.msra.mxu0 %v148
    %574 = vmatprep.subr.mxu0 0.0
    %575 = vmatpush1.msra.mxu0 %v149
    %576 = vmatprep.subr.mxu0 0.0
    %577 = vmatpush1.msra.mxu0 %v150
    %578 = vmatprep.subr.mxu0 0.0
    %579 = vmatpush1.msra.mxu0 %v151
    %580 = vmatprep.subr.mxu0 0.0
    %581 = vmatpush1.msra.mxu0 %v152
    %582 = vmatprep.subr.mxu0 0.0
    %583 = vmatpush1.msra.mxu0 %v153
    %584 = vmatprep.subr.mxu0 0.0
    %585 = vmatpush1.msra.mxu0 %v154
    %586 = vmatprep.subr.mxu0 0.0
    %587 = vmatpush1.msra.mxu0 %v155
    %588 = vmatprep.subr.mxu0 0.0
    %589 = vmatpush1.msra.mxu0 %v156
    %590 = vmatprep.subr.mxu0 0.0
    %591 = vmatpush1.msra.mxu0 %v157
    %592 = vmatprep.subr.mxu0 0.0
    %593 = vmatpush1.msra.mxu0 %v158
    %594 = vmatprep.subr.mxu0 0.0
    %595 = vmatpush1.msra.mxu0 %v159
    %596 = vmatprep.subr.mxu0 0.0
    %597 = vmatpush1.msra.mxu0 %v160
    %598 = vmatprep.subr.mxu0 0.0
    %599 = vmatpush1.msra.mxu0 %v161
    %600 = vmatprep.subr.mxu0 0.0
    %601 = vmatpush1.msra.mxu0 %v162
    %602 = vmatprep.subr.mxu0 0.0
    %603 = vmatpush1.msra.mxu0 %v163
    %604 = vmatprep.subr.mxu0 0.0
    %605 = vmatpush1.msra.mxu0 %v164
    %606 = vmatprep.subr.mxu0 0.0
    %607 = vmatpush1.msra.mxu0 %v165
    %608 = vmatprep.subr.mxu0 0.0
    %609 = vmatpush1.msra.mxu0 %v166
    %610 = vmatprep.subr.mxu0 0.0
    %611 = vmatpush1.msra.mxu0 %v167
    %612 = vmatprep.subr.mxu0 0.0
    %613 = vmatpush1.msra.mxu0 %v168
    %614 = vmatprep.subr.mxu0 0.0
    %615 = vmatpush1.msra.mxu0 %v169
    %616 = vmatprep.subr.mxu0 0.0
    %617 = vmatpush1.msra.mxu0 %v170
    %618 = vmatprep.mubr.f32.mxu0 %v548
    %619 = vmatmul.mubr.f32.gmra.mrb[0].mxu0 %v547
    %v620 = vpop.f32.mrb[0].mxu0
    %v621 = vadd.f32 %v263, %v620
    %v622 = vpop.f32.mrb[0].mxu0
    %623 = vdwg.mxu0
    %624 = vmatprep.subr.mxu0 0.0
    %625 = vmatpush1.msra.mxu0 %v171
    %626 = vmatprep.subr.mxu0 0.0
    %627 = vmatpush1.msra.mxu0 %v172
    %628 = vmatprep.subr.mxu0 0.0
    %629 = vmatpush1.msra.mxu0 %v173
    %630 = vmatprep.subr.mxu0 0.0
    %631 = vmatpush1.msra.mxu0 %v174
    %632 = vmatprep.subr.mxu0 0.0
    %633 = vmatpush1.msra.mxu0 %v175
    %634 = vmatprep.subr.mxu0 0.0
    %635 = vmatpush1.msra.mxu0 %v176
    %636 = vmatprep.subr.mxu0 0.0
    %637 = vmatpush1.msra.mxu0 %v177
    %638 = vmatprep.subr.mxu0 0.0
    %639 = vmatpush1.msra.mxu0 %v178
    %640 = vmatprep.subr.mxu0 0.0
    %641 = vmatpush1.msra.mxu0 %v179
    %642 = vmatprep.subr.mxu0 0.0
    %643 = vmatpush1.msra.mxu0 %v180
    %644 = vmatprep.subr.mxu0 0.0
    %645 = vmatpush1.msra.mxu0 %v181
    %646 = vmatprep.subr.mxu0 0.0
    %647 = vmatpush1.msra.mxu0 %v182
    %648 = vmatprep.subr.mxu0 0.0
    %649 = vmatpush1.msra.mxu0 %v183
    %650 = vmatprep.subr.mxu0 0.0
    %651 = vmatpush1.msra.mxu0 %v184
    %652 = vmatprep.subr.mxu0 0.0
    %653 = vmatpush1.msra.mxu0 %v185
    %654 = vmatprep.subr.mxu0 0.0
    %655 = vmatpush1.msra.mxu0 %v186
    %656 = vmatprep.subr.mxu0 0.0
    %657 = vmatpush1.msra.mxu0 %v187
    %658 = vmatprep.subr.mxu0 0.0
    %659 = vmatpush1.msra.mxu0 %v188
    %660 = vmatprep.subr.mxu0 0.0
    %661 = vmatpush1.msra.mxu0 %v189
    %662 = vmatprep.subr.mxu0 0.0
    %663 = vmatpush1.msra.mxu0 %v190
    %664 = vmatprep.subr.mxu0 0.0
    %665 = vmatpush1.msra.mxu0 %v191
    %666 = vmatprep.subr.mxu0 0.0
    %667 = vmatpush1.msra.mxu0 %v192
    %668 = vmatprep.subr.mxu0 0.0
    %669 = vmatpush1.msra.mxu0 %v193
    %670 = vmatprep.subr.mxu0 0.0
    %671 = vmatpush1.msra.mxu0 %v194
    %672 = vmatprep.subr.mxu0 0.0
    %673 = vmatpush1.msra.mxu0 %v195
    %674 = vmatprep.subr.mxu0 0.0
    %675 = vmatpush1.msra.mxu0 %v196
    %676 = vmatprep.subr.mxu0 0.0
    %677 = vmatpush1.msra.mxu0 %v197
    %678 = vmatprep.subr.mxu0 0.0
    %679 = vmatpush1.msra.mxu0 %v198
    %680 = vmatprep.subr.mxu0 0.0
    %681 = vmatpush1.msra.mxu0 %v199
    %682 = vmatprep.subr.mxu0 0.0
    %683 = vmatpush1.msra.mxu0 %v200
    %684 = vmatprep.subr.mxu0 0.0
    %685 = vmatpush1.msra.mxu0 %v201
    %686 = vmatprep.subr.mxu0 0.0
    %687 = vmatpush1.msra.mxu0 %v202
    %688 = vmatprep.mubr.f32.mxu0 %v550
    %689 = vmatmul.mubr.f32.gmra.mrb[0].mxu0 %v549
    %v690 = vpop.f32.mrb[0].mxu0
    %v691 = vadd.f32 %v621, %v690
    %v692 = vpop.f32.mrb[0].mxu0
    %693 = vdwg.mxu0
    %694 = vmatprep.subr.mxu0 0.0
    %695 = vmatpush1.msra.mxu0 %v203
    %696 = vmatprep.subr.mxu0 0.0
    %697 = vmatpush1.msra.mxu0 %v204
    %698 = vmatprep.subr.mxu0 0.0
    %699 = vmatpush1.msra.mxu0 %v205
    %700 = vmatprep.subr.mxu0 0.0
    %701 = vmatpush1.msra.mxu0 %v206
    %702 = vmatprep.subr.mxu0 0.0
    %703 = vmatpush1.msra.mxu0 %v207
    %704 = vmatprep.subr.mxu0 0.0
    %705 = vmatpush1.msra.mxu0 %v208
    %706 = vmatprep.subr.mxu0 0.0
    %707 = vmatpush1.msra.mxu0 %v209
    %708 = vmatprep.subr.mxu0 0.0
    %709 = vmatpush1.msra.mxu0 %v210
    %710 = vmatprep.subr.mxu0 0.0
    %711 = vmatpush1.msra.mxu0 %v211
    %712 = vmatprep.subr.mxu0 0.0
    %713 = vmatpush1.msra.mxu0 %v212
    %714 = vmatprep.subr.mxu0 0.0
    %715 = vmatpush1.msra.mxu0 %v213
    %716 = vmatprep.subr.mxu0 0.0
    %717 = vmatpush1.msra.mxu0 %v214
    %718 = vmatprep.subr.mxu0 0.0
    %719 = vmatpush1.msra.mxu0 %v215
    %720 = vmatprep.subr.mxu0 0.0
    %721 = vmatpush1.msra.mxu0 %v216
    %722 = vmatprep.subr.mxu0 0.0
    %723 = vmatpush1.msra.mxu0 %v217
    %724 = vmatprep.subr.mxu0 0.0
    %725 = vmatpush1.msra.mxu0 %v218
    %726 = vmatprep.subr.mxu0 0.0
    %727 = vmatpush1.msra.mxu0 %v219
    %728 = vmatprep.subr.mxu0 0.0
    %729 = vmatpush1.msra.mxu0 %v220
    %730 = vmatprep.subr.mxu0 0.0
    %731 = vmatpush1.msra.mxu0 %v221
    %732 = vmatprep.subr.mxu0 0.0
    %733 = vmatpush1.msra.mxu0 %v222
    %734 = vmatprep.subr.mxu0 0.0
    %735 = vmatpush1.msra.mxu0 %v223
    %736 = vmatprep.subr.mxu0 0.0
    %737 = vmatpush1.msra.mxu0 %v224
    %738 = vmatprep.subr.mxu0 0.0
    %739 = vmatpush1.msra.mxu0 %v225
    %740 = vmatprep.subr.mxu0 0.0
    %741 = vmatpush1.msra.mxu0 %v226
    %742 = vmatprep.subr.mxu0 0.0
    %743 = vmatpush1.msra.mxu0 %v227
    %744 = vmatprep.subr.mxu0 0.0
    %745 = vmatpush1.msra.mxu0 %v228
    %746 = vmatprep.subr.mxu0 0.0
    %747 = vmatpush1.msra.mxu0 %v229
    %748 = vmatprep.subr.mxu0 0.0
    %749 = vmatpush1.msra.mxu0 %v230
    %750 = vmatprep.subr.mxu0 0.0
    %751 = vmatpush1.msra.mxu0 %v231
    %752 = vmatprep.subr.mxu0 0.0
    %753 = vmatpush1.msra.mxu0 %v232
    %754 = vmatprep.subr.mxu0 0.0
    %755 = vmatpush1.msra.mxu0 %v233
    %756 = vmatprep.subr.mxu0 0.0
    %757 = vmatpush1.msra.mxu0 %v234
    %758 = vmatprep.mubr.f32.mxu0 %v552
    %759 = vmatmul.mubr.f32.gmra.mrb[0].mxu0 %v551
    %v760 = vpop.f32.mrb[0].mxu0
    %v761 = vadd.f32 %v691, %v760
    %v762 = vpop.f32.mrb[0].mxu0
    %763 = vdwg.mxu0
    %764 = vmatprep.subr.mxu0 0.0
    %765 = vmatpush1.msra.mxu0 %v235
    %766 = vmatprep.subr.mxu0 0.0
    %767 = vmatpush1.msra.mxu0 %v236
    %768 = vmatprep.subr.mxu0 0.0
    %769 = vmatpush1.msra.mxu0 %v237
    %770 = vmatprep.subr.mxu0 0.0
    %771 = vmatpush1.msra.mxu0 %v238
    %772 = vmatprep.subr.mxu0 0.0
    %773 = vmatpush1.msra.mxu0 %v239
    %774 = vmatprep.subr.mxu0 0.0
    %775 = vmatpush1.msra.mxu0 %v240
    %776 = vmatprep.subr.mxu0 0.0
    %777 = vmatpush1.msra.mxu0 %v241
    %778 = vmatprep.subr.mxu0 0.0
    %779 = vmatpush1.msra.mxu0 %v242
    %780 = vmatprep.subr.mxu0 0.0
    %781 = vmatpush1.msra.mxu0 %v243
    %782 = vmatprep.subr.mxu0 0.0
    %783 = vmatpush1.msra.mxu0 %v244
    %784 = vmatprep.subr.mxu0 0.0
    %785 = vmatpush1.msra.mxu0 %v245
    %786 = vmatprep.subr.mxu0 0.0
    %787 = vmatpush1.msra.mxu0 %v246
    %788 = vmatprep.subr.mxu0 0.0
    %789 = vmatpush1.msra.mxu0 %v247
    %790 = vmatprep.subr.mxu0 0.0
    %791 = vmatpush1.msra.mxu0 %v248
    %792 = vmatprep.subr.mxu0 0.0
    %793 = vmatpush1.msra.mxu0 %v249
    %794 = vmatprep.subr.mxu0 0.0
    %795 = vmatpush1.msra.mxu0 %v250
    %796 = vmatprep.subr.mxu0 0.0
    %797 = vmatpush1.msra.mxu0 0.0
    %798 = vmatprep.subr.mxu0 0.0
    %799 = vmatpush1.msra.mxu0 0.0
    %800 = vmatprep.subr.mxu0 0.0
    %801 = vmatpush1.msra.mxu0 0.0
    %802 = vmatprep.subr.mxu0 0.0
    %803 = vmatpush1.msra.mxu0 0.0
    %804 = vmatprep.subr.mxu0 0.0
    %805 = vmatpush1.msra.mxu0 0.0
    %806 = vmatprep.subr.mxu0 0.0
    %807 = vmatpush1.msra.mxu0 0.0
    %808 = vmatprep.subr.mxu0 0.0
    %809 = vmatpush1.msra.mxu0 0.0
    %810 = vmatprep.subr.mxu0 0.0
    %811 = vmatpush1.msra.mxu0 0.0
    %812 = vmatprep.subr.mxu0 0.0
    %813 = vmatpush1.msra.mxu0 0.0
    %814 = vmatprep.subr.mxu0 0.0
    %815 = vmatpush1.msra.mxu0 0.0
    %816 = vmatprep.subr.mxu0 0.0
    %817 = vmatpush1.msra.mxu0 0.0
    %818 = vmatprep.subr.mxu0 0.0
    %819 = vmatpush1.msra.mxu0 0.0
    %820 = vmatprep.subr.mxu0 0.0
    %821 = vmatpush1.msra.mxu0 0.0
    %822 = vmatprep.subr.mxu0 0.0
    %823 = vmatpush1.msra.mxu0 0.0
    %824 = vmatprep.subr.mxu0 0.0
    %825 = vmatpush1.msra.mxu0 0.0
    %826 = vmatprep.subr.mxu0 0.0
    %827 = vmatpush1.msra.mxu0 0.0
    %828 = vmatprep.mubr.f32.mxu0 0.0
    %829 = vmatmul.mubr.f32.gmra.mrb[0].mxu0 %v553
    %v830 = vpop.f32.mrb[0].mxu0
    %v831 = vadd.f32 %v761, %v830
    %v832 = vpop.f32.mrb[0].mxu0
    %833 = vdwg.mxu0
    %v834 = vmax.f32 %v831, 0.0
    %835 = vst [vmem:[#allocation2 + $0x8] sm:$0xff] %v834
    %v836 = vld [vmem:[%s0 + $0x10] sm:$0xff]
    %v837 = vld [vmem:[%s0 + $0x18] sm:$0xff]
    %v838 = vld [vmem:[%s0 + $0x20] sm:$0xff]
    %v839 = vld [vmem:[%s0 + $0x28] sm:$0xff]
    %v840 = vld [vmem:[%s0 + $0x30] sm:$0xff]
    %v841 = vld [vmem:[%s0 + $0x38] sm:$0xff]
    %v842 = vld [vmem:[%s0 + $0x40] sm:$0xff]
    %843 = vmatprep.subr.mxu0 0.0
    %844 = vmatpush1.msra.mxu0 %v139
    %845 = vmatprep.subr.mxu0 0.0
    %846 = vmatpush1.msra.mxu0 %v140
    %847 = vmatprep.subr.mxu0 0.0
    %848 = vmatpush1.msra.mxu0 %v141
    %849 = vmatprep.subr.mxu0 0.0
    %850 = vmatpush1.msra.mxu0 %v142
    %851 = vmatprep.subr.mxu0 0.0
    %852 = vmatpush1.msra.mxu0 %v143
    %853 = vmatprep.subr.mxu0 0.0
    %854 = vmatpush1.msra.mxu0 %v144
    %855 = vmatprep.subr.mxu0 0.0
    %856 = vmatpush1.msra.mxu0 %v145
    %857 = vmatprep.subr.mxu0 0.0
    %858 = vmatpush1.msra.mxu0 %v146
    %859 = vmatprep.subr.mxu0 0.0
    %860 = vmatpush1.msra.mxu0 %v147
    %861 = vmatprep.subr.mxu0 0.0
    %862 = vmatpush1.msra.mxu0 %v148
    %863 = vmatprep.subr.mxu0 0.0
    %864 = vmatpush1.msra.mxu0 %v149
    %865 = vmatprep.subr.mxu0 0.0
    %866 = vmatpush1.msra.mxu0 %v150
    %867 = vmatprep.subr.mxu0 0.0
    %868 = vmatpush1.msra.mxu0 %v151
    %869 = vmatprep.subr.mxu0 0.0
    %870 = vmatpush1.msra.mxu0 %v152
    %871 = vmatprep.subr.mxu0 0.0
    %872 = vmatpush1.msra.mxu0 %v153
    %873 = vmatprep.subr.mxu0 0.0
    %874 = vmatpush1.msra.mxu0 %v154
    %875 = vmatprep.subr.mxu0 0.0
    %876 = vmatpush1.msra.mxu0 %v155
    %877 = vmatprep.subr.mxu0 0.0
    %878 = vmatpush1.msra.mxu0 %v156
    %879 = vmatprep.subr.mxu0 0.0
    %880 = vmatpush1.msra.mxu0 %v157
    %881 = vmatprep.subr.mxu0 0.0
    %882 = vmatpush1.msra.mxu0 %v158
    %883 = vmatprep.subr.mxu0 0.0
    %884 = vmatpush1.msra.mxu0 %v159
    %885 = vmatprep.subr.mxu0 0.0
    %886 = vmatpush1.msra.mxu0 %v160
    %887 = vmatprep.subr.mxu0 0.0
    %888 = vmatpush1.msra.mxu0 %v161
    %889 = vmatprep.subr.mxu0 0.0
    %890 = vmatpush1.msra.mxu0 %v162
    %891 = vmatprep.subr.mxu0 0.0
    %892 = vmatpush1.msra.mxu0 %v163
    %893 = vmatprep.subr.mxu0 0.0
    %894 = vmatpush1.msra.mxu0 %v164
    %895 = vmatprep.subr.mxu0 0.0
    %896 = vmatpush1.msra.mxu0 %v165
    %897 = vmatprep.subr.mxu0 0.0
    %898 = vmatpush1.msra.mxu0 %v166
    %899 = vmatprep.subr.mxu0 0.0
    %900 = vmatpush1.msra.mxu0 %v167
    %901 = vmatprep.subr.mxu0 0.0
    %902 = vmatpush1.msra.mxu0 %v168
    %903 = vmatprep.subr.mxu0 0.0
    %904 = vmatpush1.msra.mxu0 %v169
    %905 = vmatprep.subr.mxu0 0.0
    %906 = vmatpush1.msra.mxu0 %v170
    %907 = vmatprep.mubr.f32.mxu0 %v837
    %908 = vmatmul.mubr.f32.gmra.mrb[0].mxu0 %v836
    %v909 = vpop.f32.mrb[0].mxu0
    %v910 = vadd.f32 %v263, %v909
    %v911 = vpop.f32.mrb[0].mxu0
    %912 = vdwg.mxu0
    %913 = vmatprep.subr.mxu0 0.0
    %914 = vmatpush1.msra.mxu0 %v171
    %915 = vmatprep.subr.mxu0 0.0
    %916 = vmatpush1.msra.mxu0 %v172
    %917 = vmatprep.subr.mxu0 0.0
    %918 = vmatpush1.msra.mxu0 %v173
    %919 = vmatprep.subr.mxu0 0.0
    %920 = vmatpush1.msra.mxu0 %v174
    %921 = vmatprep.subr.mxu0 0.0
    %922 = vmatpush1.msra.mxu0 %v175
    %923 = vmatprep.subr.mxu0 0.0
    %924 = vmatpush1.msra.mxu0 %v176
    %925 = vmatprep.subr.mxu0 0.0
    %926 = vmatpush1.msra.mxu0 %v177
    %927 = vmatprep.subr.mxu0 0.0
    %928 = vmatpush1.msra.mxu0 %v178
    %929 = vmatprep.subr.mxu0 0.0
    %930 = vmatpush1.msra.mxu0 %v179
    %931 = vmatprep.subr.mxu0 0.0
    %932 = vmatpush1.msra.mxu0 %v180
    %933 = vmatprep.subr.mxu0 0.0
    %934 = vmatpush1.msra.mxu0 %v181
    %935 = vmatprep.subr.mxu0 0.0
    %936 = vmatpush1.msra.mxu0 %v182
    %937 = vmatprep.subr.mxu0 0.0
    %938 = vmatpush1.msra.mxu0 %v183
    %939 = vmatprep.subr.mxu0 0.0
    %940 = vmatpush1.msra.mxu0 %v184
    %941 = vmatprep.subr.mxu0 0.0
    %942 = vmatpush1.msra.mxu0 %v185
    %943 = vmatprep.subr.mxu0 0.0
    %944 = vmatpush1.msra.mxu0 %v186
    %945 = vmatprep.subr.mxu0 0.0
    %946 = vmatpush1.msra.mxu0 %v187
    %947 = vmatprep.subr.mxu0 0.0
    %948 = vmatpush1.msra.mxu0 %v188
    %949 = vmatprep.subr.mxu0 0.0
    %950 = vmatpush1.msra.mxu0 %v189
    %951 = vmatprep.subr.mxu0 0.0
    %952 = vmatpush1.msra.mxu0 %v190
    %953 = vmatprep.subr.mxu0 0.0
    %954 = vmatpush1.msra.mxu0 %v191
    %955 = vmatprep.subr.mxu0 0.0
    %956 = vmatpush1.msra.mxu0 %v192
    %957 = vmatprep.subr.mxu0 0.0
    %958 = vmatpush1.msra.mxu0 %v193
    %959 = vmatprep.subr.mxu0 0.0
    %960 = vmatpush1.msra.mxu0 %v194
    %961 = vmatprep.subr.mxu0 0.0
    %962 = vmatpush1.msra.mxu0 %v195
    %963 = vmatprep.subr.mxu0 0.0
    %964 = vmatpush1.msra.mxu0 %v196
    %965 = vmatprep.subr.mxu0 0.0
    %966 = vmatpush1.msra.mxu0 %v197
    %967 = vmatprep.subr.mxu0 0.0
    %968 = vmatpush1.msra.mxu0 %v198
    %969 = vmatprep.subr.mxu0 0.0
    %970 = vmatpush1.msra.mxu0 %v199
    %971 = vmatprep.subr.mxu0 0.0
    %972 = vmatpush1.msra.mxu0 %v200
    %973 = vmatprep.subr.mxu0 0.0
    %974 = vmatpush1.msra.mxu0 %v201
    %975 = vmatprep.subr.mxu0 0.0
    %976 = vmatpush1.msra.mxu0 %v202
    %977 = vmatprep.mubr.f32.mxu0 %v839
    %978 = vmatmul.mubr.f32.gmra.mrb[0].mxu0 %v838
    %v979 = vpop.f32.mrb[0].mxu0
    %v980 = vadd.f32 %v910, %v979
    %v981 = vpop.f32.mrb[0].mxu0
    %982 = vdwg.mxu0
    %983 = vmatprep.subr.mxu0 0.0
    %984 = vmatpush1.msra.mxu0 %v203
    %985 = vmatprep.subr.mxu0 0.0
    %986 = vmatpush1.msra.mxu0 %v204
    %987 = vmatprep.subr.mxu0 0.0
    %988 = vmatpush1.msra.mxu0 %v205
    %989 = vmatprep.subr.mxu0 0.0
    %990 = vmatpush1.msra.mxu0 %v206
    %991 = vmatprep.subr.mxu0 0.0
    %992 = vmatpush1.msra.mxu0 %v207
    %993 = vmatprep.subr.mxu0 0.0
    %994 = vmatpush1.msra.mxu0 %v208
    %995 = vmatprep.subr.mxu0 0.0
    %996 = vmatpush1.msra.mxu0 %v209
    %997 = vmatprep.subr.mxu0 0.0
    %998 = vmatpush1.msra.mxu0 %v210
    %999 = vmatprep.subr.mxu0 0.0
    %1000 = vmatpush1.msra.mxu0 %v211
    %1001 = vmatprep.subr.mxu0 0.0
    %1002 = vmatpush1.msra.mxu0 %v212
    %1003 = vmatprep.subr.mxu0 0.0
    %1004 = vmatpush1.msra.mxu0 %v213
    %1005 = vmatprep.subr.mxu0 0.0
    %1006 = vmatpush1.msra.mxu0 %v214
    %1007 = vmatprep.subr.mxu0 0.0
    %1008 = vmatpush1.msra.mxu0 %v215
    %1009 = vmatprep.subr.mxu0 0.0
    %1010 = vmatpush1.msra.mxu0 %v216
    %1011 = vmatprep.subr.mxu0 0.0
    %1012 = vmatpush1.msra.mxu0 %v217
    %1013 = vmatprep.subr.mxu0 0.0
    %1014 = vmatpush1.msra.mxu0 %v218
    %1015 = vmatprep.subr.mxu0 0.0
    %1016 = vmatpush1.msra.mxu0 %v219
    %1017 = vmatprep.subr.mxu0 0.0
    %1018 = vmatpush1.msra.mxu0 %v220
    %1019 = vmatprep.subr.mxu0 0.0
    %1020 = vmatpush1.msra.mxu0 %v221
    %1021 = vmatprep.subr.mxu0 0.0
    %1022 = vmatpush1.msra.mxu0 %v222
    %1023 = vmatprep.subr.mxu0 0.0
    %1024 = vmatpush1.msra.mxu0 %v223
    %1025 = vmatprep.subr.mxu0 0.0
    %1026 = vmatpush1.msra.mxu0 %v224
    %1027 = vmatprep.subr.mxu0 0.0
    %1028 = vmatpush1.msra.mxu0 %v225
    %1029 = vmatprep.subr.mxu0 0.0
    %1030 = vmatpush1.msra.mxu0 %v226
    %1031 = vmatprep.subr.mxu0 0.0
    %1032 = vmatpush1.msra.mxu0 %v227
    %1033 = vmatprep.subr.mxu0 0.0
    %1034 = vmatpush1.msra.mxu0 %v228
    %1035 = vmatprep.subr.mxu0 0.0
    %1036 = vmatpush1.msra.mxu0 %v229
    %1037 = vmatprep.subr.mxu0 0.0
    %1038 = vmatpush1.msra.mxu0 %v230
    %1039 = vmatprep.subr.mxu0 0.0
    %1040 = vmatpush1.msra.mxu0 %v231
    %1041 = vmatprep.subr.mxu0 0.0
    %1042 = vmatpush1.msra.mxu0 %v232
    %1043 = vmatprep.subr.mxu0 0.0
    %1044 = vmatpush1.msra.mxu0 %v233
    %1045 = vmatprep.subr.mxu0 0.0
    %1046 = vmatpush1.msra.mxu0 %v234
    %1047 = vmatprep.mubr.f32.mxu0 %v841
    %1048 = vmatmul.mubr.f32.gmra.mrb[0].mxu0 %v840
    %v1049 = vpop.f32.mrb[0].mxu0
    %v1050 = vadd.f32 %v980, %v1049
    %v1051 = vpop.f32.mrb[0].mxu0
    %1052 = vdwg.mxu0
    %1053 = vmatprep.subr.mxu0 0.0
    %1054 = vmatpush1.msra.mxu0 %v235
    %1055 = vmatprep.subr.mxu0 0.0
    %1056 = vmatpush1.msra.mxu0 %v236
    %1057 = vmatprep.subr.mxu0 0.0
    %1058 = vmatpush1.msra.mxu0 %v237
    %1059 = vmatprep.subr.mxu0 0.0
    %1060 = vmatpush1.msra.mxu0 %v238
    %1061 = vmatprep.subr.mxu0 0.0
    %1062 = vmatpush1.msra.mxu0 %v239
    %1063 = vmatprep.subr.mxu0 0.0
    %1064 = vmatpush1.msra.mxu0 %v240
    %1065 = vmatprep.subr.mxu0 0.0
    %1066 = vmatpush1.msra.mxu0 %v241
    %1067 = vmatprep.subr.mxu0 0.0
    %1068 = vmatpush1.msra.mxu0 %v242
    %1069 = vmatprep.subr.mxu0 0.0
    %1070 = vmatpush1.msra.mxu0 %v243
    %1071 = vmatprep.subr.mxu0 0.0
    %1072 = vmatpush1.msra.mxu0 %v244
    %1073 = vmatprep.subr.mxu0 0.0
    %1074 = vmatpush1.msra.mxu0 %v245
    %1075 = vmatprep.subr.mxu0 0.0
    %1076 = vmatpush1.msra.mxu0 %v246
    %1077 = vmatprep.subr.mxu0 0.0
    %1078 = vmatpush1.msra.mxu0 %v247
    %1079 = vmatprep.subr.mxu0 0.0
    %1080 = vmatpush1.msra.mxu0 %v248
    %1081 = vmatprep.subr.mxu0 0.0
    %1082 = vmatpush1.msra.mxu0 %v249
    %1083 = vmatprep.subr.mxu0 0.0
    %1084 = vmatpush1.msra.mxu0 %v250
    %1085 = vmatprep.subr.mxu0 0.0
    %1086 = vmatpush1.msra.mxu0 0.0
    %1087 = vmatprep.subr.mxu0 0.0
    %1088 = vmatpush1.msra.mxu0 0.0
    %1089 = vmatprep.subr.mxu0 0.0
    %1090 = vmatpush1.msra.mxu0 0.0
    %1091 = vmatprep.subr.mxu0 0.0
    %1092 = vmatpush1.msra.mxu0 0.0
    %1093 = vmatprep.subr.mxu0 0.0
    %1094 = vmatpush1.msra.mxu0 0.0
    %1095 = vmatprep.subr.mxu0 0.0
    %1096 = vmatpush1.msra.mxu0 0.0
    %1097 = vmatprep.subr.mxu0 0.0
    %1098 = vmatpush1.msra.mxu0 0.0
    %1099 = vmatprep.subr.mxu0 0.0
    %1100 = vmatpush1.msra.mxu0 0.0
    %1101 = vmatprep.subr.mxu0 0.0
    %1102 = vmatpush1.msra.mxu0 0.0
    %1103 = vmatprep.subr.mxu0 0.0
    %1104 = vmatpush1.msra.mxu0 0.0
    %1105 = vmatprep.subr.mxu0 0.0
    %1106 = vmatpush1.msra.mxu0 0.0
    %1107 = vmatprep.subr.mxu0 0.0
    %1108 = vmatpush1.msra.mxu0 0.0
    %1109 = vmatprep.subr.mxu0 0.0
    %1110 = vmatpush1.msra.mxu0 0.0
    %1111 = vmatprep.subr.mxu0 0.0
    %1112 = vmatpush1.msra.mxu0 0.0
    %1113 = vmatprep.subr.mxu0 0.0
    %1114 = vmatpush1.msra.mxu0 0.0
    %1115 = vmatprep.subr.mxu0 0.0
    %1116 = vmatpush1.msra.mxu0 0.0
    %1117 = vmatprep.mubr.f32.mxu0 0.0
    %1118 = vmatmul.mubr.f32.gmra.mrb[0].mxu0 %v842
    %v1119 = vpop.f32.mrb[0].mxu0
    %v1120 = vadd.f32 %v1050, %v1119
    %v1121 = vpop.f32.mrb[0].mxu0
    %1122 = vdwg.mxu0
    %v1123 = vmax.f32 %v1120, 0.0
    %1124 = vst [vmem:[#allocation2 + $0x10] sm:$0xff] %v1123
    %v1125 = vld [vmem:[%s0 + $0x18] sm:$0xff]
    %v1126 = vld [vmem:[%s0 + $0x20] sm:$0xff]
    %v1127 = vld [vmem:[%s0 + $0x28] sm:$0xff]
    %v1128 = vld [vmem:[%s0 + $0x30] sm:$0xff]
    %v1129 = vld [vmem:[%s0 + $0x38] sm:$0xff]
    %v1130 = vld [vmem:[%s0 + $0x40] sm:$0xff]
    %v1131 = vld [vmem:[%s0 + $0x48] sm:$0xff]
    %1132 = vmatprep.subr.mxu0 0.0
    %1133 = vmatpush1.msra.mxu0 %v139
    %1134 = vmatprep.subr.mxu0 0.0
    %1135 = vmatpush1.msra.mxu0 %v140
    %1136 = vmatprep.subr.mxu0 0.0
    %1137 = vmatpush1.msra.mxu0 %v141
    %1138 = vmatprep.subr.mxu0 0.0
    %1139 = vmatpush1.msra.mxu0 %v142
    %1140 = vmatprep.subr.mxu0 0.0
    %1141 = vmatpush1.msra.mxu0 %v143
    %1142 = vmatprep.subr.mxu0 0.0
    %1143 = vmatpush1.msra.mxu0 %v144
    %1144 = vmatprep.subr.mxu0 0.0
    %1145 = vmatpush1.msra.mxu0 %v145
    %1146 = vmatprep.subr.mxu0 0.0
    %1147 = vmatpush1.msra.mxu0 %v146
    %1148 = vmatprep.subr.mxu0 0.0
    %1149 = vmatpush1.msra.mxu0 %v147
    %1150 = vmatprep.subr.mxu0 0.0
    %1151 = vmatpush1.msra.mxu0 %v148
    %1152 = vmatprep.subr.mxu0 0.0
    %1153 = vmatpush1.msra.mxu0 %v149
    %1154 = vmatprep.subr.mxu0 0.0
    %1155 = vmatpush1.msra.mxu0 %v150
    %1156 = vmatprep.subr.mxu0 0.0
    %1157 = vmatpush1.msra.mxu0 %v151
    %1158 = vmatprep.subr.mxu0 0.0
    %1159 = vmatpush1.msra.mxu0 %v152
    %1160 = vmatprep.subr.mxu0 0.0
    %1161 = vmatpush1.msra.mxu0 %v153
    %1162 = vmatprep.subr.mxu0 0.0
    %1163 = vmatpush1.msra.mxu0 %v154
    %1164 = vmatprep.subr.mxu0 0.0
    %1165 = vmatpush1.msra.mxu0 %v155
    %1166 = vmatprep.subr.mxu0 0.0
    %1167 = vmatpush1.msra.mxu0 %v156
    %1168 = vmatprep.subr.mxu0 0.0
    %1169 = vmatpush1.msra.mxu0 %v157
    %1170 = vmatprep.subr.mxu0 0.0
    %1171 = vmatpush1.msra.mxu0 %v158
    %1172 = vmatprep.subr.mxu0 0.0
    %1173 = vmatpush1.msra.mxu0 %v159
    %1174 = vmatprep.subr.mxu0 0.0
    %1175 = vmatpush1.msra.mxu0 %v160
    %1176 = vmatprep.subr.mxu0 0.0
    %1177 = vmatpush1.msra.mxu0 %v161
    %1178 = vmatprep.subr.mxu0 0.0
    %1179 = vmatpush1.msra.mxu0 %v162
    %1180 = vmatprep.subr.mxu0 0.0
    %1181 = vmatpush1.msra.mxu0 %v163
    %1182 = vmatprep.subr.mxu0 0.0
    %1183 = vmatpush1.msra.mxu0 %v164
    %1184 = vmatprep.subr.mxu0 0.0
    %1185 = vmatpush1.msra.mxu0 %v165
    %1186 = vmatprep.subr.mxu0 0.0
    %1187 = vmatpush1.msra.mxu0 %v166
    %1188 = vmatprep.subr.mxu0 0.0
    %1189 = vmatpush1.msra.mxu0 %v167
    %1190 = vmatprep.subr.mxu0 0.0
    %1191 = vmatpush1.msra.mxu0 %v168
    %1192 = vmatprep.subr.mxu0 0.0
    %1193 = vmatpush1.msra.mxu0 %v169
    %1194 = vmatprep.subr.mxu0 0.0
    %1195 = vmatpush1.msra.mxu0 %v170
    %1196 = vmatprep.mubr.f32.mxu0 %v1126
    %1197 = vmatmul.mubr.f32.gmra.mrb[0].mxu0 %v1125
    %v1198 = vpop.f32.mrb[0].mxu0
    %v1199 = vadd.f32 %v263, %v1198
    %v1200 = vpop.f32.mrb[0].mxu0
    %1201 = vdwg.mxu0
    %1202 = vmatprep.subr.mxu0 0.0
    %1203 = vmatpush1.msra.mxu0 %v171
    %1204 = vmatprep.subr.mxu0 0.0
    %1205 = vmatpush1.msra.mxu0 %v172
    %1206 = vmatprep.subr.mxu0 0.0
    %1207 = vmatpush1.msra.mxu0 %v173
    %1208 = vmatprep.subr.mxu0 0.0
    %1209 = vmatpush1.msra.mxu0 %v174
    %1210 = vmatprep.subr.mxu0 0.0
    %1211 = vmatpush1.msra.mxu0 %v175
    %1212 = vmatprep.subr.mxu0 0.0
    %1213 = vmatpush1.msra.mxu0 %v176
    %1214 = vmatprep.subr.mxu0 0.0
    %1215 = vmatpush1.msra.mxu0 %v177
    %1216 = vmatprep.subr.mxu0 0.0
    %1217 = vmatpush1.msra.mxu0 %v178
    %1218 = vmatprep.subr.mxu0 0.0
    %1219 = vmatpush1.msra.mxu0 %v179
    %1220 = vmatprep.subr.mxu0 0.0
    %1221 = vmatpush1.msra.mxu0 %v180
    %1222 = vmatprep.subr.mxu0 0.0
    %1223 = vmatpush1.msra.mxu0 %v181
    %1224 = vmatprep.subr.mxu0 0.0
    %1225 = vmatpush1.msra.mxu0 %v182
    %1226 = vmatprep.subr.mxu0 0.0
    %1227 = vmatpush1.msra.mxu0 %v183
    %1228 = vmatprep.subr.mxu0 0.0
    %1229 = vmatpush1.msra.mxu0 %v184
    %1230 = vmatprep.subr.mxu0 0.0
    %1231 = vmatpush1.msra.mxu0 %v185
    %1232 = vmatprep.subr.mxu0 0.0
    %1233 = vmatpush1.msra.mxu0 %v186
    %1234 = vmatprep.subr.mxu0 0.0
    %1235 = vmatpush1.msra.mxu0 %v187
    %1236 = vmatprep.subr.mxu0 0.0
    %1237 = vmatpush1.msra.mxu0 %v188
    %1238 = vmatprep.subr.mxu0 0.0
    %1239 = vmatpush1.msra.mxu0 %v189
    %1240 = vmatprep.subr.mxu0 0.0
    %1241 = vmatpush1.msra.mxu0 %v190
    %1242 = vmatprep.subr.mxu0 0.0
    %1243 = vmatpush1.msra.mxu0 %v191
    %1244 = vmatprep.subr.mxu0 0.0
    %1245 = vmatpush1.msra.mxu0 %v192
    %1246 = vmatprep.subr.mxu0 0.0
    %1247 = vmatpush1.msra.mxu0 %v193
    %1248 = vmatprep.subr.mxu0 0.0
    %1249 = vmatpush1.msra.mxu0 %v194
    %1250 = vmatprep.subr.mxu0 0.0
    %1251 = vmatpush1.msra.mxu0 %v195
    %1252 = vmatprep.subr.mxu0 0.0
    %1253 = vmatpush1.msra.mxu0 %v196
    %1254 = vmatprep.subr.mxu0 0.0
    %1255 = vmatpush1.msra.mxu0 %v197
    %1256 = vmatprep.subr.mxu0 0.0
    %1257 = vmatpush1.msra.mxu0 %v198
    %1258 = vmatprep.subr.mxu0 0.0
    %1259 = vmatpush1.msra.mxu0 %v199
    %1260 = vmatprep.subr.mxu0 0.0
    %1261 = vmatpush1.msra.mxu0 %v200
    %1262 = vmatprep.subr.mxu0 0.0
    %1263 = vmatpush1.msra.mxu0 %v201
    %1264 = vmatprep.subr.mxu0 0.0
    %1265 = vmatpush1.msra.mxu0 %v202
    %1266 = vmatprep.mubr.f32.mxu0 %v1128
    %1267 = vmatmul.mubr.f32.gmra.mrb[0].mxu0 %v1127
    %v1268 = vpop.f32.mrb[0].mxu0
    %v1269 = vadd.f32 %v1199, %v1268
    %v1270 = vpop.f32.mrb[0].mxu0
    %1271 = vdwg.mxu0
    %1272 = vmatprep.subr.mxu0 0.0
    %1273 = vmatpush1.msra.mxu0 %v203
    %1274 = vmatprep.subr.mxu0 0.0
    %1275 = vmatpush1.msra.mxu0 %v204
    %1276 = vmatprep.subr.mxu0 0.0
    %1277 = vmatpush1.msra.mxu0 %v205
    %1278 = vmatprep.subr.mxu0 0.0
    %1279 = vmatpush1.msra.mxu0 %v206
    %1280 = vmatprep.subr.mxu0 0.0
    %1281 = vmatpush1.msra.mxu0 %v207
    %1282 = vmatprep.subr.mxu0 0.0
    %1283 = vmatpush1.msra.mxu0 %v208
    %1284 = vmatprep.subr.mxu0 0.0
    %1285 = vmatpush1.msra.mxu0 %v209
    %1286 = vmatprep.subr.mxu0 0.0
    %1287 = vmatpush1.msra.mxu0 %v210
    %1288 = vmatprep.subr.mxu0 0.0
    %1289 = vmatpush1.msra.mxu0 %v211
    %1290 = vmatprep.subr.mxu0 0.0
    %1291 = vmatpush1.msra.mxu0 %v212
    %1292 = vmatprep.subr.mxu0 0.0
    %1293 = vmatpush1.msra.mxu0 %v213
    %1294 = vmatprep.subr.mxu0 0.0
    %1295 = vmatpush1.msra.mxu0 %v214
    %1296 = vmatprep.subr.mxu0 0.0
    %1297 = vmatpush1.msra.mxu0 %v215
    %1298 = vmatprep.subr.mxu0 0.0
    %1299 = vmatpush1.msra.mxu0 %v216
    %1300 = vmatprep.subr.mxu0 0.0
    %1301 = vmatpush1.msra.mxu0 %v217
    %1302 = vmatprep.subr.mxu0 0.0
    %1303 = vmatpush1.msra.mxu0 %v218
    %1304 = vmatprep.subr.mxu0 0.0
    %1305 = vmatpush1.msra.mxu0 %v219
    %1306 = vmatprep.subr.mxu0 0.0
    %1307 = vmatpush1.msra.mxu0 %v220
    %1308 = vmatprep.subr.mxu0 0.0
    %1309 = vmatpush1.msra.mxu0 %v221
    %1310 = vmatprep.subr.mxu0 0.0
    %1311 = vmatpush1.msra.mxu0 %v222
    %1312 = vmatprep.subr.mxu0 0.0
    %1313 = vmatpush1.msra.mxu0 %v223
    %1314 = vmatprep.subr.mxu0 0.0
    %1315 = vmatpush1.msra.mxu0 %v224
    %1316 = vmatprep.subr.mxu0 0.0
    %1317 = vmatpush1.msra.mxu0 %v225
    %1318 = vmatprep.subr.mxu0 0.0
    %1319 = vmatpush1.msra.mxu0 %v226
    %1320 = vmatprep.subr.mxu0 0.0
    %1321 = vmatpush1.msra.mxu0 %v227
    %1322 = vmatprep.subr.mxu0 0.0
    %1323 = vmatpush1.msra.mxu0 %v228
    %1324 = vmatprep.subr.mxu0 0.0
    %1325 = vmatpush1.msra.mxu0 %v229
    %1326 = vmatprep.subr.mxu0 0.0
    %1327 = vmatpush1.msra.mxu0 %v230
    %1328 = vmatprep.subr.mxu0 0.0
    %1329 = vmatpush1.msra.mxu0 %v231
    %1330 = vmatprep.subr.mxu0 0.0
    %1331 = vmatpush1.msra.mxu0 %v232
    %1332 = vmatprep.subr.mxu0 0.0
    %1333 = vmatpush1.msra.mxu0 %v233
    %1334 = vmatprep.subr.mxu0 0.0
    %1335 = vmatpush1.msra.mxu0 %v234
    %1336 = vmatprep.mubr.f32.mxu0 %v1130
    %1337 = vmatmul.mubr.f32.gmra.mrb[0].mxu0 %v1129
    %v1338 = vpop.f32.mrb[0].mxu0
    %v1339 = vadd.f32 %v1269, %v1338
    %v1340 = vpop.f32.mrb[0].mxu0
    %1341 = vdwg.mxu0
    %1342 = vmatprep.subr.mxu0 0.0
    %1343 = vmatpush1.msra.mxu0 %v235
    %1344 = vmatprep.subr.mxu0 0.0
    %1345 = vmatpush1.msra.mxu0 %v236
    %1346 = vmatprep.subr.mxu0 0.0
    %1347 = vmatpush1.msra.mxu0 %v237
    %1348 = vmatprep.subr.mxu0 0.0
    %1349 = vmatpush1.msra.mxu0 %v238
    %1350 = vmatprep.subr.mxu0 0.0
    %1351 = vmatpush1.msra.mxu0 %v239
    %1352 = vmatprep.subr.mxu0 0.0
    %1353 = vmatpush1.msra.mxu0 %v240
    %1354 = vmatprep.subr.mxu0 0.0
    %1355 = vmatpush1.msra.mxu0 %v241
    %1356 = vmatprep.subr.mxu0 0.0
    %1357 = vmatpush1.msra.mxu0 %v242
    %1358 = vmatprep.subr.mxu0 0.0
    %1359 = vmatpush1.msra.mxu0 %v243
    %1360 = vmatprep.subr.mxu0 0.0
    %1361 = vmatpush1.msra.mxu0 %v244
    %1362 = vmatprep.subr.mxu0 0.0
    %1363 = vmatpush1.msra.mxu0 %v245
    %1364 = vmatprep.subr.mxu0 0.0
    %1365 = vmatpush1.msra.mxu0 %v246
    %1366 = vmatprep.subr.mxu0 0.0
    %1367 = vmatpush1.msra.mxu0 %v247
    %1368 = vmatprep.subr.mxu0 0.0
    %1369 = vmatpush1.msra.mxu0 %v248
    %1370 = vmatprep.subr.mxu0 0.0
    %1371 = vmatpush1.msra.mxu0 %v249
    %1372 = vmatprep.subr.mxu0 0.0
    %1373 = vmatpush1.msra.mxu0 %v250
    %1374 = vmatprep.subr.mxu0 0.0
    %1375 = vmatpush1.msra.mxu0 0.0
    %1376 = vmatprep.subr.mxu0 0.0
    %1377 = vmatpush1.msra.mxu0 0.0
    %1378 = vmatprep.subr.mxu0 0.0
    %1379 = vmatpush1.msra.mxu0 0.0
    %1380 = vmatprep.subr.mxu0 0.0
    %1381 = vmatpush1.msra.mxu0 0.0
    %1382 = vmatprep.subr.mxu0 0.0
    %1383 = vmatpush1.msra.mxu0 0.0
    %1384 = vmatprep.subr.mxu0 0.0
    %1385 = vmatpush1.msra.mxu0 0.0
    %1386 = vmatprep.subr.mxu0 0.0
    %1387 = vmatpush1.msra.mxu0 0.0
    %1388 = vmatprep.subr.mxu0 0.0
    %1389 = vmatpush1.msra.mxu0 0.0
    %1390 = vmatprep.subr.mxu0 0.0
    %1391 = vmatpush1.msra.mxu0 0.0
    %1392 = vmatprep.subr.mxu0 0.0
    %1393 = vmatpush1.msra.mxu0 0.0
    %1394 = vmatprep.subr.mxu0 0.0
    %1395 = vmatpush1.msra.mxu0 0.0
    %1396 = vmatprep.subr.mxu0 0.0
    %1397 = vmatpush1.msra.mxu0 0.0
    %1398 = vmatprep.subr.mxu0 0.0
    %1399 = vmatpush1.msra.mxu0 0.0
    %1400 = vmatprep.subr.mxu0 0.0
    %1401 = vmatpush1.msra.mxu0 0.0
    %1402 = vmatprep.subr.mxu0 0.0
    %1403 = vmatpush1.msra.mxu0 0.0
    %1404 = vmatprep.subr.mxu0 0.0
    %1405 = vmatpush1.msra.mxu0 0.0
    %1406 = vmatprep.mubr.f32.mxu0 0.0
    %1407 = vmatmul.mubr.f32.gmra.mrb[0].mxu0 %v1131
    %v1408 = vpop.f32.mrb[0].mxu0
    %v1409 = vadd.f32 %v1339, %v1408
    %v1410 = vpop.f32.mrb[0].mxu0
    %1411 = vdwg.mxu0
    %v1412 = vmax.f32 %v1409, 0.0
    %1413 = vst [vmem:[#allocation2 + $0x18] sm:$0xff] %v1412
    %v1414 = vld [vmem:[%s0 + $0x20] sm:$0xff]
    %v1415 = vld [vmem:[%s0 + $0x28] sm:$0xff]
    %v1416 = vld [vmem:[%s0 + $0x30] sm:$0xff]
    %v1417 = vld [vmem:[%s0 + $0x38] sm:$0xff]
    %v1418 = vld [vmem:[%s0 + $0x40] sm:$0xff]
    %v1419 = vld [vmem:[%s0 + $0x48] sm:$0xff]
    %v1420 = vld [vmem:[%s0 + $0x50] sm:$0xff]
    %1421 = vmatprep.subr.mxu0 0.0
    %1422 = vmatpush1.msra.mxu0 %v139
    %1423 = vmatprep.subr.mxu0 0.0
    %1424 = vmatpush1.msra.mxu0 %v140
    %1425 = vmatprep.subr.mxu0 0.0
    %1426 = vmatpush1.msra.mxu0 %v141
    %1427 = vmatprep.subr.mxu0 0.0
    %1428 = vmatpush1.msra.mxu0 %v142
    %1429 = vmatprep.subr.mxu0 0.0
    %1430 = vmatpush1.msra.mxu0 %v143
    %1431 = vmatprep.subr.mxu0 0.0
    %1432 = vmatpush1.msra.mxu0 %v144
    %1433 = vmatprep.subr.mxu0 0.0
    %1434 = vmatpush1.msra.mxu0 %v145
    %1435 = vmatprep.subr.mxu0 0.0
    %1436 = vmatpush1.msra.mxu0 %v146
    %1437 = vmatprep.subr.mxu0 0.0
    %1438 = vmatpush1.msra.mxu0 %v147
    %1439 = vmatprep.subr.mxu0 0.0
    %1440 = vmatpush1.msra.mxu0 %v148
    %1441 = vmatprep.subr.mxu0 0.0
    %1442 = vmatpush1.msra.mxu0 %v149
    %1443 = vmatprep.subr.mxu0 0.0
    %1444 = vmatpush1.msra.mxu0 %v150
    %1445 = vmatprep.subr.mxu0 0.0
    %1446 = vmatpush1.msra.mxu0 %v151
    %1447 = vmatprep.subr.mxu0 0.0
    %1448 = vmatpush1.msra.mxu0 %v152
    %1449 = vmatprep.subr.mxu0 0.0
    %1450 = vmatpush1.msra.mxu0 %v153
    %1451 = vmatprep.subr.mxu0 0.0
    %1452 = vmatpush1.msra.mxu0 %v154
    %1453 = vmatprep.subr.mxu0 0.0
    %1454 = vmatpush1.msra.mxu0 %v155
    %1455 = vmatprep.subr.mxu0 0.0
    %1456 = vmatpush1.msra.mxu0 %v156
    %1457 = vmatprep.subr.mxu0 0.0
    %1458 = vmatpush1.msra.mxu0 %v157
    %1459 = vmatprep.subr.mxu0 0.0
    %1460 = vmatpush1.msra.mxu0 %v158
    %1461 = vmatprep.subr.mxu0 0.0
    %1462 = vmatpush1.msra.mxu0 %v159
    %1463 = vmatprep.subr.mxu0 0.0
    %1464 = vmatpush1.msra.mxu0 %v160
    %1465 = vmatprep.subr.mxu0 0.0
    %1466 = vmatpush1.msra.mxu0 %v161
    %1467 = vmatprep.subr.mxu0 0.0
    %1468 = vmatpush1.msra.mxu0 %v162
    %1469 = vmatprep.subr.mxu0 0.0
    %1470 = vmatpush1.msra.mxu0 %v163
    %1471 = vmatprep.subr.mxu0 0.0
    %1472 = vmatpush1.msra.mxu0 %v164
    %1473 = vmatprep.subr.mxu0 0.0
    %1474 = vmatpush1.msra.mxu0 %v165
    %1475 = vmatprep.subr.mxu0 0.0
    %1476 = vmatpush1.msra.mxu0 %v166
    %1477 = vmatprep.subr.mxu0 0.0
    %1478 = vmatpush1.msra.mxu0 %v167
    %1479 = vmatprep.subr.mxu0 0.0
    %1480 = vmatpush1.msra.mxu0 %v168
    %1481 = vmatprep.subr.mxu0 0.0
    %1482 = vmatpush1.msra.mxu0 %v169
    %1483 = vmatprep.subr.mxu0 0.0
    %1484 = vmatpush1.msra.mxu0 %v170
    %1485 = vmatprep.mubr.f32.mxu0 %v1415
    %1486 = vmatmul.mubr.f32.gmra.mrb[0].mxu0 %v1414
    %v1487 = vpop.f32.mrb[0].mxu0
    %v1488 = vadd.f32 %v263, %v1487
    %v1489 = vpop.f32.mrb[0].mxu0
    %1490 = vdwg.mxu0
    %1491 = vmatprep.subr.mxu0 0.0
    %1492 = vmatpush1.msra.mxu0 %v171
    %1493 = vmatprep.subr.mxu0 0.0
    %1494 = vmatpush1.msra.mxu0 %v172
    %1495 = vmatprep.subr.mxu0 0.0
    %1496 = vmatpush1.msra.mxu0 %v173
    %1497 = vmatprep.subr.mxu0 0.0
    %1498 = vmatpush1.msra.mxu0 %v174
    %1499 = vmatprep.subr.mxu0 0.0
    %1500 = vmatpush1.msra.mxu0 %v175
    %1501 = vmatprep.subr.mxu0 0.0
    %1502 = vmatpush1.msra.mxu0 %v176
    %1503 = vmatprep.subr.mxu0 0.0
    %1504 = vmatpush1.msra.mxu0 %v177
    %1505 = vmatprep.subr.mxu0 0.0
    %1506 = vmatpush1.msra.mxu0 %v178
    %1507 = vmatprep.subr.mxu0 0.0
    %1508 = vmatpush1.msra.mxu0 %v179
    %1509 = vmatprep.subr.mxu0 0.0
    %1510 = vmatpush1.msra.mxu0 %v180
    %1511 = vmatprep.subr.mxu0 0.0
    %1512 = vmatpush1.msra.mxu0 %v181
    %1513 = vmatprep.subr.mxu0 0.0
    %1514 = vmatpush1.msra.mxu0 %v182
    %1515 = vmatprep.subr.mxu0 0.0
    %1516 = vmatpush1.msra.mxu0 %v183
    %1517 = vmatprep.subr.mxu0 0.0
    %1518 = vmatpush1.msra.mxu0 %v184
    %1519 = vmatprep.subr.mxu0 0.0
    %1520 = vmatpush1.msra.mxu0 %v185
    %1521 = vmatprep.subr.mxu0 0.0
    %1522 = vmatpush1.msra.mxu0 %v186
    %1523 = vmatprep.subr.mxu0 0.0
    %1524 = vmatpush1.msra.mxu0 %v187
    %1525 = vmatprep.subr.mxu0 0.0
    %1526 = vmatpush1.msra.mxu0 %v188
    %1527 = vmatprep.subr.mxu0 0.0
    %1528 = vmatpush1.msra.mxu0 %v189
    %1529 = vmatprep.subr.mxu0 0.0
    %1530 = vmatpush1.msra.mxu0 %v190
    %1531 = vmatprep.subr.mxu0 0.0
    %1532 = vmatpush1.msra.mxu0 %v191
    %1533 = vmatprep.subr.mxu0 0.0
    %1534 = vmatpush1.msra.mxu0 %v192
    %1535 = vmatprep.subr.mxu0 0.0
    %1536 = vmatpush1.msra.mxu0 %v193
    %1537 = vmatprep.subr.mxu0 0.0
    %1538 = vmatpush1.msra.mxu0 %v194
    %1539 = vmatprep.subr.mxu0 0.0
    %1540 = vmatpush1.msra.mxu0 %v195
    %1541 = vmatprep.subr.mxu0 0.0
    %1542 = vmatpush1.msra.mxu0 %v196
    %1543 = vmatprep.subr.mxu0 0.0
    %1544 = vmatpush1.msra.mxu0 %v197
    %1545 = vmatprep.subr.mxu0 0.0
    %1546 = vmatpush1.msra.mxu0 %v198
    %1547 = vmatprep.subr.mxu0 0.0
    %1548 = vmatpush1.msra.mxu0 %v199
    %1549 = vmatprep.subr.mxu0 0.0
    %1550 = vmatpush1.msra.mxu0 %v200
    %1551 = vmatprep.subr.mxu0 0.0
    %1552 = vmatpush1.msra.mxu0 %v201
    %1553 = vmatprep.subr.mxu0 0.0
    %1554 = vmatpush1.msra.mxu0 %v202
    %1555 = vmatprep.mubr.f32.mxu0 %v1417
    %1556 = vmatmul.mubr.f32.gmra.mrb[0].mxu0 %v1416
    %v1557 = vpop.f32.mrb[0].mxu0
    %v1558 = vadd.f32 %v1488, %v1557
    %v1559 = vpop.f32.mrb[0].mxu0
    %1560 = vdwg.mxu0
    %1561 = vmatprep.subr.mxu0 0.0
    %1562 = vmatpush1.msra.mxu0 %v203
    %1563 = vmatprep.subr.mxu0 0.0
    %1564 = vmatpush1.msra.mxu0 %v204
    %1565 = vmatprep.subr.mxu0 0.0
    %1566 = vmatpush1.msra.mxu0 %v205
    %1567 = vmatprep.subr.mxu0 0.0
    %1568 = vmatpush1.msra.mxu0 %v206
    %1569 = vmatprep.subr.mxu0 0.0
    %1570 = vmatpush1.msra.mxu0 %v207
    %1571 = vmatprep.subr.mxu0 0.0
    %1572 = vmatpush1.msra.mxu0 %v208
    %1573 = vmatprep.subr.mxu0 0.0
    %1574 = vmatpush1.msra.mxu0 %v209
    %1575 = vmatprep.subr.mxu0 0.0
    %1576 = vmatpush1.msra.mxu0 %v210
    %1577 = vmatprep.subr.mxu0 0.0
    %1578 = vmatpush1.msra.mxu0 %v211
    %1579 = vmatprep.subr.mxu0 0.0
    %1580 = vmatpush1.msra.mxu0 %v212
    %1581 = vmatprep.subr.mxu0 0.0
    %1582 = vmatpush1.msra.mxu0 %v213
    %1583 = vmatprep.subr.mxu0 0.0
    %1584 = vmatpush1.msra.mxu0 %v214
    %1585 = vmatprep.subr.mxu0 0.0
    %1586 = vmatpush1.msra.mxu0 %v215
    %1587 = vmatprep.subr.mxu0 0.0
    %1588 = vmatpush1.msra.mxu0 %v216
    %1589 = vmatprep.subr.mxu0 0.0
    %1590 = vmatpush1.msra.mxu0 %v217
    %1591 = vmatprep.subr.mxu0 0.0
    %1592 = vmatpush1.msra.mxu0 %v218
    %1593 = vmatprep.subr.mxu0 0.0
    %1594 = vmatpush1.msra.mxu0 %v219
    %1595 = vmatprep.subr.mxu0 0.0
    %1596 = vmatpush1.msra.mxu0 %v220
    %1597 = vmatprep.subr.mxu0 0.0
    %1598 = vmatpush1.msra.mxu0 %v221
    %1599 = vmatprep.subr.mxu0 0.0
    %1600 = vmatpush1.msra.mxu0 %v222
    %1601 = vmatprep.subr.mxu0 0.0
    %1602 = vmatpush1.msra.mxu0 %v223
    %1603 = vmatprep.subr.mxu0 0.0
    %1604 = vmatpush1.msra.mxu0 %v224
    %1605 = vmatprep.subr.mxu0 0.0
    %1606 = vmatpush1.msra.mxu0 %v225
    %1607 = vmatprep.subr.mxu0 0.0
    %1608 = vmatpush1.msra.mxu0 %v226
    %1609 = vmatprep.subr.mxu0 0.0
    %1610 = vmatpush1.msra.mxu0 %v227
    %1611 = vmatprep.subr.mxu0 0.0
    %1612 = vmatpush1.msra.mxu0 %v228
    %1613 = vmatprep.subr.mxu0 0.0
    %1614 = vmatpush1.msra.mxu0 %v229
    %1615 = vmatprep.subr.mxu0 0.0
    %1616 = vmatpush1.msra.mxu0 %v230
    %1617 = vmatprep.subr.mxu0 0.0
    %1618 = vmatpush1.msra.mxu0 %v231
    %1619 = vmatprep.subr.mxu0 0.0
    %1620 = vmatpush1.msra.mxu0 %v232
    %1621 = vmatprep.subr.mxu0 0.0
    %1622 = vmatpush1.msra.mxu0 %v233
    %1623 = vmatprep.subr.mxu0 0.0
    %1624 = vmatpush1.msra.mxu0 %v234
    %1625 = vmatprep.mubr.f32.mxu0 %v1419
    %1626 = vmatmul.mubr.f32.gmra.mrb[0].mxu0 %v1418
    %v1627 = vpop.f32.mrb[0].mxu0
    %v1628 = vadd.f32 %v1558, %v1627
    %v1629 = vpop.f32.mrb[0].mxu0
    %1630 = vdwg.mxu0
    %1631 = vmatprep.subr.mxu0 0.0
    %1632 = vmatpush1.msra.mxu0 %v235
    %1633 = vmatprep.subr.mxu0 0.0
    %1634 = vmatpush1.msra.mxu0 %v236
    %1635 = vmatprep.subr.mxu0 0.0
    %1636 = vmatpush1.msra.mxu0 %v237
    %1637 = vmatprep.subr.mxu0 0.0
    %1638 = vmatpush1.msra.mxu0 %v238
    %1639 = vmatprep.subr.mxu0 0.0
    %1640 = vmatpush1.msra.mxu0 %v239
    %1641 = vmatprep.subr.mxu0 0.0
    %1642 = vmatpush1.msra.mxu0 %v240
    %1643 = vmatprep.subr.mxu0 0.0
    %1644 = vmatpush1.msra.mxu0 %v241
    %1645 = vmatprep.subr.mxu0 0.0
    %1646 = vmatpush1.msra.mxu0 %v242
    %1647 = vmatprep.subr.mxu0 0.0
    %1648 = vmatpush1.msra.mxu0 %v243
    %1649 = vmatprep.subr.mxu0 0.0
    %1650 = vmatpush1.msra.mxu0 %v244
    %1651 = vmatprep.subr.mxu0 0.0
    %1652 = vmatpush1.msra.mxu0 %v245
    %1653 = vmatprep.subr.mxu0 0.0
    %1654 = vmatpush1.msra.mxu0 %v246
    %1655 = vmatprep.subr.mxu0 0.0
    %1656 = vmatpush1.msra.mxu0 %v247
    %1657 = vmatprep.subr.mxu0 0.0
    %1658 = vmatpush1.msra.mxu0 %v248
    %1659 = vmatprep.subr.mxu0 0.0
    %1660 = vmatpush1.msra.mxu0 %v249
    %1661 = vmatprep.subr.mxu0 0.0
    %1662 = vmatpush1.msra.mxu0 %v250
    %1663 = vmatprep.subr.mxu0 0.0
    %1664 = vmatpush1.msra.mxu0 0.0
    %1665 = vmatprep.subr.mxu0 0.0
    %1666 = vmatpush1.msra.mxu0 0.0
    %1667 = vmatprep.subr.mxu0 0.0
    %1668 = vmatpush1.msra.mxu0 0.0
    %1669 = vmatprep.subr.mxu0 0.0
    %1670 = vmatpush1.msra.mxu0 0.0
    %1671 = vmatprep.subr.mxu0 0.0
    %1672 = vmatpush1.msra.mxu0 0.0
    %1673 = vmatprep.subr.mxu0 0.0
    %1674 = vmatpush1.msra.mxu0 0.0
    %1675 = vmatprep.subr.mxu0 0.0
    %1676 = vmatpush1.msra.mxu0 0.0
    %1677 = vmatprep.subr.mxu0 0.0
    %1678 = vmatpush1.msra.mxu0 0.0
    %1679 = vmatprep.subr.mxu0 0.0
    %1680 = vmatpush1.msra.mxu0 0.0
    %1681 = vmatprep.subr.mxu0 0.0
    %1682 = vmatpush1.msra.mxu0 0.0
    %1683 = vmatprep.subr.mxu0 0.0
    %1684 = vmatpush1.msra.mxu0 0.0
    %1685 = vmatprep.subr.mxu0 0.0
    %1686 = vmatpush1.msra.mxu0 0.0
    %1687 = vmatprep.subr.mxu0 0.0
    %1688 = vmatpush1.msra.mxu0 0.0
    %1689 = vmatprep.subr.mxu0 0.0
    %1690 = vmatpush1.msra.mxu0 0.0
    %1691 = vmatprep.subr.mxu0 0.0
    %1692 = vmatpush1.msra.mxu0 0.0
    %1693 = vmatprep.subr.mxu0 0.0
    %1694 = vmatpush1.msra.mxu0 0.0
    %1695 = vmatprep.mubr.f32.mxu0 0.0
    %1696 = vmatmul.mubr.f32.gmra.mrb[0].mxu0 %v1420
    %v1697 = vpop.f32.mrb[0].mxu0
    %v1698 = vadd.f32 %v1628, %v1697
    %v1699 = vpop.f32.mrb[0].mxu0
    %1700 = vdwg.mxu0
    %v1701 = vmax.f32 %v1698, 0.0
    %1702 = vst [vmem:[#allocation2 + $0x20] sm:$0xff] %v1701
    %v1703 = vld [vmem:[%s0 + $0x28] sm:$0xff]
    %v1704 = vld [vmem:[%s0 + $0x30] sm:$0xff]
    %v1705 = vld [vmem:[%s0 + $0x38] sm:$0xff]
    %v1706 = vld [vmem:[%s0 + $0x40] sm:$0xff]
    %v1707 = vld [vmem:[%s0 + $0x48] sm:$0xff]
    %v1708 = vld [vmem:[%s0 + $0x50] sm:$0xff]
    %v1709 = vld [vmem:[%s0 + $0x58] sm:$0xff]
    %1710 = vmatprep.subr.mxu0 0.0
    %1711 = vmatpush1.msra.mxu0 %v139
    %1712 = vmatprep.subr.mxu0 0.0
    %1713 = vmatpush1.msra.mxu0 %v140
    %1714 = vmatprep.subr.mxu0 0.0
    %1715 = vmatpush1.msra.mxu0 %v141
    %1716 = vmatprep.subr.mxu0 0.0
    %1717 = vmatpush1.msra.mxu0 %v142
    %1718 = vmatprep.subr.mxu0 0.0
    %1719 = vmatpush1.msra.mxu0 %v143
    %1720 = vmatprep.subr.mxu0 0.0
    %1721 = vmatpush1.msra.mxu0 %v144
    %1722 = vmatprep.subr.mxu0 0.0
    %1723 = vmatpush1.msra.mxu0 %v145
    %1724 = vmatprep.subr.mxu0 0.0
    %1725 = vmatpush1.msra.mxu0 %v146
    %1726 = vmatprep.subr.mxu0 0.0
    %1727 = vmatpush1.msra.mxu0 %v147
    %1728 = vmatprep.subr.mxu0 0.0
    %1729 = vmatpush1.msra.mxu0 %v148
    %1730 = vmatprep.subr.mxu0 0.0
    %1731 = vmatpush1.msra.mxu0 %v149
    %1732 = vmatprep.subr.mxu0 0.0
    %1733 = vmatpush1.msra.mxu0 %v150
    %1734 = vmatprep.subr.mxu0 0.0
    %1735 = vmatpush1.msra.mxu0 %v151
    %1736 = vmatprep.subr.mxu0 0.0
    %1737 = vmatpush1.msra.mxu0 %v152
    %1738 = vmatprep.subr.mxu0 0.0
    %1739 = vmatpush1.msra.mxu0 %v153
    %1740 = vmatprep.subr.mxu0 0.0
    %1741 = vmatpush1.msra.mxu0 %v154
    %1742 = vmatprep.subr.mxu0 0.0
    %1743 = vmatpush1.msra.mxu0 %v155
    %1744 = vmatprep.subr.mxu0 0.0
    %1745 = vmatpush1.msra.mxu0 %v156
    %1746 = vmatprep.subr.mxu0 0.0
    %1747 = vmatpush1.msra.mxu0 %v157
    %1748 = vmatprep.subr.mxu0 0.0
    %1749 = vmatpush1.msra.mxu0 %v158
    %1750 = vmatprep.subr.mxu0 0.0
    %1751 = vmatpush1.msra.mxu0 %v159
    %1752 = vmatprep.subr.mxu0 0.0
    %1753 = vmatpush1.msra.mxu0 %v160
    %1754 = vmatprep.subr.mxu0 0.0
    %1755 = vmatpush1.msra.mxu0 %v161
    %1756 = vmatprep.subr.mxu0 0.0
    %1757 = vmatpush1.msra.mxu0 %v162
    %1758 = vmatprep.subr.mxu0 0.0
    %1759 = vmatpush1.msra.mxu0 %v163
    %1760 = vmatprep.subr.mxu0 0.0
    %1761 = vmatpush1.msra.mxu0 %v164
    %1762 = vmatprep.subr.mxu0 0.0
    %1763 = vmatpush1.msra.mxu0 %v165
    %1764 = vmatprep.subr.mxu0 0.0
    %1765 = vmatpush1.msra.mxu0 %v166
    %1766 = vmatprep.subr.mxu0 0.0
    %1767 = vmatpush1.msra.mxu0 %v167
    %1768 = vmatprep.subr.mxu0 0.0
    %1769 = vmatpush1.msra.mxu0 %v168
    %1770 = vmatprep.subr.mxu0 0.0
    %1771 = vmatpush1.msra.mxu0 %v169
    %1772 = vmatprep.subr.mxu0 0.0
    %1773 = vmatpush1.msra.mxu0 %v170
    %1774 = vmatprep.mubr.f32.mxu0 %v1704
    %1775 = vmatmul.mubr.f32.gmra.mrb[0].mxu0 %v1703
    %v1776 = vpop.f32.mrb[0].mxu0
    %v1777 = vadd.f32 %v263, %v1776
    %v1778 = vpop.f32.mrb[0].mxu0
    %1779 = vdwg.mxu0
    %1780 = vmatprep.subr.mxu0 0.0
    %1781 = vmatpush1.msra.mxu0 %v171
    %1782 = vmatprep.subr.mxu0 0.0
    %1783 = vmatpush1.msra.mxu0 %v172
    %1784 = vmatprep.subr.mxu0 0.0
    %1785 = vmatpush1.msra.mxu0 %v173
    %1786 = vmatprep.subr.mxu0 0.0
    %1787 = vmatpush1.msra.mxu0 %v174
    %1788 = vmatprep.subr.mxu0 0.0
    %1789 = vmatpush1.msra.mxu0 %v175
    %1790 = vmatprep.subr.mxu0 0.0
    %1791 = vmatpush1.msra.mxu0 %v176
    %1792 = vmatprep.subr.mxu0 0.0
    %1793 = vmatpush1.msra.mxu0 %v177
    %1794 = vmatprep.subr.mxu0 0.0
    %1795 = vmatpush1.msra.mxu0 %v178
    %1796 = vmatprep.subr.mxu0 0.0
    %1797 = vmatpush1.msra.mxu0 %v179
    %1798 = vmatprep.subr.mxu0 0.0
    %1799 = vmatpush1.msra.mxu0 %v180
    %1800 = vmatprep.subr.mxu0 0.0
    %1801 = vmatpush1.msra.mxu0 %v181
    %1802 = vmatprep.subr.mxu0 0.0
    %1803 = vmatpush1.msra.mxu0 %v182
    %1804 = vmatprep.subr.mxu0 0.0
    %1805 = vmatpush1.msra.mxu0 %v183
    %1806 = vmatprep.subr.mxu0 0.0
    %1807 = vmatpush1.msra.mxu0 %v184
    %1808 = vmatprep.subr.mxu0 0.0
    %1809 = vmatpush1.msra.mxu0 %v185
    %1810 = vmatprep.subr.mxu0 0.0
    %1811 = vmatpush1.msra.mxu0 %v186
    %1812 = vmatprep.subr.mxu0 0.0
    %1813 = vmatpush1.msra.mxu0 %v187
    %1814 = vmatprep.subr.mxu0 0.0
    %1815 = vmatpush1.msra.mxu0 %v188
    %1816 = vmatprep.subr.mxu0 0.0
    %1817 = vmatpush1.msra.mxu0 %v189
    %1818 = vmatprep.subr.mxu0 0.0
    %1819 = vmatpush1.msra.mxu0 %v190
    %1820 = vmatprep.subr.mxu0 0.0
    %1821 = vmatpush1.msra.mxu0 %v191
    %1822 = vmatprep.subr.mxu0 0.0
    %1823 = vmatpush1.msra.mxu0 %v192
    %1824 = vmatprep.subr.mxu0 0.0
    %1825 = vmatpush1.msra.mxu0 %v193
    %1826 = vmatprep.subr.mxu0 0.0
    %1827 = vmatpush1.msra.mxu0 %v194
    %1828 = vmatprep.subr.mxu0 0.0
    %1829 = vmatpush1.msra.mxu0 %v195
    %1830 = vmatprep.subr.mxu0 0.0
    %1831 = vmatpush1.msra.mxu0 %v196
    %1832 = vmatprep.subr.mxu0 0.0
    %1833 = vmatpush1.msra.mxu0 %v197
    %1834 = vmatprep.subr.mxu0 0.0
    %1835 = vmatpush1.msra.mxu0 %v198
    %1836 = vmatprep.subr.mxu0 0.0
    %1837 = vmatpush1.msra.mxu0 %v199
    %1838 = vmatprep.subr.mxu0 0.0
    %1839 = vmatpush1.msra.mxu0 %v200
    %1840 = vmatprep.subr.mxu0 0.0
    %1841 = vmatpush1.msra.mxu0 %v201
    %1842 = vmatprep.subr.mxu0 0.0
    %1843 = vmatpush1.msra.mxu0 %v202
    %1844 = vmatprep.mubr.f32.mxu0 %v1706
    %1845 = vmatmul.mubr.f32.gmra.mrb[0].mxu0 %v1705
    %v1846 = vpop.f32.mrb[0].mxu0
    %v1847 = vadd.f32 %v1777, %v1846
    %v1848 = vpop.f32.mrb[0].mxu0
    %1849 = vdwg.mxu0
    %1850 = vmatprep.subr.mxu0 0.0
    %1851 = vmatpush1.msra.mxu0 %v203
    %1852 = vmatprep.subr.mxu0 0.0
    %1853 = vmatpush1.msra.mxu0 %v204
    %1854 = vmatprep.subr.mxu0 0.0
    %1855 = vmatpush1.msra.mxu0 %v205
    %1856 = vmatprep.subr.mxu0 0.0
    %1857 = vmatpush1.msra.mxu0 %v206
    %1858 = vmatprep.subr.mxu0 0.0
    %1859 = vmatpush1.msra.mxu0 %v207
    %1860 = vmatprep.subr.mxu0 0.0
    %1861 = vmatpush1.msra.mxu0 %v208
    %1862 = vmatprep.subr.mxu0 0.0
    %1863 = vmatpush1.msra.mxu0 %v209
    %1864 = vmatprep.subr.mxu0 0.0
    %1865 = vmatpush1.msra.mxu0 %v210
    %1866 = vmatprep.subr.mxu0 0.0
    %1867 = vmatpush1.msra.mxu0 %v211
    %1868 = vmatprep.subr.mxu0 0.0
    %1869 = vmatpush1.msra.mxu0 %v212
    %1870 = vmatprep.subr.mxu0 0.0
    %1871 = vmatpush1.msra.mxu0 %v213
    %1872 = vmatprep.subr.mxu0 0.0
    %1873 = vmatpush1.msra.mxu0 %v214
    %1874 = vmatprep.subr.mxu0 0.0
    %1875 = vmatpush1.msra.mxu0 %v215
    %1876 = vmatprep.subr.mxu0 0.0
    %1877 = vmatpush1.msra.mxu0 %v216
    %1878 = vmatprep.subr.mxu0 0.0
    %1879 = vmatpush1.msra.mxu0 %v217
    %1880 = vmatprep.subr.mxu0 0.0
    %1881 = vmatpush1.msra.mxu0 %v218
    %1882 = vmatprep.subr.mxu0 0.0
    %1883 = vmatpush1.msra.mxu0 %v219
    %1884 = vmatprep.subr.mxu0 0.0
    %1885 = vmatpush1.msra.mxu0 %v220
    %1886 = vmatprep.subr.mxu0 0.0
    %1887 = vmatpush1.msra.mxu0 %v221
    %1888 = vmatprep.subr.mxu0 0.0
    %1889 = vmatpush1.msra.mxu0 %v222
    %1890 = vmatprep.subr.mxu0 0.0
    %1891 = vmatpush1.msra.mxu0 %v223
    %1892 = vmatprep.subr.mxu0 0.0
    %1893 = vmatpush1.msra.mxu0 %v224
    %1894 = vmatprep.subr.mxu0 0.0
    %1895 = vmatpush1.msra.mxu0 %v225
    %1896 = vmatprep.subr.mxu0 0.0
    %1897 = vmatpush1.msra.mxu0 %v226
    %1898 = vmatprep.subr.mxu0 0.0
    %1899 = vmatpush1.msra.mxu0 %v227
    %1900 = vmatprep.subr.mxu0 0.0
    %1901 = vmatpush1.msra.mxu0 %v228
    %1902 = vmatprep.subr.mxu0 0.0
    %1903 = vmatpush1.msra.mxu0 %v229
    %1904 = vmatprep.subr.mxu0 0.0
    %1905 = vmatpush1.msra.mxu0 %v230
    %1906 = vmatprep.subr.mxu0 0.0
    %1907 = vmatpush1.msra.mxu0 %v231
    %1908 = vmatprep.subr.mxu0 0.0
    %1909 = vmatpush1.msra.mxu0 %v232
    %1910 = vmatprep.subr.mxu0 0.0
    %1911 = vmatpush1.msra.mxu0 %v233
    %1912 = vmatprep.subr.mxu0 0.0
    %1913 = vmatpush1.msra.mxu0 %v234
    %1914 = vmatprep.mubr.f32.mxu0 %v1708
    %1915 = vmatmul.mubr.f32.gmra.mrb[0].mxu0 %v1707
    %v1916 = vpop.f32.mrb[0].mxu0
    %v1917 = vadd.f32 %v1847, %v1916
    %v1918 = vpop.f32.mrb[0].mxu0
    %1919 = vdwg.mxu0
    %1920 = vmatprep.subr.mxu0 0.0
    %1921 = vmatpush1.msra.mxu0 %v235
    %1922 = vmatprep.subr.mxu0 0.0
    %1923 = vmatpush1.msra.mxu0 %v236
    %1924 = vmatprep.subr.mxu0 0.0
    %1925 = vmatpush1.msra.mxu0 %v237
    %1926 = vmatprep.subr.mxu0 0.0
    %1927 = vmatpush1.msra.mxu0 %v238
    %1928 = vmatprep.subr.mxu0 0.0
    %1929 = vmatpush1.msra.mxu0 %v239
    %1930 = vmatprep.subr.mxu0 0.0
    %1931 = vmatpush1.msra.mxu0 %v240
    %1932 = vmatprep.subr.mxu0 0.0
    %1933 = vmatpush1.msra.mxu0 %v241
    %1934 = vmatprep.subr.mxu0 0.0
    %1935 = vmatpush1.msra.mxu0 %v242
    %1936 = vmatprep.subr.mxu0 0.0
    %1937 = vmatpush1.msra.mxu0 %v243
    %1938 = vmatprep.subr.mxu0 0.0
    %1939 = vmatpush1.msra.mxu0 %v244
    %1940 = vmatprep.subr.mxu0 0.0
    %1941 = vmatpush1.msra.mxu0 %v245
    %1942 = vmatprep.subr.mxu0 0.0
    %1943 = vmatpush1.msra.mxu0 %v246
    %1944 = vmatprep.subr.mxu0 0.0
    %1945 = vmatpush1.msra.mxu0 %v247
    %1946 = vmatprep.subr.mxu0 0.0
    %1947 = vmatpush1.msra.mxu0 %v248
    %1948 = vmatprep.subr.mxu0 0.0
    %1949 = vmatpush1.msra.mxu0 %v249
    %1950 = vmatprep.subr.mxu0 0.0
    %1951 = vmatpush1.msra.mxu0 %v250
    %1952 = vmatprep.subr.mxu0 0.0
    %1953 = vmatpush1.msra.mxu0 0.0
    %1954 = vmatprep.subr.mxu0 0.0
    %1955 = vmatpush1.msra.mxu0 0.0
    %1956 = vmatprep.subr.mxu0 0.0
    %1957 = vmatpush1.msra.mxu0 0.0
    %1958 = vmatprep.subr.mxu0 0.0
    %1959 = vmatpush1.msra.mxu0 0.0
    %1960 = vmatprep.subr.mxu0 0.0
    %1961 = vmatpush1.msra.mxu0 0.0
    %1962 = vmatprep.subr.mxu0 0.0
    %1963 = vmatpush1.msra.mxu0 0.0
    %1964 = vmatprep.subr.mxu0 0.0
    %1965 = vmatpush1.msra.mxu0 0.0
    %1966 = vmatprep.subr.mxu0 0.0
    %1967 = vmatpush1.msra.mxu0 0.0
    %1968 = vmatprep.subr.mxu0 0.0
    %1969 = vmatpush1.msra.mxu0 0.0
    %1970 = vmatprep.subr.mxu0 0.0
    %1971 = vmatpush1.msra.mxu0 0.0
    %1972 = vmatprep.subr.mxu0 0.0
    %1973 = vmatpush1.msra.mxu0 0.0
    %1974 = vmatprep.subr.mxu0 0.0
    %1975 = vmatpush1.msra.mxu0 0.0
    %1976 = vmatprep.subr.mxu0 0.0
    %1977 = vmatpush1.msra.mxu0 0.0
    %1978 = vmatprep.subr.mxu0 0.0
    %1979 = vmatpush1.msra.mxu0 0.0
    %1980 = vmatprep.subr.mxu0 0.0
    %1981 = vmatpush1.msra.mxu0 0.0
    %1982 = vmatprep.subr.mxu0 0.0
    %1983 = vmatpush1.msra.mxu0 0.0
    %1984 = vmatprep.mubr.f32.mxu0 0.0
    %1985 = vmatmul.mubr.f32.gmra.mrb[0].mxu0 %v1709
    %v1986 = vpop.f32.mrb[0].mxu0
    %v1987 = vadd.f32 %v1917, %v1986
    %v1988 = vpop.f32.mrb[0].mxu0
    %1989 = vdwg.mxu0
    %v1990 = vmax.f32 %v1987, 0.0
    %1991 = vst [vmem:[#allocation2 + $0x28] sm:$0xff] %v1990
    %v1992 = vld [vmem:[%s0 + $0x30] sm:$0xff]
    %v1993 = vld [vmem:[%s0 + $0x38] sm:$0xff]
    %v1994 = vld [vmem:[%s0 + $0x40] sm:$0xff]
    %v1995 = vld [vmem:[%s0 + $0x48] sm:$0xff]
    %v1996 = vld [vmem:[%s0 + $0x50] sm:$0xff]
    %v1997 = vld [vmem:[%s0 + $0x58] sm:$0xff]
    %v1998 = vld [vmem:[%s0 + $0x60] sm:$0xff]
    %1999 = vmatprep.subr.mxu0 0.0
    %2000 = vmatpush1.msra.mxu0 %v139
    %2001 = vmatprep.subr.mxu0 0.0
    %2002 = vmatpush1.msra.mxu0 %v140
    %2003 = vmatprep.subr.mxu0 0.0
    %2004 = vmatpush1.msra.mxu0 %v141
    %2005 = vmatprep.subr.mxu0 0.0
    %2006 = vmatpush1.msra.mxu0 %v142
    %2007 = vmatprep.subr.mxu0 0.0
    %2008 = vmatpush1.msra.mxu0 %v143
    %2009 = vmatprep.subr.mxu0 0.0
    %2010 = vmatpush1.msra.mxu0 %v144
    %2011 = vmatprep.subr.mxu0 0.0
    %2012 = vmatpush1.msra.mxu0 %v145
    %2013 = vmatprep.subr.mxu0 0.0
    %2014 = vmatpush1.msra.mxu0 %v146
    %2015 = vmatprep.subr.mxu0 0.0
    %2016 = vmatpush1.msra.mxu0 %v147
    %2017 = vmatprep.subr.mxu0 0.0
    %2018 = vmatpush1.msra.mxu0 %v148
    %2019 = vmatprep.subr.mxu0 0.0
    %2020 = vmatpush1.msra.mxu0 %v149
    %2021 = vmatprep.subr.mxu0 0.0
    %2022 = vmatpush1.msra.mxu0 %v150
    %2023 = vmatprep.subr.mxu0 0.0
    %2024 = vmatpush1.msra.mxu0 %v151
    %2025 = vmatprep.subr.mxu0 0.0
    %2026 = vmatpush1.msra.mxu0 %v152
    %2027 = vmatprep.subr.mxu0 0.0
    %2028 = vmatpush1.msra.mxu0 %v153
    %2029 = vmatprep.subr.mxu0 0.0
    %2030 = vmatpush1.msra.mxu0 %v154
    %2031 = vmatprep.subr.mxu0 0.0
    %2032 = vmatpush1.msra.mxu0 %v155
    %2033 = vmatprep.subr.mxu0 0.0
    %2034 = vmatpush1.msra.mxu0 %v156
    %2035 = vmatprep.subr.mxu0 0.0
    %2036 = vmatpush1.msra.mxu0 %v157
    %2037 = vmatprep.subr.mxu0 0.0
    %2038 = vmatpush1.msra.mxu0 %v158
    %2039 = vmatprep.subr.mxu0 0.0
    %2040 = vmatpush1.msra.mxu0 %v159
    %2041 = vmatprep.subr.mxu0 0.0
    %2042 = vmatpush1.msra.mxu0 %v160
    %2043 = vmatprep.subr.mxu0 0.0
    %2044 = vmatpush1.msra.mxu0 %v161
    %2045 = vmatprep.subr.mxu0 0.0
    %2046 = vmatpush1.msra.mxu0 %v162
    %2047 = vmatprep.subr.mxu0 0.0
    %2048 = vmatpush1.msra.mxu0 %v163
    %2049 = vmatprep.subr.mxu0 0.0
    %2050 = vmatpush1.msra.mxu0 %v164
    %2051 = vmatprep.subr.mxu0 0.0
    %2052 = vmatpush1.msra.mxu0 %v165
    %2053 = vmatprep.subr.mxu0 0.0
    %2054 = vmatpush1.msra.mxu0 %v166
    %2055 = vmatprep.subr.mxu0 0.0
    %2056 = vmatpush1.msra.mxu0 %v167
    %2057 = vmatprep.subr.mxu0 0.0
    %2058 = vmatpush1.msra.mxu0 %v168
    %2059 = vmatprep.subr.mxu0 0.0
    %2060 = vmatpush1.msra.mxu0 %v169
    %2061 = vmatprep.subr.mxu0 0.0
    %2062 = vmatpush1.msra.mxu0 %v170
    %2063 = vmatprep.mubr.f32.mxu0 %v1993
    %2064 = vmatmul.mubr.f32.gmra.mrb[0].mxu0 %v1992
    %v2065 = vpop.f32.mrb[0].mxu0
    %v2066 = vadd.f32 %v263, %v2065
    %v2067 = vpop.f32.mrb[0].mxu0
    %2068 = vdwg.mxu0
    %2069 = vmatprep.subr.mxu0 0.0
    %2070 = vmatpush1.msra.mxu0 %v171
    %2071 = vmatprep.subr.mxu0 0.0
    %2072 = vmatpush1.msra.mxu0 %v172
    %2073 = vmatprep.subr.mxu0 0.0
    %2074 = vmatpush1.msra.mxu0 %v173
    %2075 = vmatprep.subr.mxu0 0.0
    %2076 = vmatpush1.msra.mxu0 %v174
    %2077 = vmatprep.subr.mxu0 0.0
    %2078 = vmatpush1.msra.mxu0 %v175
    %2079 = vmatprep.subr.mxu0 0.0
    %2080 = vmatpush1.msra.mxu0 %v176
    %2081 = vmatprep.subr.mxu0 0.0
    %2082 = vmatpush1.msra.mxu0 %v177
    %2083 = vmatprep.subr.mxu0 0.0
    %2084 = vmatpush1.msra.mxu0 %v178
    %2085 = vmatprep.subr.mxu0 0.0
    %2086 = vmatpush1.msra.mxu0 %v179
    %2087 = vmatprep.subr.mxu0 0.0
    %2088 = vmatpush1.msra.mxu0 %v180
    %2089 = vmatprep.subr.mxu0 0.0
    %2090 = vmatpush1.msra.mxu0 %v181
    %2091 = vmatprep.subr.mxu0 0.0
    %2092 = vmatpush1.msra.mxu0 %v182
    %2093 = vmatprep.subr.mxu0 0.0
    %2094 = vmatpush1.msra.mxu0 %v183
    %2095 = vmatprep.subr.mxu0 0.0
    %2096 = vmatpush1.msra.mxu0 %v184
    %2097 = vmatprep.subr.mxu0 0.0
    %2098 = vmatpush1.msra.mxu0 %v185
    %2099 = vmatprep.subr.mxu0 0.0
    %2100 = vmatpush1.msra.mxu0 %v186
    %2101 = vmatprep.subr.mxu0 0.0
    %2102 = vmatpush1.msra.mxu0 %v187
    %2103 = vmatprep.subr.mxu0 0.0
    %2104 = vmatpush1.msra.mxu0 %v188
    %2105 = vmatprep.subr.mxu0 0.0
    %2106 = vmatpush1.msra.mxu0 %v189
    %2107 = vmatprep.subr.mxu0 0.0
    %2108 = vmatpush1.msra.mxu0 %v190
    %2109 = vmatprep.subr.mxu0 0.0
    %2110 = vmatpush1.msra.mxu0 %v191
    %2111 = vmatprep.subr.mxu0 0.0
    %2112 = vmatpush1.msra.mxu0 %v192
    %2113 = vmatprep.subr.mxu0 0.0
    %2114 = vmatpush1.msra.mxu0 %v193
    %2115 = vmatprep.subr.mxu0 0.0
    %2116 = vmatpush1.msra.mxu0 %v194
    %2117 = vmatprep.subr.mxu0 0.0
    %2118 = vmatpush1.msra.mxu0 %v195
    %2119 = vmatprep.subr.mxu0 0.0
    %2120 = vmatpush1.msra.mxu0 %v196
    %2121 = vmatprep.subr.mxu0 0.0
    %2122 = vmatpush1.msra.mxu0 %v197
    %2123 = vmatprep.subr.mxu0 0.0
    %2124 = vmatpush1.msra.mxu0 %v198
    %2125 = vmatprep.subr.mxu0 0.0
    %2126 = vmatpush1.msra.mxu0 %v199
    %2127 = vmatprep.subr.mxu0 0.0
    %2128 = vmatpush1.msra.mxu0 %v200
    %2129 = vmatprep.subr.mxu0 0.0
    %2130 = vmatpush1.msra.mxu0 %v201
    %2131 = vmatprep.subr.mxu0 0.0
    %2132 = vmatpush1.msra.mxu0 %v202
    %2133 = vmatprep.mubr.f32.mxu0 %v1995
    %2134 = vmatmul.mubr.f32.gmra.mrb[0].mxu0 %v1994
    %v2135 = vpop.f32.mrb[0].mxu0
    %v2136 = vadd.f32 %v2066, %v2135
    %v2137 = vpop.f32.mrb[0].mxu0
    %2138 = vdwg.mxu0
    %2139 = vmatprep.subr.mxu0 0.0
    %2140 = vmatpush1.msra.mxu0 %v203
    %2141 = vmatprep.subr.mxu0 0.0
    %2142 = vmatpush1.msra.mxu0 %v204
    %2143 = vmatprep.subr.mxu0 0.0
    %2144 = vmatpush1.msra.mxu0 %v205
    %2145 = vmatprep.subr.mxu0 0.0
    %2146 = vmatpush1.msra.mxu0 %v206
    %2147 = vmatprep.subr.mxu0 0.0
    %2148 = vmatpush1.msra.mxu0 %v207
    %2149 = vmatprep.subr.mxu0 0.0
    %2150 = vmatpush1.msra.mxu0 %v208
    %2151 = vmatprep.subr.mxu0 0.0
    %2152 = vmatpush1.msra.mxu0 %v209
    %2153 = vmatprep.subr.mxu0 0.0
    %2154 = vmatpush1.msra.mxu0 %v210
    %2155 = vmatprep.subr.mxu0 0.0
    %2156 = vmatpush1.msra.mxu0 %v211
    %2157 = vmatprep.subr.mxu0 0.0
    %2158 = vmatpush1.msra.mxu0 %v212
    %2159 = vmatprep.subr.mxu0 0.0
    %2160 = vmatpush1.msra.mxu0 %v213
    %2161 = vmatprep.subr.mxu0 0.0
    %2162 = vmatpush1.msra.mxu0 %v214
    %2163 = vmatprep.subr.mxu0 0.0
    %2164 = vmatpush1.msra.mxu0 %v215
    %2165 = vmatprep.subr.mxu0 0.0
    %2166 = vmatpush1.msra.mxu0 %v216
    %2167 = vmatprep.subr.mxu0 0.0
    %2168 = vmatpush1.msra.mxu0 %v217
    %2169 = vmatprep.subr.mxu0 0.0
    %2170 = vmatpush1.msra.mxu0 %v218
    %2171 = vmatprep.subr.mxu0 0.0
    %2172 = vmatpush1.msra.mxu0 %v219
    %2173 = vmatprep.subr.mxu0 0.0
    %2174 = vmatpush1.msra.mxu0 %v220
    %2175 = vmatprep.subr.mxu0 0.0
    %2176 = vmatpush1.msra.mxu0 %v221
    %2177 = vmatprep.subr.mxu0 0.0
    %2178 = vmatpush1.msra.mxu0 %v222
    %2179 = vmatprep.subr.mxu0 0.0
    %2180 = vmatpush1.msra.mxu0 %v223
    %2181 = vmatprep.subr.mxu0 0.0
    %2182 = vmatpush1.msra.mxu0 %v224
    %2183 = vmatprep.subr.mxu0 0.0
    %2184 = vmatpush1.msra.mxu0 %v225
    %2185 = vmatprep.subr.mxu0 0.0
    %2186 = vmatpush1.msra.mxu0 %v226
    %2187 = vmatprep.subr.mxu0 0.0
    %2188 = vmatpush1.msra.mxu0 %v227
    %2189 = vmatprep.subr.mxu0 0.0
    %2190 = vmatpush1.msra.mxu0 %v228
    %2191 = vmatprep.subr.mxu0 0.0
    %2192 = vmatpush1.msra.mxu0 %v229
    %2193 = vmatprep.subr.mxu0 0.0
    %2194 = vmatpush1.msra.mxu0 %v230
    %2195 = vmatprep.subr.mxu0 0.0
    %2196 = vmatpush1.msra.mxu0 %v231
    %2197 = vmatprep.subr.mxu0 0.0
    %2198 = vmatpush1.msra.mxu0 %v232
    %2199 = vmatprep.subr.mxu0 0.0
    %2200 = vmatpush1.msra.mxu0 %v233
    %2201 = vmatprep.subr.mxu0 0.0
    %2202 = vmatpush1.msra.mxu0 %v234
    %2203 = vmatprep.mubr.f32.mxu0 %v1997
    %2204 = vmatmul.mubr.f32.gmra.mrb[0].mxu0 %v1996
    %v2205 = vpop.f32.mrb[0].mxu0
    %v2206 = vadd.f32 %v2136, %v2205
    %v2207 = vpop.f32.mrb[0].mxu0
    %2208 = vdwg.mxu0
    %2209 = vmatprep.subr.mxu0 0.0
    %2210 = vmatpush1.msra.mxu0 %v235
    %2211 = vmatprep.subr.mxu0 0.0
    %2212 = vmatpush1.msra.mxu0 %v236
    %2213 = vmatprep.subr.mxu0 0.0
    %2214 = vmatpush1.msra.mxu0 %v237
    %2215 = vmatprep.subr.mxu0 0.0
    %2216 = vmatpush1.msra.mxu0 %v238
    %2217 = vmatprep.subr.mxu0 0.0
    %2218 = vmatpush1.msra.mxu0 %v239
    %2219 = vmatprep.subr.mxu0 0.0
    %2220 = vmatpush1.msra.mxu0 %v240
    %2221 = vmatprep.subr.mxu0 0.0
    %2222 = vmatpush1.msra.mxu0 %v241
    %2223 = vmatprep.subr.mxu0 0.0
    %2224 = vmatpush1.msra.mxu0 %v242
    %2225 = vmatprep.subr.mxu0 0.0
    %2226 = vmatpush1.msra.mxu0 %v243
    %2227 = vmatprep.subr.mxu0 0.0
    %2228 = vmatpush1.msra.mxu0 %v244
    %2229 = vmatprep.subr.mxu0 0.0
    %2230 = vmatpush1.msra.mxu0 %v245
    %2231 = vmatprep.subr.mxu0 0.0
    %2232 = vmatpush1.msra.mxu0 %v246
    %2233 = vmatprep.subr.mxu0 0.0
    %2234 = vmatpush1.msra.mxu0 %v247
    %2235 = vmatprep.subr.mxu0 0.0
    %2236 = vmatpush1.msra.mxu0 %v248
    %2237 = vmatprep.subr.mxu0 0.0
    %2238 = vmatpush1.msra.mxu0 %v249
    %2239 = vmatprep.subr.mxu0 0.0
    %2240 = vmatpush1.msra.mxu0 %v250
    %2241 = vmatprep.subr.mxu0 0.0
    %2242 = vmatpush1.msra.mxu0 0.0
    %2243 = vmatprep.subr.mxu0 0.0
    %2244 = vmatpush1.msra.mxu0 0.0
    %2245 = vmatprep.subr.mxu0 0.0
    %2246 = vmatpush1.msra.mxu0 0.0
    %2247 = vmatprep.subr.mxu0 0.0
    %2248 = vmatpush1.msra.mxu0 0.0
    %2249 = vmatprep.subr.mxu0 0.0
    %2250 = vmatpush1.msra.mxu0 0.0
    %2251 = vmatprep.subr.mxu0 0.0
    %2252 = vmatpush1.msra.mxu0 0.0
    %2253 = vmatprep.subr.mxu0 0.0
    %2254 = vmatpush1.msra.mxu0 0.0
    %2255 = vmatprep.subr.mxu0 0.0
    %2256 = vmatpush1.msra.mxu0 0.0
    %2257 = vmatprep.subr.mxu0 0.0
    %2258 = vmatpush1.msra.mxu0 0.0
    %2259 = vmatprep.subr.mxu0 0.0
    %2260 = vmatpush1.msra.mxu0 0.0
    %2261 = vmatprep.subr.mxu0 0.0
    %2262 = vmatpush1.msra.mxu0 0.0
    %2263 = vmatprep.subr.mxu0 0.0
    %2264 = vmatpush1.msra.mxu0 0.0
    %2265 = vmatprep.subr.mxu0 0.0
    %2266 = vmatpush1.msra.mxu0 0.0
    %2267 = vmatprep.subr.mxu0 0.0
    %2268 = vmatpush1.msra.mxu0 0.0
    %2269 = vmatprep.subr.mxu0 0.0
    %2270 = vmatpush1.msra.mxu0 0.0
    %2271 = vmatprep.subr.mxu0 0.0
    %2272 = vmatpush1.msra.mxu0 0.0
    %2273 = vmatprep.mubr.f32.mxu0 0.0
    %2274 = vmatmul.mubr.f32.gmra.mrb[0].mxu0 %v1998
    %v2275 = vpop.f32.mrb[0].mxu0
    %v2276 = vadd.f32 %v2206, %v2275
    %v2277 = vpop.f32.mrb[0].mxu0
    %2278 = vdwg.mxu0
    %v2279 = vmax.f32 %v2276, 0.0
    %2280 = vst [vmem:[#allocation2 + $0x30] sm:$0xff] %v2279
    %v2281 = vld [vmem:[%s0 + $0x38] sm:$0xff]
    %v2282 = vld [vmem:[%s0 + $0x40] sm:$0xff]
    %v2283 = vld [vmem:[%s0 + $0x48] sm:$0xff]
    %v2284 = vld [vmem:[%s0 + $0x50] sm:$0xff]
    %v2285 = vld [vmem:[%s0 + $0x58] sm:$0xff]
    %v2286 = vld [vmem:[%s0 + $0x60] sm:$0xff]
    %v2287 = vld [vmem:[%s0 + $0x68] sm:$0xff]
    %2288 = vmatprep.subr.mxu0 0.0
    %2289 = vmatpush1.msra.mxu0 %v139
    %2290 = vmatprep.subr.mxu0 0.0
    %2291 = vmatpush1.msra.mxu0 %v140
    %2292 = vmatprep.subr.mxu0 0.0
    %2293 = vmatpush1.msra.mxu0 %v141
    %2294 = vmatprep.subr.mxu0 0.0
    %2295 = vmatpush1.msra.mxu0 %v142
    %2296 = vmatprep.subr.mxu0 0.0
    %2297 = vmatpush1.msra.mxu0 %v143
    %2298 = vmatprep.subr.mxu0 0.0
    %2299 = vmatpush1.msra.mxu0 %v144
    %2300 = vmatprep.subr.mxu0 0.0
    %2301 = vmatpush1.msra.mxu0 %v145
    %2302 = vmatprep.subr.mxu0 0.0
    %2303 = vmatpush1.msra.mxu0 %v146
    %2304 = vmatprep.subr.mxu0 0.0
    %2305 = vmatpush1.msra.mxu0 %v147
    %2306 = vmatprep.subr.mxu0 0.0
    %2307 = vmatpush1.msra.mxu0 %v148
    %2308 = vmatprep.subr.mxu0 0.0
    %2309 = vmatpush1.msra.mxu0 %v149
    %2310 = vmatprep.subr.mxu0 0.0
    %2311 = vmatpush1.msra.mxu0 %v150
    %2312 = vmatprep.subr.mxu0 0.0
    %2313 = vmatpush1.msra.mxu0 %v151
    %2314 = vmatprep.subr.mxu0 0.0
    %2315 = vmatpush1.msra.mxu0 %v152
    %2316 = vmatprep.subr.mxu0 0.0
    %2317 = vmatpush1.msra.mxu0 %v153
    %2318 = vmatprep.subr.mxu0 0.0
    %2319 = vmatpush1.msra.mxu0 %v154
    %2320 = vmatprep.subr.mxu0 0.0
    %2321 = vmatpush1.msra.mxu0 %v155
    %2322 = vmatprep.subr.mxu0 0.0
    %2323 = vmatpush1.msra.mxu0 %v156
    %2324 = vmatprep.subr.mxu0 0.0
    %2325 = vmatpush1.msra.mxu0 %v157
    %2326 = vmatprep.subr.mxu0 0.0
    %2327 = vmatpush1.msra.mxu0 %v158
    %2328 = vmatprep.subr.mxu0 0.0
    %2329 = vmatpush1.msra.mxu0 %v159
    %2330 = vmatprep.subr.mxu0 0.0
    %2331 = vmatpush1.msra.mxu0 %v160
    %2332 = vmatprep.subr.mxu0 0.0
    %2333 = vmatpush1.msra.mxu0 %v161
    %2334 = vmatprep.subr.mxu0 0.0
    %2335 = vmatpush1.msra.mxu0 %v162
    %2336 = vmatprep.subr.mxu0 0.0
    %2337 = vmatpush1.msra.mxu0 %v163
    %2338 = vmatprep.subr.mxu0 0.0
    %2339 = vmatpush1.msra.mxu0 %v164
    %2340 = vmatprep.subr.mxu0 0.0
    %2341 = vmatpush1.msra.mxu0 %v165
    %2342 = vmatprep.subr.mxu0 0.0
    %2343 = vmatpush1.msra.mxu0 %v166
    %2344 = vmatprep.subr.mxu0 0.0
    %2345 = vmatpush1.msra.mxu0 %v167
    %2346 = vmatprep.subr.mxu0 0.0
    %2347 = vmatpush1.msra.mxu0 %v168
    %2348 = vmatprep.subr.mxu0 0.0
    %2349 = vmatpush1.msra.mxu0 %v169
    %2350 = vmatprep.subr.mxu0 0.0
    %2351 = vmatpush1.msra.mxu0 %v170
    %2352 = vmatprep.mubr.f32.mxu0 %v2282
    %2353 = vmatmul.mubr.f32.gmra.mrb[0].mxu0 %v2281
    %v2354 = vpop.f32.mrb[0].mxu0
    %v2355 = vadd.f32 %v263, %v2354
    %v2356 = vpop.f32.mrb[0].mxu0
    %2357 = vdwg.mxu0
    %2358 = vmatprep.subr.mxu0 0.0
    %2359 = vmatpush1.msra.mxu0 %v171
    %2360 = vmatprep.subr.mxu0 0.0
    %2361 = vmatpush1.msra.mxu0 %v172
    %2362 = vmatprep.subr.mxu0 0.0
    %2363 = vmatpush1.msra.mxu0 %v173
    %2364 = vmatprep.subr.mxu0 0.0
    %2365 = vmatpush1.msra.mxu0 %v174
    %2366 = vmatprep.subr.mxu0 0.0
    %2367 = vmatpush1.msra.mxu0 %v175
    %2368 = vmatprep.subr.mxu0 0.0
    %2369 = vmatpush1.msra.mxu0 %v176
    %2370 = vmatprep.subr.mxu0 0.0
    %2371 = vmatpush1.msra.mxu0 %v177
    %2372 = vmatprep.subr.mxu0 0.0
    %2373 = vmatpush1.msra.mxu0 %v178
    %2374 = vmatprep.subr.mxu0 0.0
    %2375 = vmatpush1.msra.mxu0 %v179
    %2376 = vmatprep.subr.mxu0 0.0
    %2377 = vmatpush1.msra.mxu0 %v180
    %2378 = vmatprep.subr.mxu0 0.0
    %2379 = vmatpush1.msra.mxu0 %v181
    %2380 = vmatprep.subr.mxu0 0.0
    %2381 = vmatpush1.msra.mxu0 %v182
    %2382 = vmatprep.subr.mxu0 0.0
    %2383 = vmatpush1.msra.mxu0 %v183
    %2384 = vmatprep.subr.mxu0 0.0
    %2385 = vmatpush1.msra.mxu0 %v184
    %2386 = vmatprep.subr.mxu0 0.0
    %2387 = vmatpush1.msra.mxu0 %v185
    %2388 = vmatprep.subr.mxu0 0.0
    %2389 = vmatpush1.msra.mxu0 %v186
    %2390 = vmatprep.subr.mxu0 0.0
    %2391 = vmatpush1.msra.mxu0 %v187
    %2392 = vmatprep.subr.mxu0 0.0
    %2393 = vmatpush1.msra.mxu0 %v188
    %2394 = vmatprep.subr.mxu0 0.0
    %2395 = vmatpush1.msra.mxu0 %v189
    %2396 = vmatprep.subr.mxu0 0.0
    %2397 = vmatpush1.msra.mxu0 %v190
    %2398 = vmatprep.subr.mxu0 0.0
    %2399 = vmatpush1.msra.mxu0 %v191
    %2400 = vmatprep.subr.mxu0 0.0
    %2401 = vmatpush1.msra.mxu0 %v192
    %2402 = vmatprep.subr.mxu0 0.0
    %2403 = vmatpush1.msra.mxu0 %v193
    %2404 = vmatprep.subr.mxu0 0.0
    %2405 = vmatpush1.msra.mxu0 %v194
    %2406 = vmatprep.subr.mxu0 0.0
    %2407 = vmatpush1.msra.mxu0 %v195
    %2408 = vmatprep.subr.mxu0 0.0
    %2409 = vmatpush1.msra.mxu0 %v196
    %2410 = vmatprep.subr.mxu0 0.0
    %2411 = vmatpush1.msra.mxu0 %v197
    %2412 = vmatprep.subr.mxu0 0.0
    %2413 = vmatpush1.msra.mxu0 %v198
    %2414 = vmatprep.subr.mxu0 0.0
    %2415 = vmatpush1.msra.mxu0 %v199
    %2416 = vmatprep.subr.mxu0 0.0
    %2417 = vmatpush1.msra.mxu0 %v200
    %2418 = vmatprep.subr.mxu0 0.0
    %2419 = vmatpush1.msra.mxu0 %v201
    %2420 = vmatprep.subr.mxu0 0.0
    %2421 = vmatpush1.msra.mxu0 %v202
    %2422 = vmatprep.mubr.f32.mxu0 %v2284
    %2423 = vmatmul.mubr.f32.gmra.mrb[0].mxu0 %v2283
    %v2424 = vpop.f32.mrb[0].mxu0
    %v2425 = vadd.f32 %v2355, %v2424
    %v2426 = vpop.f32.mrb[0].mxu0
    %2427 = vdwg.mxu0
    %2428 = vmatprep.subr.mxu0 0.0
    %2429 = vmatpush1.msra.mxu0 %v203
    %2430 = vmatprep.subr.mxu0 0.0
    %2431 = vmatpush1.msra.mxu0 %v204
    %2432 = vmatprep.subr.mxu0 0.0
    %2433 = vmatpush1.msra.mxu0 %v205
    %2434 = vmatprep.subr.mxu0 0.0
    %2435 = vmatpush1.msra.mxu0 %v206
    %2436 = vmatprep.subr.mxu0 0.0
    %2437 = vmatpush1.msra.mxu0 %v207
    %2438 = vmatprep.subr.mxu0 0.0
    %2439 = vmatpush1.msra.mxu0 %v208
    %2440 = vmatprep.subr.mxu0 0.0
    %2441 = vmatpush1.msra.mxu0 %v209
    %2442 = vmatprep.subr.mxu0 0.0
    %2443 = vmatpush1.msra.mxu0 %v210
    %2444 = vmatprep.subr.mxu0 0.0
    %2445 = vmatpush1.msra.mxu0 %v211
    %2446 = vmatprep.subr.mxu0 0.0
    %2447 = vmatpush1.msra.mxu0 %v212
    %2448 = vmatprep.subr.mxu0 0.0
    %2449 = vmatpush1.msra.mxu0 %v213
    %2450 = vmatprep.subr.mxu0 0.0
    %2451 = vmatpush1.msra.mxu0 %v214
    %2452 = vmatprep.subr.mxu0 0.0
    %2453 = vmatpush1.msra.mxu0 %v215
    %2454 = vmatprep.subr.mxu0 0.0
    %2455 = vmatpush1.msra.mxu0 %v216
    %2456 = vmatprep.subr.mxu0 0.0
    %2457 = vmatpush1.msra.mxu0 %v217
    %2458 = vmatprep.subr.mxu0 0.0
    %2459 = vmatpush1.msra.mxu0 %v218
    %2460 = vmatprep.subr.mxu0 0.0
    %2461 = vmatpush1.msra.mxu0 %v219
    %2462 = vmatprep.subr.mxu0 0.0
    %2463 = vmatpush1.msra.mxu0 %v220
    %2464 = vmatprep.subr.mxu0 0.0
    %2465 = vmatpush1.msra.mxu0 %v221
    %2466 = vmatprep.subr.mxu0 0.0
    %2467 = vmatpush1.msra.mxu0 %v222
    %2468 = vmatprep.subr.mxu0 0.0
    %2469 = vmatpush1.msra.mxu0 %v223
    %2470 = vmatprep.subr.mxu0 0.0
    %2471 = vmatpush1.msra.mxu0 %v224
    %2472 = vmatprep.subr.mxu0 0.0
    %2473 = vmatpush1.msra.mxu0 %v225
    %2474 = vmatprep.subr.mxu0 0.0
    %2475 = vmatpush1.msra.mxu0 %v226
    %2476 = vmatprep.subr.mxu0 0.0
    %2477 = vmatpush1.msra.mxu0 %v227
    %2478 = vmatprep.subr.mxu0 0.0
    %2479 = vmatpush1.msra.mxu0 %v228
    %2480 = vmatprep.subr.mxu0 0.0
    %2481 = vmatpush1.msra.mxu0 %v229
    %2482 = vmatprep.subr.mxu0 0.0
    %2483 = vmatpush1.msra.mxu0 %v230
    %2484 = vmatprep.subr.mxu0 0.0
    %2485 = vmatpush1.msra.mxu0 %v231
    %2486 = vmatprep.subr.mxu0 0.0
    %2487 = vmatpush1.msra.mxu0 %v232
    %2488 = vmatprep.subr.mxu0 0.0
    %2489 = vmatpush1.msra.mxu0 %v233
    %2490 = vmatprep.subr.mxu0 0.0
    %2491 = vmatpush1.msra.mxu0 %v234
    %2492 = vmatprep.mubr.f32.mxu0 %v2286
    %2493 = vmatmul.mubr.f32.gmra.mrb[0].mxu0 %v2285
    %v2494 = vpop.f32.mrb[0].mxu0
    %v2495 = vadd.f32 %v2425, %v2494
    %v2496 = vpop.f32.mrb[0].mxu0
    %2497 = vdwg.mxu0
    %2498 = vmatprep.subr.mxu0 0.0
    %2499 = vmatpush1.msra.mxu0 %v235
    %2500 = vmatprep.subr.mxu0 0.0
    %2501 = vmatpush1.msra.mxu0 %v236
    %2502 = vmatprep.subr.mxu0 0.0
    %2503 = vmatpush1.msra.mxu0 %v237
    %2504 = vmatprep.subr.mxu0 0.0
    %2505 = vmatpush1.msra.mxu0 %v238
    %2506 = vmatprep.subr.mxu0 0.0
    %2507 = vmatpush1.msra.mxu0 %v239
    %2508 = vmatprep.subr.mxu0 0.0
    %2509 = vmatpush1.msra.mxu0 %v240
    %2510 = vmatprep.subr.mxu0 0.0
    %2511 = vmatpush1.msra.mxu0 %v241
    %2512 = vmatprep.subr.mxu0 0.0
    %2513 = vmatpush1.msra.mxu0 %v242
    %2514 = vmatprep.subr.mxu0 0.0
    %2515 = vmatpush1.msra.mxu0 %v243
    %2516 = vmatprep.subr.mxu0 0.0
    %2517 = vmatpush1.msra.mxu0 %v244
    %2518 = vmatprep.subr.mxu0 0.0
    %2519 = vmatpush1.msra.mxu0 %v245
    %2520 = vmatprep.subr.mxu0 0.0
    %2521 = vmatpush1.msra.mxu0 %v246
    %2522 = vmatprep.subr.mxu0 0.0
    %2523 = vmatpush1.msra.mxu0 %v247
    %2524 = vmatprep.subr.mxu0 0.0
    %2525 = vmatpush1.msra.mxu0 %v248
    %2526 = vmatprep.subr.mxu0 0.0
    %2527 = vmatpush1.msra.mxu0 %v249
    %2528 = vmatprep.subr.mxu0 0.0
    %2529 = vmatpush1.msra.mxu0 %v250
    %2530 = vmatprep.subr.mxu0 0.0
    %2531 = vmatpush1.msra.mxu0 0.0
    %2532 = vmatprep.subr.mxu0 0.0
    %2533 = vmatpush1.msra.mxu0 0.0
    %2534 = vmatprep.subr.mxu0 0.0
    %2535 = vmatpush1.msra.mxu0 0.0
    %2536 = vmatprep.subr.mxu0 0.0
    %2537 = vmatpush1.msra.mxu0 0.0
    %2538 = vmatprep.subr.mxu0 0.0
    %2539 = vmatpush1.msra.mxu0 0.0
    %2540 = vmatprep.subr.mxu0 0.0
    %2541 = vmatpush1.msra.mxu0 0.0
    %2542 = vmatprep.subr.mxu0 0.0
    %2543 = vmatpush1.msra.mxu0 0.0
    %2544 = vmatprep.subr.mxu0 0.0
    %2545 = vmatpush1.msra.mxu0 0.0
    %2546 = vmatprep.subr.mxu0 0.0
    %2547 = vmatpush1.msra.mxu0 0.0
    %2548 = vmatprep.subr.mxu0 0.0
    %2549 = vmatpush1.msra.mxu0 0.0
    %2550 = vmatprep.subr.mxu0 0.0
    %2551 = vmatpush1.msra.mxu0 0.0
    %2552 = vmatprep.subr.mxu0 0.0
    %2553 = vmatpush1.msra.mxu0 0.0
    %2554 = vmatprep.subr.mxu0 0.0
    %2555 = vmatpush1.msra.mxu0 0.0
    %2556 = vmatprep.subr.mxu0 0.0
    %2557 = vmatpush1.msra.mxu0 0.0
    %2558 = vmatprep.subr.mxu0 0.0
    %2559 = vmatpush1.msra.mxu0 0.0
    %2560 = vmatprep.subr.mxu0 0.0
    %2561 = vmatpush1.msra.mxu0 0.0
    %2562 = vmatprep.mubr.f32.mxu0 0.0
    %2563 = vmatmul.mubr.f32.gmra.mrb[0].mxu0 %v2287
    %v2564 = vpop.f32.mrb[0].mxu0
    %v2565 = vadd.f32 %v2495, %v2564
    %v2566 = vpop.f32.mrb[0].mxu0
    %2567 = vdwg.mxu0
    %v2568 = vmax.f32 %v2565, 0.0
    %2569 = vst [vmem:[#allocation2 + $0x38] sm:$0xff] %v2568
    %v2570 = vld [vmem:[%s0 + $0x40] sm:$0xff]
    %v2571 = vld [vmem:[%s0 + $0x48] sm:$0xff]
    %v2572 = vld [vmem:[%s0 + $0x50] sm:$0xff]
    %v2573 = vld [vmem:[%s0 + $0x58] sm:$0xff]
    %v2574 = vld [vmem:[%s0 + $0x60] sm:$0xff]
    %v2575 = vld [vmem:[%s0 + $0x68] sm:$0xff]
    %v2576 = vld [vmem:[%s0 + $0x70] sm:$0xff]
    %2577 = vmatprep.subr.mxu0 0.0
    %2578 = vmatpush1.msra.mxu0 %v139
    %2579 = vmatprep.subr.mxu0 0.0
    %2580 = vmatpush1.msra.mxu0 %v140
    %2581 = vmatprep.subr.mxu0 0.0
    %2582 = vmatpush1.msra.mxu0 %v141
    %2583 = vmatprep.subr.mxu0 0.0
    %2584 = vmatpush1.msra.mxu0 %v142
    %2585 = vmatprep.subr.mxu0 0.0
    %2586 = vmatpush1.msra.mxu0 %v143
    %2587 = vmatprep.subr.mxu0 0.0
    %2588 = vmatpush1.msra.mxu0 %v144
    %2589 = vmatprep.subr.mxu0 0.0
    %2590 = vmatpush1.msra.mxu0 %v145
    %2591 = vmatprep.subr.mxu0 0.0
    %2592 = vmatpush1.msra.mxu0 %v146
    %2593 = vmatprep.subr.mxu0 0.0
    %2594 = vmatpush1.msra.mxu0 %v147
    %2595 = vmatprep.subr.mxu0 0.0
    %2596 = vmatpush1.msra.mxu0 %v148
    %2597 = vmatprep.subr.mxu0 0.0
    %2598 = vmatpush1.msra.mxu0 %v149
    %2599 = vmatprep.subr.mxu0 0.0
    %2600 = vmatpush1.msra.mxu0 %v150
    %2601 = vmatprep.subr.mxu0 0.0
    %2602 = vmatpush1.msra.mxu0 %v151
    %2603 = vmatprep.subr.mxu0 0.0
    %2604 = vmatpush1.msra.mxu0 %v152
    %2605 = vmatprep.subr.mxu0 0.0
    %2606 = vmatpush1.msra.mxu0 %v153
    %2607 = vmatprep.subr.mxu0 0.0
    %2608 = vmatpush1.msra.mxu0 %v154
    %2609 = vmatprep.subr.mxu0 0.0
    %2610 = vmatpush1.msra.mxu0 %v155
    %2611 = vmatprep.subr.mxu0 0.0
    %2612 = vmatpush1.msra.mxu0 %v156
    %2613 = vmatprep.subr.mxu0 0.0
    %2614 = vmatpush1.msra.mxu0 %v157
    %2615 = vmatprep.subr.mxu0 0.0
    %2616 = vmatpush1.msra.mxu0 %v158
    %2617 = vmatprep.subr.mxu0 0.0
    %2618 = vmatpush1.msra.mxu0 %v159
    %2619 = vmatprep.subr.mxu0 0.0
    %2620 = vmatpush1.msra.mxu0 %v160
    %2621 = vmatprep.subr.mxu0 0.0
    %2622 = vmatpush1.msra.mxu0 %v161
    %2623 = vmatprep.subr.mxu0 0.0
    %2624 = vmatpush1.msra.mxu0 %v162
    %2625 = vmatprep.subr.mxu0 0.0
    %2626 = vmatpush1.msra.mxu0 %v163
    %2627 = vmatprep.subr.mxu0 0.0
    %2628 = vmatpush1.msra.mxu0 %v164
    %2629 = vmatprep.subr.mxu0 0.0
    %2630 = vmatpush1.msra.mxu0 %v165
    %2631 = vmatprep.subr.mxu0 0.0
    %2632 = vmatpush1.msra.mxu0 %v166
    %2633 = vmatprep.subr.mxu0 0.0
    %2634 = vmatpush1.msra.mxu0 %v167
    %2635 = vmatprep.subr.mxu0 0.0
    %2636 = vmatpush1.msra.mxu0 %v168
    %2637 = vmatprep.subr.mxu0 0.0
    %2638 = vmatpush1.msra.mxu0 %v169
    %2639 = vmatprep.subr.mxu0 0.0
    %2640 = vmatpush1.msra.mxu0 %v170
    %2641 = vmatprep.mubr.f32.mxu0 %v2571
    %2642 = vmatmul.mubr.f32.gmra.mrb[0].mxu0 %v2570
    %v2643 = vpop.f32.mrb[0].mxu0
    %v2644 = vadd.f32 %v263, %v2643
    %v2645 = vpop.f32.mrb[0].mxu0
    %2646 = vdwg.mxu0
    %2647 = vmatprep.subr.mxu0 0.0
    %2648 = vmatpush1.msra.mxu0 %v171
    %2649 = vmatprep.subr.mxu0 0.0
    %2650 = vmatpush1.msra.mxu0 %v172
    %2651 = vmatprep.subr.mxu0 0.0
    %2652 = vmatpush1.msra.mxu0 %v173
    %2653 = vmatprep.subr.mxu0 0.0
    %2654 = vmatpush1.msra.mxu0 %v174
    %2655 = vmatprep.subr.mxu0 0.0
    %2656 = vmatpush1.msra.mxu0 %v175
    %2657 = vmatprep.subr.mxu0 0.0
    %2658 = vmatpush1.msra.mxu0 %v176
    %2659 = vmatprep.subr.mxu0 0.0
    %2660 = vmatpush1.msra.mxu0 %v177
    %2661 = vmatprep.subr.mxu0 0.0
    %2662 = vmatpush1.msra.mxu0 %v178
    %2663 = vmatprep.subr.mxu0 0.0
    %2664 = vmatpush1.msra.mxu0 %v179
    %2665 = vmatprep.subr.mxu0 0.0
    %2666 = vmatpush1.msra.mxu0 %v180
    %2667 = vmatprep.subr.mxu0 0.0
    %2668 = vmatpush1.msra.mxu0 %v181
    %2669 = vmatprep.subr.mxu0 0.0
    %2670 = vmatpush1.msra.mxu0 %v182
    %2671 = vmatprep.subr.mxu0 0.0
    %2672 = vmatpush1.msra.mxu0 %v183
    %2673 = vmatprep.subr.mxu0 0.0
    %2674 = vmatpush1.msra.mxu0 %v184
    %2675 = vmatprep.subr.mxu0 0.0
    %2676 = vmatpush1.msra.mxu0 %v185
    %2677 = vmatprep.subr.mxu0 0.0
    %2678 = vmatpush1.msra.mxu0 %v186
    %2679 = vmatprep.subr.mxu0 0.0
    %2680 = vmatpush1.msra.mxu0 %v187
    %2681 = vmatprep.subr.mxu0 0.0
    %2682 = vmatpush1.msra.mxu0 %v188
    %2683 = vmatprep.subr.mxu0 0.0
    %2684 = vmatpush1.msra.mxu0 %v189
    %2685 = vmatprep.subr.mxu0 0.0
    %2686 = vmatpush1.msra.mxu0 %v190
    %2687 = vmatprep.subr.mxu0 0.0
    %2688 = vmatpush1.msra.mxu0 %v191
    %2689 = vmatprep.subr.mxu0 0.0
    %2690 = vmatpush1.msra.mxu0 %v192
    %2691 = vmatprep.subr.mxu0 0.0
    %2692 = vmatpush1.msra.mxu0 %v193
    %2693 = vmatprep.subr.mxu0 0.0
    %2694 = vmatpush1.msra.mxu0 %v194
    %2695 = vmatprep.subr.mxu0 0.0
    %2696 = vmatpush1.msra.mxu0 %v195
    %2697 = vmatprep.subr.mxu0 0.0
    %2698 = vmatpush1.msra.mxu0 %v196
    %2699 = vmatprep.subr.mxu0 0.0
    %2700 = vmatpush1.msra.mxu0 %v197
    %2701 = vmatprep.subr.mxu0 0.0
    %2702 = vmatpush1.msra.mxu0 %v198
    %2703 = vmatprep.subr.mxu0 0.0
    %2704 = vmatpush1.msra.mxu0 %v199
    %2705 = vmatprep.subr.mxu0 0.0
    %2706 = vmatpush1.msra.mxu0 %v200
    %2707 = vmatprep.subr.mxu0 0.0
    %2708 = vmatpush1.msra.mxu0 %v201
    %2709 = vmatprep.subr.mxu0 0.0
    %2710 = vmatpush1.msra.mxu0 %v202
    %2711 = vmatprep.mubr.f32.mxu0 %v2573
    %2712 = vmatmul.mubr.f32.gmra.mrb[0].mxu0 %v2572
    %v2713 = vpop.f32.mrb[0].mxu0
    %v2714 = vadd.f32 %v2644, %v2713
    %v2715 = vpop.f32.mrb[0].mxu0
    %2716 = vdwg.mxu0
    %2717 = vmatprep.subr.mxu0 0.0
    %2718 = vmatpush1.msra.mxu0 %v203
    %2719 = vmatprep.subr.mxu0 0.0
    %2720 = vmatpush1.msra.mxu0 %v204
    %2721 = vmatprep.subr.mxu0 0.0
    %2722 = vmatpush1.msra.mxu0 %v205
    %2723 = vmatprep.subr.mxu0 0.0
    %2724 = vmatpush1.msra.mxu0 %v206
    %2725 = vmatprep.subr.mxu0 0.0
    %2726 = vmatpush1.msra.mxu0 %v207
    %2727 = vmatprep.subr.mxu0 0.0
    %2728 = vmatpush1.msra.mxu0 %v208
    %2729 = vmatprep.subr.mxu0 0.0
    %2730 = vmatpush1.msra.mxu0 %v209
    %2731 = vmatprep.subr.mxu0 0.0
    %2732 = vmatpush1.msra.mxu0 %v210
    %2733 = vmatprep.subr.mxu0 0.0
    %2734 = vmatpush1.msra.mxu0 %v211
    %2735 = vmatprep.subr.mxu0 0.0
    %2736 = vmatpush1.msra.mxu0 %v212
    %2737 = vmatprep.subr.mxu0 0.0
    %2738 = vmatpush1.msra.mxu0 %v213
    %2739 = vmatprep.subr.mxu0 0.0
    %2740 = vmatpush1.msra.mxu0 %v214
    %2741 = vmatprep.subr.mxu0 0.0
    %2742 = vmatpush1.msra.mxu0 %v215
    %2743 = vmatprep.subr.mxu0 0.0
    %2744 = vmatpush1.msra.mxu0 %v216
    %2745 = vmatprep.subr.mxu0 0.0
    %2746 = vmatpush1.msra.mxu0 %v217
    %2747 = vmatprep.subr.mxu0 0.0
    %2748 = vmatpush1.msra.mxu0 %v218
    %2749 = vmatprep.subr.mxu0 0.0
    %2750 = vmatpush1.msra.mxu0 %v219
    %2751 = vmatprep.subr.mxu0 0.0
    %2752 = vmatpush1.msra.mxu0 %v220
    %2753 = vmatprep.subr.mxu0 0.0
    %2754 = vmatpush1.msra.mxu0 %v221
    %2755 = vmatprep.subr.mxu0 0.0
    %2756 = vmatpush1.msra.mxu0 %v222
    %2757 = vmatprep.subr.mxu0 0.0
    %2758 = vmatpush1.msra.mxu0 %v223
    %2759 = vmatprep.subr.mxu0 0.0
    %2760 = vmatpush1.msra.mxu0 %v224
    %2761 = vmatprep.subr.mxu0 0.0
    %2762 = vmatpush1.msra.mxu0 %v225
    %2763 = vmatprep.subr.mxu0 0.0
    %2764 = vmatpush1.msra.mxu0 %v226
    %2765 = vmatprep.subr.mxu0 0.0
    %2766 = vmatpush1.msra.mxu0 %v227
    %2767 = vmatprep.subr.mxu0 0.0
    %2768 = vmatpush1.msra.mxu0 %v228
    %2769 = vmatprep.subr.mxu0 0.0
    %2770 = vmatpush1.msra.mxu0 %v229
    %2771 = vmatprep.subr.mxu0 0.0
    %2772 = vmatpush1.msra.mxu0 %v230
    %2773 = vmatprep.subr.mxu0 0.0
    %2774 = vmatpush1.msra.mxu0 %v231
    %2775 = vmatprep.subr.mxu0 0.0
    %2776 = vmatpush1.msra.mxu0 %v232
    %2777 = vmatprep.subr.mxu0 0.0
    %2778 = vmatpush1.msra.mxu0 %v233
    %2779 = vmatprep.subr.mxu0 0.0
    %2780 = vmatpush1.msra.mxu0 %v234
    %2781 = vmatprep.mubr.f32.mxu0 %v2575
    %2782 = vmatmul.mubr.f32.gmra.mrb[0].mxu0 %v2574
    %v2783 = vpop.f32.mrb[0].mxu0
    %v2784 = vadd.f32 %v2714, %v2783
    %v2785 = vpop.f32.mrb[0].mxu0
    %2786 = vdwg.mxu0
    %2787 = vmatprep.subr.mxu0 0.0
    %2788 = vmatpush1.msra.mxu0 %v235
    %2789 = vmatprep.subr.mxu0 0.0
    %2790 = vmatpush1.msra.mxu0 %v236
    %2791 = vmatprep.subr.mxu0 0.0
    %2792 = vmatpush1.msra.mxu0 %v237
    %2793 = vmatprep.subr.mxu0 0.0
    %2794 = vmatpush1.msra.mxu0 %v238
    %2795 = vmatprep.subr.mxu0 0.0
    %2796 = vmatpush1.msra.mxu0 %v239
    %2797 = vmatprep.subr.mxu0 0.0
    %2798 = vmatpush1.msra.mxu0 %v240
    %2799 = vmatprep.subr.mxu0 0.0
    %2800 = vmatpush1.msra.mxu0 %v241
    %2801 = vmatprep.subr.mxu0 0.0
    %2802 = vmatpush1.msra.mxu0 %v242
    %2803 = vmatprep.subr.mxu0 0.0
    %2804 = vmatpush1.msra.mxu0 %v243
    %2805 = vmatprep.subr.mxu0 0.0
    %2806 = vmatpush1.msra.mxu0 %v244
    %2807 = vmatprep.subr.mxu0 0.0
    %2808 = vmatpush1.msra.mxu0 %v245
    %2809 = vmatprep.subr.mxu0 0.0
    %2810 = vmatpush1.msra.mxu0 %v246
    %2811 = vmatprep.subr.mxu0 0.0
    %2812 = vmatpush1.msra.mxu0 %v247
    %2813 = vmatprep.subr.mxu0 0.0
    %2814 = vmatpush1.msra.mxu0 %v248
    %2815 = vmatprep.subr.mxu0 0.0
    %2816 = vmatpush1.msra.mxu0 %v249
    %2817 = vmatprep.subr.mxu0 0.0
    %2818 = vmatpush1.msra.mxu0 %v250
    %2819 = vmatprep.subr.mxu0 0.0
    %2820 = vmatpush1.msra.mxu0 0.0
    %2821 = vmatprep.subr.mxu0 0.0
    %2822 = vmatpush1.msra.mxu0 0.0
    %2823 = vmatprep.subr.mxu0 0.0
    %2824 = vmatpush1.msra.mxu0 0.0
    %2825 = vmatprep.subr.mxu0 0.0
    %2826 = vmatpush1.msra.mxu0 0.0
    %2827 = vmatprep.subr.mxu0 0.0
    %2828 = vmatpush1.msra.mxu0 0.0
    %2829 = vmatprep.subr.mxu0 0.0
    %2830 = vmatpush1.msra.mxu0 0.0
    %2831 = vmatprep.subr.mxu0 0.0
    %2832 = vmatpush1.msra.mxu0 0.0
    %2833 = vmatprep.subr.mxu0 0.0
    %2834 = vmatpush1.msra.mxu0 0.0
    %2835 = vmatprep.subr.mxu0 0.0
    %2836 = vmatpush1.msra.mxu0 0.0
    %2837 = vmatprep.subr.mxu0 0.0
    %2838 = vmatpush1.msra.mxu0 0.0
    %2839 = vmatprep.subr.mxu0 0.0
    %2840 = vmatpush1.msra.mxu0 0.0
    %2841 = vmatprep.subr.mxu0 0.0
    %2842 = vmatpush1.msra.mxu0 0.0
    %2843 = vmatprep.subr.mxu0 0.0
    %2844 = vmatpush1.msra.mxu0 0.0
    %2845 = vmatprep.subr.mxu0 0.0
    %2846 = vmatpush1.msra.mxu0 0.0
    %2847 = vmatprep.subr.mxu0 0.0
    %2848 = vmatpush1.msra.mxu0 0.0
    %2849 = vmatprep.subr.mxu0 0.0
    %2850 = vmatpush1.msra.mxu0 0.0
    %2851 = vmatprep.mubr.f32.mxu0 0.0
    %2852 = vmatmul.mubr.f32.gmra.mrb[0].mxu0 %v2576
    %v2853 = vpop.f32.mrb[0].mxu0
    %v2854 = vadd.f32 %v2784, %v2853
    %v2855 = vpop.f32.mrb[0].mxu0
    %2856 = vdwg.mxu0
    %v2857 = vmax.f32 %v2854, 0.0
    %2858 = vst [vmem:[#allocation2 + $0x40] sm:$0xff] %v2857
    %v2859 = vld [vmem:[%s0 + $0x48] sm:$0xff]
    %v2860 = vld [vmem:[%s0 + $0x50] sm:$0xff]
    %v2861 = vld [vmem:[%s0 + $0x58] sm:$0xff]
    %v2862 = vld [vmem:[%s0 + $0x60] sm:$0xff]
    %v2863 = vld [vmem:[%s0 + $0x68] sm:$0xff]
    %v2864 = vld [vmem:[%s0 + $0x70] sm:$0xff]
    %v2865 = vld [vmem:[%s0 + $0x78] sm:$0xff]
    %2866 = vmatprep.subr.mxu0 0.0
    %2867 = vmatpush1.msra.mxu0 %v139
    %2868 = vmatprep.subr.mxu0 0.0
    %2869 = vmatpush1.msra.mxu0 %v140
    %2870 = vmatprep.subr.mxu0 0.0
    %2871 = vmatpush1.msra.mxu0 %v141
    %2872 = vmatprep.subr.mxu0 0.0
    %2873 = vmatpush1.msra.mxu0 %v142
    %2874 = vmatprep.subr.mxu0 0.0
    %2875 = vmatpush1.msra.mxu0 %v143
    %2876 = vmatprep.subr.mxu0 0.0
    %2877 = vmatpush1.msra.mxu0 %v144
    %2878 = vmatprep.subr.mxu0 0.0
    %2879 = vmatpush1.msra.mxu0 %v145
    %2880 = vmatprep.subr.mxu0 0.0
    %2881 = vmatpush1.msra.mxu0 %v146
    %2882 = vmatprep.subr.mxu0 0.0
    %2883 = vmatpush1.msra.mxu0 %v147
    %2884 = vmatprep.subr.mxu0 0.0
    %2885 = vmatpush1.msra.mxu0 %v148
    %2886 = vmatprep.subr.mxu0 0.0
    %2887 = vmatpush1.msra.mxu0 %v149
    %2888 = vmatprep.subr.mxu0 0.0
    %2889 = vmatpush1.msra.mxu0 %v150
    %2890 = vmatprep.subr.mxu0 0.0
    %2891 = vmatpush1.msra.mxu0 %v151
    %2892 = vmatprep.subr.mxu0 0.0
    %2893 = vmatpush1.msra.mxu0 %v152
    %2894 = vmatprep.subr.mxu0 0.0
    %2895 = vmatpush1.msra.mxu0 %v153
    %2896 = vmatprep.subr.mxu0 0.0
    %2897 = vmatpush1.msra.mxu0 %v154
    %2898 = vmatprep.subr.mxu0 0.0
    %2899 = vmatpush1.msra.mxu0 %v155
    %2900 = vmatprep.subr.mxu0 0.0
    %2901 = vmatpush1.msra.mxu0 %v156
    %2902 = vmatprep.subr.mxu0 0.0
    %2903 = vmatpush1.msra.mxu0 %v157
    %2904 = vmatprep.subr.mxu0 0.0
    %2905 = vmatpush1.msra.mxu0 %v158
    %2906 = vmatprep.subr.mxu0 0.0
    %2907 = vmatpush1.msra.mxu0 %v159
    %2908 = vmatprep.subr.mxu0 0.0
    %2909 = vmatpush1.msra.mxu0 %v160
    %2910 = vmatprep.subr.mxu0 0.0
    %2911 = vmatpush1.msra.mxu0 %v161
    %2912 = vmatprep.subr.mxu0 0.0
    %2913 = vmatpush1.msra.mxu0 %v162
    %2914 = vmatprep.subr.mxu0 0.0
    %2915 = vmatpush1.msra.mxu0 %v163
    %2916 = vmatprep.subr.mxu0 0.0
    %2917 = vmatpush1.msra.mxu0 %v164
    %2918 = vmatprep.subr.mxu0 0.0
    %2919 = vmatpush1.msra.mxu0 %v165
    %2920 = vmatprep.subr.mxu0 0.0
    %2921 = vmatpush1.msra.mxu0 %v166
    %2922 = vmatprep.subr.mxu0 0.0
    %2923 = vmatpush1.msra.mxu0 %v167
    %2924 = vmatprep.subr.mxu0 0.0
    %2925 = vmatpush1.msra.mxu0 %v168
    %2926 = vmatprep.subr.mxu0 0.0
    %2927 = vmatpush1.msra.mxu0 %v169
    %2928 = vmatprep.subr.mxu0 0.0
    %2929 = vmatpush1.msra.mxu0 %v170
    %2930 = vmatprep.mubr.f32.mxu0 %v2860
    %2931 = vmatmul.mubr.f32.gmra.mrb[0].mxu0 %v2859
    %v2932 = vpop.f32.mrb[0].mxu0
    %v2933 = vadd.f32 %v263, %v2932
    %v2934 = vpop.f32.mrb[0].mxu0
    %2935 = vdwg.mxu0
    %2936 = vmatprep.subr.mxu0 0.0
    %2937 = vmatpush1.msra.mxu0 %v171
    %2938 = vmatprep.subr.mxu0 0.0
    %2939 = vmatpush1.msra.mxu0 %v172
    %2940 = vmatprep.subr.mxu0 0.0
    %2941 = vmatpush1.msra.mxu0 %v173
    %2942 = vmatprep.subr.mxu0 0.0
    %2943 = vmatpush1.msra.mxu0 %v174
    %2944 = vmatprep.subr.mxu0 0.0
    %2945 = vmatpush1.msra.mxu0 %v175
    %2946 = vmatprep.subr.mxu0 0.0
    %2947 = vmatpush1.msra.mxu0 %v176
    %2948 = vmatprep.subr.mxu0 0.0
    %2949 = vmatpush1.msra.mxu0 %v177
    %2950 = vmatprep.subr.mxu0 0.0
    %2951 = vmatpush1.msra.mxu0 %v178
    %2952 = vmatprep.subr.mxu0 0.0
    %2953 = vmatpush1.msra.mxu0 %v179
    %2954 = vmatprep.subr.mxu0 0.0
    %2955 = vmatpush1.msra.mxu0 %v180
    %2956 = vmatprep.subr.mxu0 0.0
    %2957 = vmatpush1.msra.mxu0 %v181
    %2958 = vmatprep.subr.mxu0 0.0
    %2959 = vmatpush1.msra.mxu0 %v182
    %2960 = vmatprep.subr.mxu0 0.0
    %2961 = vmatpush1.msra.mxu0 %v183
    %2962 = vmatprep.subr.mxu0 0.0
    %2963 = vmatpush1.msra.mxu0 %v184
    %2964 = vmatprep.subr.mxu0 0.0
    %2965 = vmatpush1.msra.mxu0 %v185
    %2966 = vmatprep.subr.mxu0 0.0
    %2967 = vmatpush1.msra.mxu0 %v186
    %2968 = vmatprep.subr.mxu0 0.0
    %2969 = vmatpush1.msra.mxu0 %v187
    %2970 = vmatprep.subr.mxu0 0.0
    %2971 = vmatpush1.msra.mxu0 %v188
    %2972 = vmatprep.subr.mxu0 0.0
    %2973 = vmatpush1.msra.mxu0 %v189
    %2974 = vmatprep.subr.mxu0 0.0
    %2975 = vmatpush1.msra.mxu0 %v190
    %2976 = vmatprep.subr.mxu0 0.0
    %2977 = vmatpush1.msra.mxu0 %v191
    %2978 = vmatprep.subr.mxu0 0.0
    %2979 = vmatpush1.msra.mxu0 %v192
    %2980 = vmatprep.subr.mxu0 0.0
    %2981 = vmatpush1.msra.mxu0 %v193
    %2982 = vmatprep.subr.mxu0 0.0
    %2983 = vmatpush1.msra.mxu0 %v194
    %2984 = vmatprep.subr.mxu0 0.0
    %2985 = vmatpush1.msra.mxu0 %v195
    %2986 = vmatprep.subr.mxu0 0.0
    %2987 = vmatpush1.msra.mxu0 %v196
    %2988 = vmatprep.subr.mxu0 0.0
    %2989 = vmatpush1.msra.mxu0 %v197
    %2990 = vmatprep.subr.mxu0 0.0
    %2991 = vmatpush1.msra.mxu0 %v198
    %2992 = vmatprep.subr.mxu0 0.0
    %2993 = vmatpush1.msra.mxu0 %v199
    %2994 = vmatprep.subr.mxu0 0.0
    %2995 = vmatpush1.msra.mxu0 %v200
    %2996 = vmatprep.subr.mxu0 0.0
    %2997 = vmatpush1.msra.mxu0 %v201
    %2998 = vmatprep.subr.mxu0 0.0
    %2999 = vmatpush1.msra.mxu0 %v202
    %3000 = vmatprep.mubr.f32.mxu0 %v2862
    %3001 = vmatmul.mubr.f32.gmra.mrb[0].mxu0 %v2861
    %v3002 = vpop.f32.mrb[0].mxu0
    %v3003 = vadd.f32 %v2933, %v3002
    %v3004 = vpop.f32.mrb[0].mxu0
    %3005 = vdwg.mxu0
    %3006 = vmatprep.subr.mxu0 0.0
    %3007 = vmatpush1.msra.mxu0 %v203
    %3008 = vmatprep.subr.mxu0 0.0
    %3009 = vmatpush1.msra.mxu0 %v204
    %3010 = vmatprep.subr.mxu0 0.0
    %3011 = vmatpush1.msra.mxu0 %v205
    %3012 = vmatprep.subr.mxu0 0.0
    %3013 = vmatpush1.msra.mxu0 %v206
    %3014 = vmatprep.subr.mxu0 0.0
    %3015 = vmatpush1.msra.mxu0 %v207
    %3016 = vmatprep.subr.mxu0 0.0
    %3017 = vmatpush1.msra.mxu0 %v208
    %3018 = vmatprep.subr.mxu0 0.0
    %3019 = vmatpush1.msra.mxu0 %v209
    %3020 = vmatprep.subr.mxu0 0.0
    %3021 = vmatpush1.msra.mxu0 %v210
    %3022 = vmatprep.subr.mxu0 0.0
    %3023 = vmatpush1.msra.mxu0 %v211
    %3024 = vmatprep.subr.mxu0 0.0
    %3025 = vmatpush1.msra.mxu0 %v212
    %3026 = vmatprep.subr.mxu0 0.0
    %3027 = vmatpush1.msra.mxu0 %v213
    %3028 = vmatprep.subr.mxu0 0.0
    %3029 = vmatpush1.msra.mxu0 %v214
    %3030 = vmatprep.subr.mxu0 0.0
    %3031 = vmatpush1.msra.mxu0 %v215
    %3032 = vmatprep.subr.mxu0 0.0
    %3033 = vmatpush1.msra.mxu0 %v216
    %3034 = vmatprep.subr.mxu0 0.0
    %3035 = vmatpush1.msra.mxu0 %v217
    %3036 = vmatprep.subr.mxu0 0.0
    %3037 = vmatpush1.msra.mxu0 %v218
    %3038 = vmatprep.subr.mxu0 0.0
    %3039 = vmatpush1.msra.mxu0 %v219
    %3040 = vmatprep.subr.mxu0 0.0
    %3041 = vmatpush1.msra.mxu0 %v220
    %3042 = vmatprep.subr.mxu0 0.0
    %3043 = vmatpush1.msra.mxu0 %v221
    %3044 = vmatprep.subr.mxu0 0.0
    %3045 = vmatpush1.msra.mxu0 %v222
    %3046 = vmatprep.subr.mxu0 0.0
    %3047 = vmatpush1.msra.mxu0 %v223
    %3048 = vmatprep.subr.mxu0 0.0
    %3049 = vmatpush1.msra.mxu0 %v224
    %3050 = vmatprep.subr.mxu0 0.0
    %3051 = vmatpush1.msra.mxu0 %v225
    %3052 = vmatprep.subr.mxu0 0.0
    %3053 = vmatpush1.msra.mxu0 %v226
    %3054 = vmatprep.subr.mxu0 0.0
    %3055 = vmatpush1.msra.mxu0 %v227
    %3056 = vmatprep.subr.mxu0 0.0
    %3057 = vmatpush1.msra.mxu0 %v228
    %3058 = vmatprep.subr.mxu0 0.0
    %3059 = vmatpush1.msra.mxu0 %v229
    %3060 = vmatprep.subr.mxu0 0.0
    %3061 = vmatpush1.msra.mxu0 %v230
    %3062 = vmatprep.subr.mxu0 0.0
    %3063 = vmatpush1.msra.mxu0 %v231
    %3064 = vmatprep.subr.mxu0 0.0
    %3065 = vmatpush1.msra.mxu0 %v232
    %3066 = vmatprep.subr.mxu0 0.0
    %3067 = vmatpush1.msra.mxu0 %v233
    %3068 = vmatprep.subr.mxu0 0.0
    %3069 = vmatpush1.msra.mxu0 %v234
    %3070 = vmatprep.mubr.f32.mxu0 %v2864
    %3071 = vmatmul.mubr.f32.gmra.mrb[0].mxu0 %v2863
    %v3072 = vpop.f32.mrb[0].mxu0
    %v3073 = vadd.f32 %v3003, %v3072
    %v3074 = vpop.f32.mrb[0].mxu0
    %3075 = vdwg.mxu0
    %3076 = vmatprep.subr.mxu0 0.0
    %3077 = vmatpush1.msra.mxu0 %v235
    %3078 = vmatprep.subr.mxu0 0.0
    %3079 = vmatpush1.msra.mxu0 %v236
    %3080 = vmatprep.subr.mxu0 0.0
    %3081 = vmatpush1.msra.mxu0 %v237
    %3082 = vmatprep.subr.mxu0 0.0
    %3083 = vmatpush1.msra.mxu0 %v238
    %3084 = vmatprep.subr.mxu0 0.0
    %3085 = vmatpush1.msra.mxu0 %v239
    %3086 = vmatprep.subr.mxu0 0.0
    %3087 = vmatpush1.msra.mxu0 %v240
    %3088 = vmatprep.subr.mxu0 0.0
    %3089 = vmatpush1.msra.mxu0 %v241
    %3090 = vmatprep.subr.mxu0 0.0
    %3091 = vmatpush1.msra.mxu0 %v242
    %3092 = vmatprep.subr.mxu0 0.0
    %3093 = vmatpush1.msra.mxu0 %v243
    %3094 = vmatprep.subr.mxu0 0.0
    %3095 = vmatpush1.msra.mxu0 %v244
    %3096 = vmatprep.subr.mxu0 0.0
    %3097 = vmatpush1.msra.mxu0 %v245
    %3098 = vmatprep.subr.mxu0 0.0
    %3099 = vmatpush1.msra.mxu0 %v246
    %3100 = vmatprep.subr.mxu0 0.0
    %3101 = vmatpush1.msra.mxu0 %v247
    %3102 = vmatprep.subr.mxu0 0.0
    %3103 = vmatpush1.msra.mxu0 %v248
    %3104 = vmatprep.subr.mxu0 0.0
    %3105 = vmatpush1.msra.mxu0 %v249
    %3106 = vmatprep.subr.mxu0 0.0
    %3107 = vmatpush1.msra.mxu0 %v250
    %3108 = vmatprep.subr.mxu0 0.0
    %3109 = vmatpush1.msra.mxu0 0.0
    %3110 = vmatprep.subr.mxu0 0.0
    %3111 = vmatpush1.msra.mxu0 0.0
    %3112 = vmatprep.subr.mxu0 0.0
    %3113 = vmatpush1.msra.mxu0 0.0
    %3114 = vmatprep.subr.mxu0 0.0
    %3115 = vmatpush1.msra.mxu0 0.0
    %3116 = vmatprep.subr.mxu0 0.0
    %3117 = vmatpush1.msra.mxu0 0.0
    %3118 = vmatprep.subr.mxu0 0.0
    %3119 = vmatpush1.msra.mxu0 0.0
    %3120 = vmatprep.subr.mxu0 0.0
    %3121 = vmatpush1.msra.mxu0 0.0
    %3122 = vmatprep.subr.mxu0 0.0
    %3123 = vmatpush1.msra.mxu0 0.0
    %3124 = vmatprep.subr.mxu0 0.0
    %3125 = vmatpush1.msra.mxu0 0.0
    %3126 = vmatprep.subr.mxu0 0.0
    %3127 = vmatpush1.msra.mxu0 0.0
    %3128 = vmatprep.subr.mxu0 0.0
    %3129 = vmatpush1.msra.mxu0 0.0
    %3130 = vmatprep.subr.mxu0 0.0
    %3131 = vmatpush1.msra.mxu0 0.0
    %3132 = vmatprep.subr.mxu0 0.0
    %3133 = vmatpush1.msra.mxu0 0.0
    %3134 = vmatprep.subr.mxu0 0.0
    %3135 = vmatpush1.msra.mxu0 0.0
    %3136 = vmatprep.subr.mxu0 0.0
    %3137 = vmatpush1.msra.mxu0 0.0
    %3138 = vmatprep.subr.mxu0 0.0
    %3139 = vmatpush1.msra.mxu0 0.0
    %3140 = vmatprep.mubr.f32.mxu0 0.0
    %3141 = vmatmul.mubr.f32.gmra.mrb[0].mxu0 %v2865
    %v3142 = vpop.f32.mrb[0].mxu0
    %v3143 = vadd.f32 %v3073, %v3142
    %v3144 = vpop.f32.mrb[0].mxu0
    %3145 = vdwg.mxu0
    %v3146 = vmax.f32 %v3143, 0.0
    %3147 = vst [vmem:[#allocation2 + $0x48] sm:$0xff] %v3146
    %v3148 = vld [vmem:[%s0 + $0x50] sm:$0xff]
    %v3149 = vld [vmem:[%s0 + $0x58] sm:$0xff]
    %v3150 = vld [vmem:[%s0 + $0x60] sm:$0xff]
    %v3151 = vld [vmem:[%s0 + $0x68] sm:$0xff]
    %v3152 = vld [vmem:[%s0 + $0x70] sm:$0xff]
    %v3153 = vld [vmem:[%s0 + $0x78] sm:$0xff]
    %v3154 = vld [vmem:[%s0 + $0x80] sm:$0xff]
    %3155 = vmatprep.subr.mxu0 0.0
    %3156 = vmatpush1.msra.mxu0 %v139
    %3157 = vmatprep.subr.mxu0 0.0
    %3158 = vmatpush1.msra.mxu0 %v140
    %3159 = vmatprep.subr.mxu0 0.0
    %3160 = vmatpush1.msra.mxu0 %v141
    %3161 = vmatprep.subr.mxu0 0.0
    %3162 = vmatpush1.msra.mxu0 %v142
    %3163 = vmatprep.subr.mxu0 0.0
    %3164 = vmatpush1.msra.mxu0 %v143
    %3165 = vmatprep.subr.mxu0 0.0
    %3166 = vmatpush1.msra.mxu0 %v144
    %3167 = vmatprep.subr.mxu0 0.0
    %3168 = vmatpush1.msra.mxu0 %v145
    %3169 = vmatprep.subr.mxu0 0.0
    %3170 = vmatpush1.msra.mxu0 %v146
    %3171 = vmatprep.subr.mxu0 0.0
    %3172 = vmatpush1.msra.mxu0 %v147
    %3173 = vmatprep.subr.mxu0 0.0
    %3174 = vmatpush1.msra.mxu0 %v148
    %3175 = vmatprep.subr.mxu0 0.0
    %3176 = vmatpush1.msra.mxu0 %v149
    %3177 = vmatprep.subr.mxu0 0.0
    %3178 = vmatpush1.msra.mxu0 %v150
    %3179 = vmatprep.subr.mxu0 0.0
    %3180 = vmatpush1.msra.mxu0 %v151
    %3181 = vmatprep.subr.mxu0 0.0
    %3182 = vmatpush1.msra.mxu0 %v152
    %3183 = vmatprep.subr.mxu0 0.0
    %3184 = vmatpush1.msra.mxu0 %v153
    %3185 = vmatprep.subr.mxu0 0.0
    %3186 = vmatpush1.msra.mxu0 %v154
    %3187 = vmatprep.subr.mxu0 0.0
    %3188 = vmatpush1.msra.mxu0 %v155
    %3189 = vmatprep.subr.mxu0 0.0
    %3190 = vmatpush1.msra.mxu0 %v156
    %3191 = vmatprep.subr.mxu0 0.0
    %3192 = vmatpush1.msra.mxu0 %v157
    %3193 = vmatprep.subr.mxu0 0.0
    %3194 = vmatpush1.msra.mxu0 %v158
    %3195 = vmatprep.subr.mxu0 0.0
    %3196 = vmatpush1.msra.mxu0 %v159
    %3197 = vmatprep.subr.mxu0 0.0
    %3198 = vmatpush1.msra.mxu0 %v160
    %3199 = vmatprep.subr.mxu0 0.0
    %3200 = vmatpush1.msra.mxu0 %v161
    %3201 = vmatprep.subr.mxu0 0.0
    %3202 = vmatpush1.msra.mxu0 %v162
    %3203 = vmatprep.subr.mxu0 0.0
    %3204 = vmatpush1.msra.mxu0 %v163
    %3205 = vmatprep.subr.mxu0 0.0
    %3206 = vmatpush1.msra.mxu0 %v164
    %3207 = vmatprep.subr.mxu0 0.0
    %3208 = vmatpush1.msra.mxu0 %v165
    %3209 = vmatprep.subr.mxu0 0.0
    %3210 = vmatpush1.msra.mxu0 %v166
    %3211 = vmatprep.subr.mxu0 0.0
    %3212 = vmatpush1.msra.mxu0 %v167
    %3213 = vmatprep.subr.mxu0 0.0
    %3214 = vmatpush1.msra.mxu0 %v168
    %3215 = vmatprep.subr.mxu0 0.0
    %3216 = vmatpush1.msra.mxu0 %v169
    %3217 = vmatprep.subr.mxu0 0.0
    %3218 = vmatpush1.msra.mxu0 %v170
    %3219 = vmatprep.mubr.f32.mxu0 %v3149
    %3220 = vmatmul.mubr.f32.gmra.mrb[0].mxu0 %v3148
    %v3221 = vpop.f32.mrb[0].mxu0
    %v3222 = vadd.f32 %v263, %v3221
    %v3223 = vpop.f32.mrb[0].mxu0
    %3224 = vdwg.mxu0
    %3225 = vmatprep.subr.mxu0 0.0
    %3226 = vmatpush1.msra.mxu0 %v171
    %3227 = vmatprep.subr.mxu0 0.0
    %3228 = vmatpush1.msra.mxu0 %v172
    %3229 = vmatprep.subr.mxu0 0.0
    %3230 = vmatpush1.msra.mxu0 %v173
    %3231 = vmatprep.subr.mxu0 0.0
    %3232 = vmatpush1.msra.mxu0 %v174
    %3233 = vmatprep.subr.mxu0 0.0
    %3234 = vmatpush1.msra.mxu0 %v175
    %3235 = vmatprep.subr.mxu0 0.0
    %3236 = vmatpush1.msra.mxu0 %v176
    %3237 = vmatprep.subr.mxu0 0.0
    %3238 = vmatpush1.msra.mxu0 %v177
    %3239 = vmatprep.subr.mxu0 0.0
    %3240 = vmatpush1.msra.mxu0 %v178
    %3241 = vmatprep.subr.mxu0 0.0
    %3242 = vmatpush1.msra.mxu0 %v179
    %3243 = vmatprep.subr.mxu0 0.0
    %3244 = vmatpush1.msra.mxu0 %v180
    %3245 = vmatprep.subr.mxu0 0.0
    %3246 = vmatpush1.msra.mxu0 %v181
    %3247 = vmatprep.subr.mxu0 0.0
    %3248 = vmatpush1.msra.mxu0 %v182
    %3249 = vmatprep.subr.mxu0 0.0
    %3250 = vmatpush1.msra.mxu0 %v183
    %3251 = vmatprep.subr.mxu0 0.0
    %3252 = vmatpush1.msra.mxu0 %v184
    %3253 = vmatprep.subr.mxu0 0.0
    %3254 = vmatpush1.msra.mxu0 %v185
    %3255 = vmatprep.subr.mxu0 0.0
    %3256 = vmatpush1.msra.mxu0 %v186
    %3257 = vmatprep.subr.mxu0 0.0
    %3258 = vmatpush1.msra.mxu0 %v187
    %3259 = vmatprep.subr.mxu0 0.0
    %3260 = vmatpush1.msra.mxu0 %v188
    %3261 = vmatprep.subr.mxu0 0.0
    %3262 = vmatpush1.msra.mxu0 %v189
    %3263 = vmatprep.subr.mxu0 0.0
    %3264 = vmatpush1.msra.mxu0 %v190
    %3265 = vmatprep.subr.mxu0 0.0
    %3266 = vmatpush1.msra.mxu0 %v191
    %3267 = vmatprep.subr.mxu0 0.0
    %3268 = vmatpush1.msra.mxu0 %v192
    %3269 = vmatprep.subr.mxu0 0.0
    %3270 = vmatpush1.msra.mxu0 %v193
    %3271 = vmatprep.subr.mxu0 0.0
    %3272 = vmatpush1.msra.mxu0 %v194
    %3273 = vmatprep.subr.mxu0 0.0
    %3274 = vmatpush1.msra.mxu0 %v195
    %3275 = vmatprep.subr.mxu0 0.0
    %3276 = vmatpush1.msra.mxu0 %v196
    %3277 = vmatprep.subr.mxu0 0.0
    %3278 = vmatpush1.msra.mxu0 %v197
    %3279 = vmatprep.subr.mxu0 0.0
    %3280 = vmatpush1.msra.mxu0 %v198
    %3281 = vmatprep.subr.mxu0 0.0
    %3282 = vmatpush1.msra.mxu0 %v199
    %3283 = vmatprep.subr.mxu0 0.0
    %3284 = vmatpush1.msra.mxu0 %v200
    %3285 = vmatprep.subr.mxu0 0.0
    %3286 = vmatpush1.msra.mxu0 %v201
    %3287 = vmatprep.subr.mxu0 0.0
    %3288 = vmatpush1.msra.mxu0 %v202
    %3289 = vmatprep.mubr.f32.mxu0 %v3151
    %3290 = vmatmul.mubr.f32.gmra.mrb[0].mxu0 %v3150
    %v3291 = vpop.f32.mrb[0].mxu0
    %v3292 = vadd.f32 %v3222, %v3291
    %v3293 = vpop.f32.mrb[0].mxu0
    %3294 = vdwg.mxu0
    %3295 = vmatprep.subr.mxu0 0.0
    %3296 = vmatpush1.msra.mxu0 %v203
    %3297 = vmatprep.subr.mxu0 0.0
    %3298 = vmatpush1.msra.mxu0 %v204
    %3299 = vmatprep.subr.mxu0 0.0
    %3300 = vmatpush1.msra.mxu0 %v205
    %3301 = vmatprep.subr.mxu0 0.0
    %3302 = vmatpush1.msra.mxu0 %v206
    %3303 = vmatprep.subr.mxu0 0.0
    %3304 = vmatpush1.msra.mxu0 %v207
    %3305 = vmatprep.subr.mxu0 0.0
    %3306 = vmatpush1.msra.mxu0 %v208
    %3307 = vmatprep.subr.mxu0 0.0
    %3308 = vmatpush1.msra.mxu0 %v209
    %3309 = vmatprep.subr.mxu0 0.0
    %3310 = vmatpush1.msra.mxu0 %v210
    %3311 = vmatprep.subr.mxu0 0.0
    %3312 = vmatpush1.msra.mxu0 %v211
    %3313 = vmatprep.subr.mxu0 0.0
    %3314 = vmatpush1.msra.mxu0 %v212
    %3315 = vmatprep.subr.mxu0 0.0
    %3316 = vmatpush1.msra.mxu0 %v213
    %3317 = vmatprep.subr.mxu0 0.0
    %3318 = vmatpush1.msra.mxu0 %v214
    %3319 = vmatprep.subr.mxu0 0.0
    %3320 = vmatpush1.msra.mxu0 %v215
    %3321 = vmatprep.subr.mxu0 0.0
    %3322 = vmatpush1.msra.mxu0 %v216
    %3323 = vmatprep.subr.mxu0 0.0
    %3324 = vmatpush1.msra.mxu0 %v217
    %3325 = vmatprep.subr.mxu0 0.0
    %3326 = vmatpush1.msra.mxu0 %v218
    %3327 = vmatprep.subr.mxu0 0.0
    %3328 = vmatpush1.msra.mxu0 %v219
    %3329 = vmatprep.subr.mxu0 0.0
    %3330 = vmatpush1.msra.mxu0 %v220
    %3331 = vmatprep.subr.mxu0 0.0
    %3332 = vmatpush1.msra.mxu0 %v221
    %3333 = vmatprep.subr.mxu0 0.0
    %3334 = vmatpush1.msra.mxu0 %v222
    %3335 = vmatprep.subr.mxu0 0.0
    %3336 = vmatpush1.msra.mxu0 %v223
    %3337 = vmatprep.subr.mxu0 0.0
    %3338 = vmatpush1.msra.mxu0 %v224
    %3339 = vmatprep.subr.mxu0 0.0
    %3340 = vmatpush1.msra.mxu0 %v225
    %3341 = vmatprep.subr.mxu0 0.0
    %3342 = vmatpush1.msra.mxu0 %v226
    %3343 = vmatprep.subr.mxu0 0.0
    %3344 = vmatpush1.msra.mxu0 %v227
    %3345 = vmatprep.subr.mxu0 0.0
    %3346 = vmatpush1.msra.mxu0 %v228
    %3347 = vmatprep.subr.mxu0 0.0
    %3348 = vmatpush1.msra.mxu0 %v229
    %3349 = vmatprep.subr.mxu0 0.0
    %3350 = vmatpush1.msra.mxu0 %v230
    %3351 = vmatprep.subr.mxu0 0.0
    %3352 = vmatpush1.msra.mxu0 %v231
    %3353 = vmatprep.subr.mxu0 0.0
    %3354 = vmatpush1.msra.mxu0 %v232
    %3355 = vmatprep.subr.mxu0 0.0
    %3356 = vmatpush1.msra.mxu0 %v233
    %3357 = vmatprep.subr.mxu0 0.0
    %3358 = vmatpush1.msra.mxu0 %v234
    %3359 = vmatprep.mubr.f32.mxu0 %v3153
    %3360 = vmatmul.mubr.f32.gmra.mrb[0].mxu0 %v3152
    %v3361 = vpop.f32.mrb[0].mxu0
    %v3362 = vadd.f32 %v3292, %v3361
    %v3363 = vpop.f32.mrb[0].mxu0
    %3364 = vdwg.mxu0
    %3365 = vmatprep.subr.mxu0 0.0
    %3366 = vmatpush1.msra.mxu0 %v235
    %3367 = vmatprep.subr.mxu0 0.0
    %3368 = vmatpush1.msra.mxu0 %v236
    %3369 = vmatprep.subr.mxu0 0.0
    %3370 = vmatpush1.msra.mxu0 %v237
    %3371 = vmatprep.subr.mxu0 0.0
    %3372 = vmatpush1.msra.mxu0 %v238
    %3373 = vmatprep.subr.mxu0 0.0
    %3374 = vmatpush1.msra.mxu0 %v239
    %3375 = vmatprep.subr.mxu0 0.0
    %3376 = vmatpush1.msra.mxu0 %v240
    %3377 = vmatprep.subr.mxu0 0.0
    %3378 = vmatpush1.msra.mxu0 %v241
    %3379 = vmatprep.subr.mxu0 0.0
    %3380 = vmatpush1.msra.mxu0 %v242
    %3381 = vmatprep.subr.mxu0 0.0
    %3382 = vmatpush1.msra.mxu0 %v243
    %3383 = vmatprep.subr.mxu0 0.0
    %3384 = vmatpush1.msra.mxu0 %v244
    %3385 = vmatprep.subr.mxu0 0.0
    %3386 = vmatpush1.msra.mxu0 %v245
    %3387 = vmatprep.subr.mxu0 0.0
    %3388 = vmatpush1.msra.mxu0 %v246
    %3389 = vmatprep.subr.mxu0 0.0
    %3390 = vmatpush1.msra.mxu0 %v247
    %3391 = vmatprep.subr.mxu0 0.0
    %3392 = vmatpush1.msra.mxu0 %v248
    %3393 = vmatprep.subr.mxu0 0.0
    %3394 = vmatpush1.msra.mxu0 %v249
    %3395 = vmatprep.subr.mxu0 0.0
    %3396 = vmatpush1.msra.mxu0 %v250
    %3397 = vmatprep.subr.mxu0 0.0
    %3398 = vmatpush1.msra.mxu0 0.0
    %3399 = vmatprep.subr.mxu0 0.0
    %3400 = vmatpush1.msra.mxu0 0.0
    %3401 = vmatprep.subr.mxu0 0.0
    %3402 = vmatpush1.msra.mxu0 0.0
    %3403 = vmatprep.subr.mxu0 0.0
    %3404 = vmatpush1.msra.mxu0 0.0
    %3405 = vmatprep.subr.mxu0 0.0
    %3406 = vmatpush1.msra.mxu0 0.0
    %3407 = vmatprep.subr.mxu0 0.0
    %3408 = vmatpush1.msra.mxu0 0.0
    %3409 = vmatprep.subr.mxu0 0.0
    %3410 = vmatpush1.msra.mxu0 0.0
    %3411 = vmatprep.subr.mxu0 0.0
    %3412 = vmatpush1.msra.mxu0 0.0
    %3413 = vmatprep.subr.mxu0 0.0
    %3414 = vmatpush1.msra.mxu0 0.0
    %3415 = vmatprep.subr.mxu0 0.0
    %3416 = vmatpush1.msra.mxu0 0.0
    %3417 = vmatprep.subr.mxu0 0.0
    %3418 = vmatpush1.msra.mxu0 0.0
    %3419 = vmatprep.subr.mxu0 0.0
    %3420 = vmatpush1.msra.mxu0 0.0
    %3421 = vmatprep.subr.mxu0 0.0
    %3422 = vmatpush1.msra.mxu0 0.0
    %3423 = vmatprep.subr.mxu0 0.0
    %3424 = vmatpush1.msra.mxu0 0.0
    %3425 = vmatprep.subr.mxu0 0.0
    %3426 = vmatpush1.msra.mxu0 0.0
    %3427 = vmatprep.subr.mxu0 0.0
    %3428 = vmatpush1.msra.mxu0 0.0
    %3429 = vmatprep.mubr.f32.mxu0 0.0
    %3430 = vmatmul.mubr.f32.gmra.mrb[0].mxu0 %v3154
    %v3431 = vpop.f32.mrb[0].mxu0
    %v3432 = vadd.f32 %v3362, %v3431
    %v3433 = vpop.f32.mrb[0].mxu0
    %3434 = vdwg.mxu0
    %v3435 = vmax.f32 %v3432, 0.0
    %3436 = vst [vmem:[#allocation2 + $0x50] sm:$0xff] %v3435
    %v3437 = vld [vmem:[%s0 + $0x58] sm:$0xff]
    %v3438 = vld [vmem:[%s0 + $0x60] sm:$0xff]
    %v3439 = vld [vmem:[%s0 + $0x68] sm:$0xff]
    %v3440 = vld [vmem:[%s0 + $0x70] sm:$0xff]
    %v3441 = vld [vmem:[%s0 + $0x78] sm:$0xff]
    %v3442 = vld [vmem:[%s0 + $0x80] sm:$0xff]
    %v3443 = vld [vmem:[%s0 + $0x88] sm:$0xff]
    %3444 = vmatprep.subr.mxu0 0.0
    %3445 = vmatpush1.msra.mxu0 %v139
    %3446 = vmatprep.subr.mxu0 0.0
    %3447 = vmatpush1.msra.mxu0 %v140
    %3448 = vmatprep.subr.mxu0 0.0
    %3449 = vmatpush1.msra.mxu0 %v141
    %3450 = vmatprep.subr.mxu0 0.0
    %3451 = vmatpush1.msra.mxu0 %v142
    %3452 = vmatprep.subr.mxu0 0.0
    %3453 = vmatpush1.msra.mxu0 %v143
    %3454 = vmatprep.subr.mxu0 0.0
    %3455 = vmatpush1.msra.mxu0 %v144
    %3456 = vmatprep.subr.mxu0 0.0
    %3457 = vmatpush1.msra.mxu0 %v145
    %3458 = vmatprep.subr.mxu0 0.0
    %3459 = vmatpush1.msra.mxu0 %v146
    %3460 = vmatprep.subr.mxu0 0.0
    %3461 = vmatpush1.msra.mxu0 %v147
    %3462 = vmatprep.subr.mxu0 0.0
    %3463 = vmatpush1.msra.mxu0 %v148
    %3464 = vmatprep.subr.mxu0 0.0
    %3465 = vmatpush1.msra.mxu0 %v149
    %3466 = vmatprep.subr.mxu0 0.0
    %3467 = vmatpush1.msra.mxu0 %v150
    %3468 = vmatprep.subr.mxu0 0.0
    %3469 = vmatpush1.msra.mxu0 %v151
    %3470 = vmatprep.subr.mxu0 0.0
    %3471 = vmatpush1.msra.mxu0 %v152
    %3472 = vmatprep.subr.mxu0 0.0
    %3473 = vmatpush1.msra.mxu0 %v153
    %3474 = vmatprep.subr.mxu0 0.0
    %3475 = vmatpush1.msra.mxu0 %v154
    %3476 = vmatprep.subr.mxu0 0.0
    %3477 = vmatpush1.msra.mxu0 %v155
    %3478 = vmatprep.subr.mxu0 0.0
    %3479 = vmatpush1.msra.mxu0 %v156
    %3480 = vmatprep.subr.mxu0 0.0
    %3481 = vmatpush1.msra.mxu0 %v157
    %3482 = vmatprep.subr.mxu0 0.0
    %3483 = vmatpush1.msra.mxu0 %v158
    %3484 = vmatprep.subr.mxu0 0.0
    %3485 = vmatpush1.msra.mxu0 %v159
    %3486 = vmatprep.subr.mxu0 0.0
    %3487 = vmatpush1.msra.mxu0 %v160
    %3488 = vmatprep.subr.mxu0 0.0
    %3489 = vmatpush1.msra.mxu0 %v161
    %3490 = vmatprep.subr.mxu0 0.0
    %3491 = vmatpush1.msra.mxu0 %v162
    %3492 = vmatprep.subr.mxu0 0.0
    %3493 = vmatpush1.msra.mxu0 %v163
    %3494 = vmatprep.subr.mxu0 0.0
    %3495 = vmatpush1.msra.mxu0 %v164
    %3496 = vmatprep.subr.mxu0 0.0
    %3497 = vmatpush1.msra.mxu0 %v165
    %3498 = vmatprep.subr.mxu0 0.0
    %3499 = vmatpush1.msra.mxu0 %v166
    %3500 = vmatprep.subr.mxu0 0.0
    %3501 = vmatpush1.msra.mxu0 %v167
    %3502 = vmatprep.subr.mxu0 0.0
    %3503 = vmatpush1.msra.mxu0 %v168
    %3504 = vmatprep.subr.mxu0 0.0
    %3505 = vmatpush1.msra.mxu0 %v169
    %3506 = vmatprep.subr.mxu0 0.0
    %3507 = vmatpush1.msra.mxu0 %v170
    %3508 = vmatprep.mubr.f32.mxu0 %v3438
    %3509 = vmatmul.mubr.f32.gmra.mrb[0].mxu0 %v3437
    %v3510 = vpop.f32.mrb[0].mxu0
    %v3511 = vadd.f32 %v263, %v3510
    %v3512 = vpop.f32.mrb[0].mxu0
    %3513 = vdwg.mxu0
    %3514 = vmatprep.subr.mxu0 0.0
    %3515 = vmatpush1.msra.mxu0 %v171
    %3516 = vmatprep.subr.mxu0 0.0
    %3517 = vmatpush1.msra.mxu0 %v172
    %3518 = vmatprep.subr.mxu0 0.0
    %3519 = vmatpush1.msra.mxu0 %v173
    %3520 = vmatprep.subr.mxu0 0.0
    %3521 = vmatpush1.msra.mxu0 %v174
    %3522 = vmatprep.subr.mxu0 0.0
    %3523 = vmatpush1.msra.mxu0 %v175
    %3524 = vmatprep.subr.mxu0 0.0
    %3525 = vmatpush1.msra.mxu0 %v176
    %3526 = vmatprep.subr.mxu0 0.0
    %3527 = vmatpush1.msra.mxu0 %v177
    %3528 = vmatprep.subr.mxu0 0.0
    %3529 = vmatpush1.msra.mxu0 %v178
    %3530 = vmatprep.subr.mxu0 0.0
    %3531 = vmatpush1.msra.mxu0 %v179
    %3532 = vmatprep.subr.mxu0 0.0
    %3533 = vmatpush1.msra.mxu0 %v180
    %3534 = vmatprep.subr.mxu0 0.0
    %3535 = vmatpush1.msra.mxu0 %v181
    %3536 = vmatprep.subr.mxu0 0.0
    %3537 = vmatpush1.msra.mxu0 %v182
    %3538 = vmatprep.subr.mxu0 0.0
    %3539 = vmatpush1.msra.mxu0 %v183
    %3540 = vmatprep.subr.mxu0 0.0
    %3541 = vmatpush1.msra.mxu0 %v184
    %3542 = vmatprep.subr.mxu0 0.0
    %3543 = vmatpush1.msra.mxu0 %v185
    %3544 = vmatprep.subr.mxu0 0.0
    %3545 = vmatpush1.msra.mxu0 %v186
    %3546 = vmatprep.subr.mxu0 0.0
    %3547 = vmatpush1.msra.mxu0 %v187
    %3548 = vmatprep.subr.mxu0 0.0
    %3549 = vmatpush1.msra.mxu0 %v188
    %3550 = vmatprep.subr.mxu0 0.0
    %3551 = vmatpush1.msra.mxu0 %v189
    %3552 = vmatprep.subr.mxu0 0.0
    %3553 = vmatpush1.msra.mxu0 %v190
    %3554 = vmatprep.subr.mxu0 0.0
    %3555 = vmatpush1.msra.mxu0 %v191
    %3556 = vmatprep.subr.mxu0 0.0
    %3557 = vmatpush1.msra.mxu0 %v192
    %3558 = vmatprep.subr.mxu0 0.0
    %3559 = vmatpush1.msra.mxu0 %v193
    %3560 = vmatprep.subr.mxu0 0.0
    %3561 = vmatpush1.msra.mxu0 %v194
    %3562 = vmatprep.subr.mxu0 0.0
    %3563 = vmatpush1.msra.mxu0 %v195
    %3564 = vmatprep.subr.mxu0 0.0
    %3565 = vmatpush1.msra.mxu0 %v196
    %3566 = vmatprep.subr.mxu0 0.0
    %3567 = vmatpush1.msra.mxu0 %v197
    %3568 = vmatprep.subr.mxu0 0.0
    %3569 = vmatpush1.msra.mxu0 %v198
    %3570 = vmatprep.subr.mxu0 0.0
    %3571 = vmatpush1.msra.mxu0 %v199
    %3572 = vmatprep.subr.mxu0 0.0
    %3573 = vmatpush1.msra.mxu0 %v200
    %3574 = vmatprep.subr.mxu0 0.0
    %3575 = vmatpush1.msra.mxu0 %v201
    %3576 = vmatprep.subr.mxu0 0.0
    %3577 = vmatpush1.msra.mxu0 %v202
    %3578 = vmatprep.mubr.f32.mxu0 %v3440
    %3579 = vmatmul.mubr.f32.gmra.mrb[0].mxu0 %v3439
    %v3580 = vpop.f32.mrb[0].mxu0
    %v3581 = vadd.f32 %v3511, %v3580
    %v3582 = vpop.f32.mrb[0].mxu0
    %3583 = vdwg.mxu0
    %3584 = vmatprep.subr.mxu0 0.0
    %3585 = vmatpush1.msra.mxu0 %v203
    %3586 = vmatprep.subr.mxu0 0.0
    %3587 = vmatpush1.msra.mxu0 %v204
    %3588 = vmatprep.subr.mxu0 0.0
    %3589 = vmatpush1.msra.mxu0 %v205
    %3590 = vmatprep.subr.mxu0 0.0
    %3591 = vmatpush1.msra.mxu0 %v206
    %3592 = vmatprep.subr.mxu0 0.0
    %3593 = vmatpush1.msra.mxu0 %v207
    %3594 = vmatprep.subr.mxu0 0.0
    %3595 = vmatpush1.msra.mxu0 %v208
    %3596 = vmatprep.subr.mxu0 0.0
    %3597 = vmatpush1.msra.mxu0 %v209
    %3598 = vmatprep.subr.mxu0 0.0
    %3599 = vmatpush1.msra.mxu0 %v210
    %3600 = vmatprep.subr.mxu0 0.0
    %3601 = vmatpush1.msra.mxu0 %v211
    %3602 = vmatprep.subr.mxu0 0.0
    %3603 = vmatpush1.msra.mxu0 %v212
    %3604 = vmatprep.subr.mxu0 0.0
    %3605 = vmatpush1.msra.mxu0 %v213
    %3606 = vmatprep.subr.mxu0 0.0
    %3607 = vmatpush1.msra.mxu0 %v214
    %3608 = vmatprep.subr.mxu0 0.0
    %3609 = vmatpush1.msra.mxu0 %v215
    %3610 = vmatprep.subr.mxu0 0.0
    %3611 = vmatpush1.msra.mxu0 %v216
    %3612 = vmatprep.subr.mxu0 0.0
    %3613 = vmatpush1.msra.mxu0 %v217
    %3614 = vmatprep.subr.mxu0 0.0
    %3615 = vmatpush1.msra.mxu0 %v218
    %3616 = vmatprep.subr.mxu0 0.0
    %3617 = vmatpush1.msra.mxu0 %v219
    %3618 = vmatprep.subr.mxu0 0.0
    %3619 = vmatpush1.msra.mxu0 %v220
    %3620 = vmatprep.subr.mxu0 0.0
    %3621 = vmatpush1.msra.mxu0 %v221
    %3622 = vmatprep.subr.mxu0 0.0
    %3623 = vmatpush1.msra.mxu0 %v222
    %3624 = vmatprep.subr.mxu0 0.0
    %3625 = vmatpush1.msra.mxu0 %v223
    %3626 = vmatprep.subr.mxu0 0.0
    %3627 = vmatpush1.msra.mxu0 %v224
    %3628 = vmatprep.subr.mxu0 0.0
    %3629 = vmatpush1.msra.mxu0 %v225
    %3630 = vmatprep.subr.mxu0 0.0
    %3631 = vmatpush1.msra.mxu0 %v226
    %3632 = vmatprep.subr.mxu0 0.0
    %3633 = vmatpush1.msra.mxu0 %v227
    %3634 = vmatprep.subr.mxu0 0.0
    %3635 = vmatpush1.msra.mxu0 %v228
    %3636 = vmatprep.subr.mxu0 0.0
    %3637 = vmatpush1.msra.mxu0 %v229
    %3638 = vmatprep.subr.mxu0 0.0
    %3639 = vmatpush1.msra.mxu0 %v230
    %3640 = vmatprep.subr.mxu0 0.0
    %3641 = vmatpush1.msra.mxu0 %v231
    %3642 = vmatprep.subr.mxu0 0.0
    %3643 = vmatpush1.msra.mxu0 %v232
    %3644 = vmatprep.subr.mxu0 0.0
    %3645 = vmatpush1.msra.mxu0 %v233
    %3646 = vmatprep.subr.mxu0 0.0
    %3647 = vmatpush1.msra.mxu0 %v234
    %3648 = vmatprep.mubr.f32.mxu0 %v3442
    %3649 = vmatmul.mubr.f32.gmra.mrb[0].mxu0 %v3441
    %v3650 = vpop.f32.mrb[0].mxu0
    %v3651 = vadd.f32 %v3581, %v3650
    %v3652 = vpop.f32.mrb[0].mxu0
    %3653 = vdwg.mxu0
    %3654 = vmatprep.subr.mxu0 0.0
    %3655 = vmatpush1.msra.mxu0 %v235
    %3656 = vmatprep.subr.mxu0 0.0
    %3657 = vmatpush1.msra.mxu0 %v236
    %3658 = vmatprep.subr.mxu0 0.0
    %3659 = vmatpush1.msra.mxu0 %v237
    %3660 = vmatprep.subr.mxu0 0.0
    %3661 = vmatpush1.msra.mxu0 %v238
    %3662 = vmatprep.subr.mxu0 0.0
    %3663 = vmatpush1.msra.mxu0 %v239
    %3664 = vmatprep.subr.mxu0 0.0
    %3665 = vmatpush1.msra.mxu0 %v240
    %3666 = vmatprep.subr.mxu0 0.0
    %3667 = vmatpush1.msra.mxu0 %v241
    %3668 = vmatprep.subr.mxu0 0.0
    %3669 = vmatpush1.msra.mxu0 %v242
    %3670 = vmatprep.subr.mxu0 0.0
    %3671 = vmatpush1.msra.mxu0 %v243
    %3672 = vmatprep.subr.mxu0 0.0
    %3673 = vmatpush1.msra.mxu0 %v244
    %3674 = vmatprep.subr.mxu0 0.0
    %3675 = vmatpush1.msra.mxu0 %v245
    %3676 = vmatprep.subr.mxu0 0.0
    %3677 = vmatpush1.msra.mxu0 %v246
    %3678 = vmatprep.subr.mxu0 0.0
    %3679 = vmatpush1.msra.mxu0 %v247
    %3680 = vmatprep.subr.mxu0 0.0
    %3681 = vmatpush1.msra.mxu0 %v248
    %3682 = vmatprep.subr.mxu0 0.0
    %3683 = vmatpush1.msra.mxu0 %v249
    %3684 = vmatprep.subr.mxu0 0.0
    %3685 = vmatpush1.msra.mxu0 %v250
    %3686 = vmatprep.subr.mxu0 0.0
    %3687 = vmatpush1.msra.mxu0 0.0
    %3688 = vmatprep.subr.mxu0 0.0
    %3689 = vmatpush1.msra.mxu0 0.0
    %3690 = vmatprep.subr.mxu0 0.0
    %3691 = vmatpush1.msra.mxu0 0.0
    %3692 = vmatprep.subr.mxu0 0.0
    %3693 = vmatpush1.msra.mxu0 0.0
    %3694 = vmatprep.subr.mxu0 0.0
    %3695 = vmatpush1.msra.mxu0 0.0
    %3696 = vmatprep.subr.mxu0 0.0
    %3697 = vmatpush1.msra.mxu0 0.0
    %3698 = vmatprep.subr.mxu0 0.0
    %3699 = vmatpush1.msra.mxu0 0.0
    %3700 = vmatprep.subr.mxu0 0.0
    %3701 = vmatpush1.msra.mxu0 0.0
    %3702 = vmatprep.subr.mxu0 0.0
    %3703 = vmatpush1.msra.mxu0 0.0
    %3704 = vmatprep.subr.mxu0 0.0
    %3705 = vmatpush1.msra.mxu0 0.0
    %3706 = vmatprep.subr.mxu0 0.0
    %3707 = vmatpush1.msra.mxu0 0.0
    %3708 = vmatprep.subr.mxu0 0.0
    %3709 = vmatpush1.msra.mxu0 0.0
    %3710 = vmatprep.subr.mxu0 0.0
    %3711 = vmatpush1.msra.mxu0 0.0
    %3712 = vmatprep.subr.mxu0 0.0
    %3713 = vmatpush1.msra.mxu0 0.0
    %3714 = vmatprep.subr.mxu0 0.0
    %3715 = vmatpush1.msra.mxu0 0.0
    %3716 = vmatprep.subr.mxu0 0.0
    %3717 = vmatpush1.msra.mxu0 0.0
    %3718 = vmatprep.mubr.f32.mxu0 0.0
    %3719 = vmatmul.mubr.f32.gmra.mrb[0].mxu0 %v3443
    %v3720 = vpop.f32.mrb[0].mxu0
    %v3721 = vadd.f32 %v3651, %v3720
    %v3722 = vpop.f32.mrb[0].mxu0
    %3723 = vdwg.mxu0
    %v3724 = vmax.f32 %v3721, 0.0
    %3725 = vst [vmem:[#allocation2 + $0x58] sm:$0xff] %v3724
    %v3726 = vld [vmem:[%s0 + $0x60] sm:$0xff]
    %v3727 = vld [vmem:[%s0 + $0x68] sm:$0xff]
    %v3728 = vld [vmem:[%s0 + $0x70] sm:$0xff]
    %v3729 = vld [vmem:[%s0 + $0x78] sm:$0xff]
    %v3730 = vld [vmem:[%s0 + $0x80] sm:$0xff]
    %v3731 = vld [vmem:[%s0 + $0x88] sm:$0xff]
    %v3732 = vld [vmem:[%s0 + $0x90] sm:$0xff]
    %3733 = vmatprep.subr.mxu0 0.0
    %3734 = vmatpush1.msra.mxu0 %v139
    %3735 = vmatprep.subr.mxu0 0.0
    %3736 = vmatpush1.msra.mxu0 %v140
    %3737 = vmatprep.subr.mxu0 0.0
    %3738 = vmatpush1.msra.mxu0 %v141
    %3739 = vmatprep.subr.mxu0 0.0
    %3740 = vmatpush1.msra.mxu0 %v142
    %3741 = vmatprep.subr.mxu0 0.0
    %3742 = vmatpush1.msra.mxu0 %v143
    %3743 = vmatprep.subr.mxu0 0.0
    %3744 = vmatpush1.msra.mxu0 %v144
    %3745 = vmatprep.subr.mxu0 0.0
    %3746 = vmatpush1.msra.mxu0 %v145
    %3747 = vmatprep.subr.mxu0 0.0
    %3748 = vmatpush1.msra.mxu0 %v146
    %3749 = vmatprep.subr.mxu0 0.0
    %3750 = vmatpush1.msra.mxu0 %v147
    %3751 = vmatprep.subr.mxu0 0.0
    %3752 = vmatpush1.msra.mxu0 %v148
    %3753 = vmatprep.subr.mxu0 0.0
    %3754 = vmatpush1.msra.mxu0 %v149
    %3755 = vmatprep.subr.mxu0 0.0
    %3756 = vmatpush1.msra.mxu0 %v150
    %3757 = vmatprep.subr.mxu0 0.0
    %3758 = vmatpush1.msra.mxu0 %v151
    %3759 = vmatprep.subr.mxu0 0.0
    %3760 = vmatpush1.msra.mxu0 %v152
    %3761 = vmatprep.subr.mxu0 0.0
    %3762 = vmatpush1.msra.mxu0 %v153
    %3763 = vmatprep.subr.mxu0 0.0
    %3764 = vmatpush1.msra.mxu0 %v154
    %3765 = vmatprep.subr.mxu0 0.0
    %3766 = vmatpush1.msra.mxu0 %v155
    %3767 = vmatprep.subr.mxu0 0.0
    %3768 = vmatpush1.msra.mxu0 %v156
    %3769 = vmatprep.subr.mxu0 0.0
    %3770 = vmatpush1.msra.mxu0 %v157
    %3771 = vmatprep.subr.mxu0 0.0
    %3772 = vmatpush1.msra.mxu0 %v158
    %3773 = vmatprep.subr.mxu0 0.0
    %3774 = vmatpush1.msra.mxu0 %v159
    %3775 = vmatprep.subr.mxu0 0.0
    %3776 = vmatpush1.msra.mxu0 %v160
    %3777 = vmatprep.subr.mxu0 0.0
    %3778 = vmatpush1.msra.mxu0 %v161
    %3779 = vmatprep.subr.mxu0 0.0
    %3780 = vmatpush1.msra.mxu0 %v162
    %3781 = vmatprep.subr.mxu0 0.0
    %3782 = vmatpush1.msra.mxu0 %v163
    %3783 = vmatprep.subr.mxu0 0.0
    %3784 = vmatpush1.msra.mxu0 %v164
    %3785 = vmatprep.subr.mxu0 0.0
    %3786 = vmatpush1.msra.mxu0 %v165
    %3787 = vmatprep.subr.mxu0 0.0
    %3788 = vmatpush1.msra.mxu0 %v166
    %3789 = vmatprep.subr.mxu0 0.0
    %3790 = vmatpush1.msra.mxu0 %v167
    %3791 = vmatprep.subr.mxu0 0.0
    %3792 = vmatpush1.msra.mxu0 %v168
    %3793 = vmatprep.subr.mxu0 0.0
    %3794 = vmatpush1.msra.mxu0 %v169
    %3795 = vmatprep.subr.mxu0 0.0
    %3796 = vmatpush1.msra.mxu0 %v170
    %3797 = vmatprep.mubr.f32.mxu0 %v3727
    %3798 = vmatmul.mubr.f32.gmra.mrb[0].mxu0 %v3726
    %v3799 = vpop.f32.mrb[0].mxu0
    %v3800 = vadd.f32 %v263, %v3799
    %v3801 = vpop.f32.mrb[0].mxu0
    %3802 = vdwg.mxu0
    %3803 = vmatprep.subr.mxu0 0.0
    %3804 = vmatpush1.msra.mxu0 %v171
    %3805 = vmatprep.subr.mxu0 0.0
    %3806 = vmatpush1.msra.mxu0 %v172
    %3807 = vmatprep.subr.mxu0 0.0
    %3808 = vmatpush1.msra.mxu0 %v173
    %3809 = vmatprep.subr.mxu0 0.0
    %3810 = vmatpush1.msra.mxu0 %v174
    %3811 = vmatprep.subr.mxu0 0.0
    %3812 = vmatpush1.msra.mxu0 %v175
    %3813 = vmatprep.subr.mxu0 0.0
    %3814 = vmatpush1.msra.mxu0 %v176
    %3815 = vmatprep.subr.mxu0 0.0
    %3816 = vmatpush1.msra.mxu0 %v177
    %3817 = vmatprep.subr.mxu0 0.0
    %3818 = vmatpush1.msra.mxu0 %v178
    %3819 = vmatprep.subr.mxu0 0.0
    %3820 = vmatpush1.msra.mxu0 %v179
    %3821 = vmatprep.subr.mxu0 0.0
    %3822 = vmatpush1.msra.mxu0 %v180
    %3823 = vmatprep.subr.mxu0 0.0
    %3824 = vmatpush1.msra.mxu0 %v181
    %3825 = vmatprep.subr.mxu0 0.0
    %3826 = vmatpush1.msra.mxu0 %v182
    %3827 = vmatprep.subr.mxu0 0.0
    %3828 = vmatpush1.msra.mxu0 %v183
    %3829 = vmatprep.subr.mxu0 0.0
    %3830 = vmatpush1.msra.mxu0 %v184
    %3831 = vmatprep.subr.mxu0 0.0
    %3832 = vmatpush1.msra.mxu0 %v185
    %3833 = vmatprep.subr.mxu0 0.0
    %3834 = vmatpush1.msra.mxu0 %v186
    %3835 = vmatprep.subr.mxu0 0.0
    %3836 = vmatpush1.msra.mxu0 %v187
    %3837 = vmatprep.subr.mxu0 0.0
    %3838 = vmatpush1.msra.mxu0 %v188
    %3839 = vmatprep.subr.mxu0 0.0
    %3840 = vmatpush1.msra.mxu0 %v189
    %3841 = vmatprep.subr.mxu0 0.0
    %3842 = vmatpush1.msra.mxu0 %v190
    %3843 = vmatprep.subr.mxu0 0.0
    %3844 = vmatpush1.msra.mxu0 %v191
    %3845 = vmatprep.subr.mxu0 0.0
    %3846 = vmatpush1.msra.mxu0 %v192
    %3847 = vmatprep.subr.mxu0 0.0
    %3848 = vmatpush1.msra.mxu0 %v193
    %3849 = vmatprep.subr.mxu0 0.0
    %3850 = vmatpush1.msra.mxu0 %v194
    %3851 = vmatprep.subr.mxu0 0.0
    %3852 = vmatpush1.msra.mxu0 %v195
    %3853 = vmatprep.subr.mxu0 0.0
    %3854 = vmatpush1.msra.mxu0 %v196
    %3855 = vmatprep.subr.mxu0 0.0
    %3856 = vmatpush1.msra.mxu0 %v197
    %3857 = vmatprep.subr.mxu0 0.0
    %3858 = vmatpush1.msra.mxu0 %v198
    %3859 = vmatprep.subr.mxu0 0.0
    %3860 = vmatpush1.msra.mxu0 %v199
    %3861 = vmatprep.subr.mxu0 0.0
    %3862 = vmatpush1.msra.mxu0 %v200
    %3863 = vmatprep.subr.mxu0 0.0
    %3864 = vmatpush1.msra.mxu0 %v201
    %3865 = vmatprep.subr.mxu0 0.0
    %3866 = vmatpush1.msra.mxu0 %v202
    %3867 = vmatprep.mubr.f32.mxu0 %v3729
    %3868 = vmatmul.mubr.f32.gmra.mrb[0].mxu0 %v3728
    %v3869 = vpop.f32.mrb[0].mxu0
    %v3870 = vadd.f32 %v3800, %v3869
    %v3871 = vpop.f32.mrb[0].mxu0
    %3872 = vdwg.mxu0
    %3873 = vmatprep.subr.mxu0 0.0
    %3874 = vmatpush1.msra.mxu0 %v203
    %3875 = vmatprep.subr.mxu0 0.0
    %3876 = vmatpush1.msra.mxu0 %v204
    %3877 = vmatprep.subr.mxu0 0.0
    %3878 = vmatpush1.msra.mxu0 %v205
    %3879 = vmatprep.subr.mxu0 0.0
    %3880 = vmatpush1.msra.mxu0 %v206
    %3881 = vmatprep.subr.mxu0 0.0
    %3882 = vmatpush1.msra.mxu0 %v207
    %3883 = vmatprep.subr.mxu0 0.0
    %3884 = vmatpush1.msra.mxu0 %v208
    %3885 = vmatprep.subr.mxu0 0.0
    %3886 = vmatpush1.msra.mxu0 %v209
    %3887 = vmatprep.subr.mxu0 0.0
    %3888 = vmatpush1.msra.mxu0 %v210
    %3889 = vmatprep.subr.mxu0 0.0
    %3890 = vmatpush1.msra.mxu0 %v211
    %3891 = vmatprep.subr.mxu0 0.0
    %3892 = vmatpush1.msra.mxu0 %v212
    %3893 = vmatprep.subr.mxu0 0.0
    %3894 = vmatpush1.msra.mxu0 %v213
    %3895 = vmatprep.subr.mxu0 0.0
    %3896 = vmatpush1.msra.mxu0 %v214
    %3897 = vmatprep.subr.mxu0 0.0
    %3898 = vmatpush1.msra.mxu0 %v215
    %3899 = vmatprep.subr.mxu0 0.0
    %3900 = vmatpush1.msra.mxu0 %v216
    %3901 = vmatprep.subr.mxu0 0.0
    %3902 = vmatpush1.msra.mxu0 %v217
    %3903 = vmatprep.subr.mxu0 0.0
    %3904 = vmatpush1.msra.mxu0 %v218
    %3905 = vmatprep.subr.mxu0 0.0
    %3906 = vmatpush1.msra.mxu0 %v219
    %3907 = vmatprep.subr.mxu0 0.0
    %3908 = vmatpush1.msra.mxu0 %v220
    %3909 = vmatprep.subr.mxu0 0.0
    %3910 = vmatpush1.msra.mxu0 %v221
    %3911 = vmatprep.subr.mxu0 0.0
    %3912 = vmatpush1.msra.mxu0 %v222
    %3913 = vmatprep.subr.mxu0 0.0
    %3914 = vmatpush1.msra.mxu0 %v223
    %3915 = vmatprep.subr.mxu0 0.0
    %3916 = vmatpush1.msra.mxu0 %v224
    %3917 = vmatprep.subr.mxu0 0.0
    %3918 = vmatpush1.msra.mxu0 %v225
    %3919 = vmatprep.subr.mxu0 0.0
    %3920 = vmatpush1.msra.mxu0 %v226
    %3921 = vmatprep.subr.mxu0 0.0
    %3922 = vmatpush1.msra.mxu0 %v227
    %3923 = vmatprep.subr.mxu0 0.0
    %3924 = vmatpush1.msra.mxu0 %v228
    %3925 = vmatprep.subr.mxu0 0.0
    %3926 = vmatpush1.msra.mxu0 %v229
    %3927 = vmatprep.subr.mxu0 0.0
    %3928 = vmatpush1.msra.mxu0 %v230
    %3929 = vmatprep.subr.mxu0 0.0
    %3930 = vmatpush1.msra.mxu0 %v231
    %3931 = vmatprep.subr.mxu0 0.0
    %3932 = vmatpush1.msra.mxu0 %v232
    %3933 = vmatprep.subr.mxu0 0.0
    %3934 = vmatpush1.msra.mxu0 %v233
    %3935 = vmatprep.subr.mxu0 0.0
    %3936 = vmatpush1.msra.mxu0 %v234
    %3937 = vmatprep.mubr.f32.mxu0 %v3731
    %3938 = vmatmul.mubr.f32.gmra.mrb[0].mxu0 %v3730
    %v3939 = vpop.f32.mrb[0].mxu0
    %v3940 = vadd.f32 %v3870, %v3939
    %v3941 = vpop.f32.mrb[0].mxu0
    %3942 = vdwg.mxu0
    %3943 = vmatprep.subr.mxu0 0.0
    %3944 = vmatpush1.msra.mxu0 %v235
    %3945 = vmatprep.subr.mxu0 0.0
    %3946 = vmatpush1.msra.mxu0 %v236
    %3947 = vmatprep.subr.mxu0 0.0
    %3948 = vmatpush1.msra.mxu0 %v237
    %3949 = vmatprep.subr.mxu0 0.0
    %3950 = vmatpush1.msra.mxu0 %v238
    %3951 = vmatprep.subr.mxu0 0.0
    %3952 = vmatpush1.msra.mxu0 %v239
    %3953 = vmatprep.subr.mxu0 0.0
    %3954 = vmatpush1.msra.mxu0 %v240
    %3955 = vmatprep.subr.mxu0 0.0
    %3956 = vmatpush1.msra.mxu0 %v241
    %3957 = vmatprep.subr.mxu0 0.0
    %3958 = vmatpush1.msra.mxu0 %v242
    %3959 = vmatprep.subr.mxu0 0.0
    %3960 = vmatpush1.msra.mxu0 %v243
    %3961 = vmatprep.subr.mxu0 0.0
    %3962 = vmatpush1.msra.mxu0 %v244
    %3963 = vmatprep.subr.mxu0 0.0
    %3964 = vmatpush1.msra.mxu0 %v245
    %3965 = vmatprep.subr.mxu0 0.0
    %3966 = vmatpush1.msra.mxu0 %v246
    %3967 = vmatprep.subr.mxu0 0.0
    %3968 = vmatpush1.msra.mxu0 %v247
    %3969 = vmatprep.subr.mxu0 0.0
    %3970 = vmatpush1.msra.mxu0 %v248
    %3971 = vmatprep.subr.mxu0 0.0
    %3972 = vmatpush1.msra.mxu0 %v249
    %3973 = vmatprep.subr.mxu0 0.0
    %3974 = vmatpush1.msra.mxu0 %v250
    %3975 = vmatprep.subr.mxu0 0.0
    %3976 = vmatpush1.msra.mxu0 0.0
    %3977 = vmatprep.subr.mxu0 0.0
    %3978 = vmatpush1.msra.mxu0 0.0
    %3979 = vmatprep.subr.mxu0 0.0
    %3980 = vmatpush1.msra.mxu0 0.0
    %3981 = vmatprep.subr.mxu0 0.0
    %3982 = vmatpush1.msra.mxu0 0.0
    %3983 = vmatprep.subr.mxu0 0.0
    %3984 = vmatpush1.msra.mxu0 0.0
    %3985 = vmatprep.subr.mxu0 0.0
    %3986 = vmatpush1.msra.mxu0 0.0
    %3987 = vmatprep.subr.mxu0 0.0
    %3988 = vmatpush1.msra.mxu0 0.0
    %3989 = vmatprep.subr.mxu0 0.0
    %3990 = vmatpush1.msra.mxu0 0.0
    %3991 = vmatprep.subr.mxu0 0.0
    %3992 = vmatpush1.msra.mxu0 0.0
    %3993 = vmatprep.subr.mxu0 0.0
    %3994 = vmatpush1.msra.mxu0 0.0
    %3995 = vmatprep.subr.mxu0 0.0
    %3996 = vmatpush1.msra.mxu0 0.0
    %3997 = vmatprep.subr.mxu0 0.0
    %3998 = vmatpush1.msra.mxu0 0.0
    %3999 = vmatprep.subr.mxu0 0.0
    %4000 = vmatpush1.msra.mxu0 0.0
    %4001 = vmatprep.subr.mxu0 0.0
    %4002 = vmatpush1.msra.mxu0 0.0
    %4003 = vmatprep.subr.mxu0 0.0
    %4004 = vmatpush1.msra.mxu0 0.0
    %4005 = vmatprep.subr.mxu0 0.0
    %4006 = vmatpush1.msra.mxu0 0.0
    %4007 = vmatprep.mubr.f32.mxu0 0.0
    %4008 = vmatmul.mubr.f32.gmra.mrb[0].mxu0 %v3732
    %v4009 = vpop.f32.mrb[0].mxu0
    %v4010 = vadd.f32 %v3940, %v4009
    %v4011 = vpop.f32.mrb[0].mxu0
    %4012 = vdwg.mxu0
    %v4013 = vmax.f32 %v4010, 0.0
    %4014 = vst [vmem:[#allocation2 + $0x60] sm:$0xff] %v4013
    %v4015 = vld [vmem:[%s0 + $0x68] sm:$0xff]
    %v4016 = vld [vmem:[%s0 + $0x70] sm:$0xff]
    %v4017 = vld [vmem:[%s0 + $0x78] sm:$0xff]
    %v4018 = vld [vmem:[%s0 + $0x80] sm:$0xff]
    %v4019 = vld [vmem:[%s0 + $0x88] sm:$0xff]
    %v4020 = vld [vmem:[%s0 + $0x90] sm:$0xff]
    %v4021 = vld [vmem:[%s0 + $0x98] sm:$0xff]
    %4022 = vmatprep.subr.mxu0 0.0
    %4023 = vmatpush1.msra.mxu0 %v139
    %4024 = vmatprep.subr.mxu0 0.0
    %4025 = vmatpush1.msra.mxu0 %v140
    %4026 = vmatprep.subr.mxu0 0.0
    %4027 = vmatpush1.msra.mxu0 %v141
    %4028 = vmatprep.subr.mxu0 0.0
    %4029 = vmatpush1.msra.mxu0 %v142
    %4030 = vmatprep.subr.mxu0 0.0
    %4031 = vmatpush1.msra.mxu0 %v143
    %4032 = vmatprep.subr.mxu0 0.0
    %4033 = vmatpush1.msra.mxu0 %v144
    %4034 = vmatprep.subr.mxu0 0.0
    %4035 = vmatpush1.msra.mxu0 %v145
    %4036 = vmatprep.subr.mxu0 0.0
    %4037 = vmatpush1.msra.mxu0 %v146
    %4038 = vmatprep.subr.mxu0 0.0
    %4039 = vmatpush1.msra.mxu0 %v147
    %4040 = vmatprep.subr.mxu0 0.0
    %4041 = vmatpush1.msra.mxu0 %v148
    %4042 = vmatprep.subr.mxu0 0.0
    %4043 = vmatpush1.msra.mxu0 %v149
    %4044 = vmatprep.subr.mxu0 0.0
    %4045 = vmatpush1.msra.mxu0 %v150
    %4046 = vmatprep.subr.mxu0 0.0
    %4047 = vmatpush1.msra.mxu0 %v151
    %4048 = vmatprep.subr.mxu0 0.0
    %4049 = vmatpush1.msra.mxu0 %v152
    %4050 = vmatprep.subr.mxu0 0.0
    %4051 = vmatpush1.msra.mxu0 %v153
    %4052 = vmatprep.subr.mxu0 0.0
    %4053 = vmatpush1.msra.mxu0 %v154
    %4054 = vmatprep.subr.mxu0 0.0
    %4055 = vmatpush1.msra.mxu0 %v155
    %4056 = vmatprep.subr.mxu0 0.0
    %4057 = vmatpush1.msra.mxu0 %v156
    %4058 = vmatprep.subr.mxu0 0.0
    %4059 = vmatpush1.msra.mxu0 %v157
    %4060 = vmatprep.subr.mxu0 0.0
    %4061 = vmatpush1.msra.mxu0 %v158
    %4062 = vmatprep.subr.mxu0 0.0
    %4063 = vmatpush1.msra.mxu0 %v159
    %4064 = vmatprep.subr.mxu0 0.0
    %4065 = vmatpush1.msra.mxu0 %v160
    %4066 = vmatprep.subr.mxu0 0.0
    %4067 = vmatpush1.msra.mxu0 %v161
    %4068 = vmatprep.subr.mxu0 0.0
    %4069 = vmatpush1.msra.mxu0 %v162
    %4070 = vmatprep.subr.mxu0 0.0
    %4071 = vmatpush1.msra.mxu0 %v163
    %4072 = vmatprep.subr.mxu0 0.0
    %4073 = vmatpush1.msra.mxu0 %v164
    %4074 = vmatprep.subr.mxu0 0.0
    %4075 = vmatpush1.msra.mxu0 %v165
    %4076 = vmatprep.subr.mxu0 0.0
    %4077 = vmatpush1.msra.mxu0 %v166
    %4078 = vmatprep.subr.mxu0 0.0
    %4079 = vmatpush1.msra.mxu0 %v167
    %4080 = vmatprep.subr.mxu0 0.0
    %4081 = vmatpush1.msra.mxu0 %v168
    %4082 = vmatprep.subr.mxu0 0.0
    %4083 = vmatpush1.msra.mxu0 %v169
    %4084 = vmatprep.subr.mxu0 0.0
    %4085 = vmatpush1.msra.mxu0 %v170
    %4086 = vmatprep.mubr.f32.mxu0 %v4016
    %4087 = vmatmul.mubr.f32.gmra.mrb[0].mxu0 %v4015
    %v4088 = vpop.f32.mrb[0].mxu0
    %v4089 = vadd.f32 %v263, %v4088
    %v4090 = vpop.f32.mrb[0].mxu0
    %4091 = vdwg.mxu0
    %4092 = vmatprep.subr.mxu0 0.0
    %4093 = vmatpush1.msra.mxu0 %v171
    %4094 = vmatprep.subr.mxu0 0.0
    %4095 = vmatpush1.msra.mxu0 %v172
    %4096 = vmatprep.subr.mxu0 0.0
    %4097 = vmatpush1.msra.mxu0 %v173
    %4098 = vmatprep.subr.mxu0 0.0
    %4099 = vmatpush1.msra.mxu0 %v174
    %4100 = vmatprep.subr.mxu0 0.0
    %4101 = vmatpush1.msra.mxu0 %v175
    %4102 = vmatprep.subr.mxu0 0.0
    %4103 = vmatpush1.msra.mxu0 %v176
    %4104 = vmatprep.subr.mxu0 0.0
    %4105 = vmatpush1.msra.mxu0 %v177
    %4106 = vmatprep.subr.mxu0 0.0
    %4107 = vmatpush1.msra.mxu0 %v178
    %4108 = vmatprep.subr.mxu0 0.0
    %4109 = vmatpush1.msra.mxu0 %v179
    %4110 = vmatprep.subr.mxu0 0.0
    %4111 = vmatpush1.msra.mxu0 %v180
    %4112 = vmatprep.subr.mxu0 0.0
    %4113 = vmatpush1.msra.mxu0 %v181
    %4114 = vmatprep.subr.mxu0 0.0
    %4115 = vmatpush1.msra.mxu0 %v182
    %4116 = vmatprep.subr.mxu0 0.0
    %4117 = vmatpush1.msra.mxu0 %v183
    %4118 = vmatprep.subr.mxu0 0.0
    %4119 = vmatpush1.msra.mxu0 %v184
    %4120 = vmatprep.subr.mxu0 0.0
    %4121 = vmatpush1.msra.mxu0 %v185
    %4122 = vmatprep.subr.mxu0 0.0
    %4123 = vmatpush1.msra.mxu0 %v186
    %4124 = vmatprep.subr.mxu0 0.0
    %4125 = vmatpush1.msra.mxu0 %v187
    %4126 = vmatprep.subr.mxu0 0.0
    %4127 = vmatpush1.msra.mxu0 %v188
    %4128 = vmatprep.subr.mxu0 0.0
    %4129 = vmatpush1.msra.mxu0 %v189
    %4130 = vmatprep.subr.mxu0 0.0
    %4131 = vmatpush1.msra.mxu0 %v190
    %4132 = vmatprep.subr.mxu0 0.0
    %4133 = vmatpush1.msra.mxu0 %v191
    %4134 = vmatprep.subr.mxu0 0.0
    %4135 = vmatpush1.msra.mxu0 %v192
    %4136 = vmatprep.subr.mxu0 0.0
    %4137 = vmatpush1.msra.mxu0 %v193
    %4138 = vmatprep.subr.mxu0 0.0
    %4139 = vmatpush1.msra.mxu0 %v194
    %4140 = vmatprep.subr.mxu0 0.0
    %4141 = vmatpush1.msra.mxu0 %v195
    %4142 = vmatprep.subr.mxu0 0.0
    %4143 = vmatpush1.msra.mxu0 %v196
    %4144 = vmatprep.subr.mxu0 0.0
    %4145 = vmatpush1.msra.mxu0 %v197
    %4146 = vmatprep.subr.mxu0 0.0
    %4147 = vmatpush1.msra.mxu0 %v198
    %4148 = vmatprep.subr.mxu0 0.0
    %4149 = vmatpush1.msra.mxu0 %v199
    %4150 = vmatprep.subr.mxu0 0.0
    %4151 = vmatpush1.msra.mxu0 %v200
    %4152 = vmatprep.subr.mxu0 0.0
    %4153 = vmatpush1.msra.mxu0 %v201
    %4154 = vmatprep.subr.mxu0 0.0
    %4155 = vmatpush1.msra.mxu0 %v202
    %4156 = vmatprep.mubr.f32.mxu0 %v4018
    %4157 = vmatmul.mubr.f32.gmra.mrb[0].mxu0 %v4017
    %v4158 = vpop.f32.mrb[0].mxu0
    %v4159 = vadd.f32 %v4089, %v4158
    %v4160 = vpop.f32.mrb[0].mxu0
    %4161 = vdwg.mxu0
    %4162 = vmatprep.subr.mxu0 0.0
    %4163 = vmatpush1.msra.mxu0 %v203
    %4164 = vmatprep.subr.mxu0 0.0
    %4165 = vmatpush1.msra.mxu0 %v204
    %4166 = vmatprep.subr.mxu0 0.0
    %4167 = vmatpush1.msra.mxu0 %v205
    %4168 = vmatprep.subr.mxu0 0.0
    %4169 = vmatpush1.msra.mxu0 %v206
    %4170 = vmatprep.subr.mxu0 0.0
    %4171 = vmatpush1.msra.mxu0 %v207
    %4172 = vmatprep.subr.mxu0 0.0
    %4173 = vmatpush1.msra.mxu0 %v208
    %4174 = vmatprep.subr.mxu0 0.0
    %4175 = vmatpush1.msra.mxu0 %v209
    %4176 = vmatprep.subr.mxu0 0.0
    %4177 = vmatpush1.msra.mxu0 %v210
    %4178 = vmatprep.subr.mxu0 0.0
    %4179 = vmatpush1.msra.mxu0 %v211
    %4180 = vmatprep.subr.mxu0 0.0
    %4181 = vmatpush1.msra.mxu0 %v212
    %4182 = vmatprep.subr.mxu0 0.0
    %4183 = vmatpush1.msra.mxu0 %v213
    %4184 = vmatprep.subr.mxu0 0.0
    %4185 = vmatpush1.msra.mxu0 %v214
    %4186 = vmatprep.subr.mxu0 0.0
    %4187 = vmatpush1.msra.mxu0 %v215
    %4188 = vmatprep.subr.mxu0 0.0
    %4189 = vmatpush1.msra.mxu0 %v216
    %4190 = vmatprep.subr.mxu0 0.0
    %4191 = vmatpush1.msra.mxu0 %v217
    %4192 = vmatprep.subr.mxu0 0.0
    %4193 = vmatpush1.msra.mxu0 %v218
    %4194 = vmatprep.subr.mxu0 0.0
    %4195 = vmatpush1.msra.mxu0 %v219
    %4196 = vmatprep.subr.mxu0 0.0
    %4197 = vmatpush1.msra.mxu0 %v220
    %4198 = vmatprep.subr.mxu0 0.0
    %4199 = vmatpush1.msra.mxu0 %v221
    %4200 = vmatprep.subr.mxu0 0.0
    %4201 = vmatpush1.msra.mxu0 %v222
    %4202 = vmatprep.subr.mxu0 0.0
    %4203 = vmatpush1.msra.mxu0 %v223
    %4204 = vmatprep.subr.mxu0 0.0
    %4205 = vmatpush1.msra.mxu0 %v224
    %4206 = vmatprep.subr.mxu0 0.0
    %4207 = vmatpush1.msra.mxu0 %v225
    %4208 = vmatprep.subr.mxu0 0.0
    %4209 = vmatpush1.msra.mxu0 %v226
    %4210 = vmatprep.subr.mxu0 0.0
    %4211 = vmatpush1.msra.mxu0 %v227
    %4212 = vmatprep.subr.mxu0 0.0
    %4213 = vmatpush1.msra.mxu0 %v228
    %4214 = vmatprep.subr.mxu0 0.0
    %4215 = vmatpush1.msra.mxu0 %v229
    %4216 = vmatprep.subr.mxu0 0.0
    %4217 = vmatpush1.msra.mxu0 %v230
    %4218 = vmatprep.subr.mxu0 0.0
    %4219 = vmatpush1.msra.mxu0 %v231
    %4220 = vmatprep.subr.mxu0 0.0
    %4221 = vmatpush1.msra.mxu0 %v232
    %4222 = vmatprep.subr.mxu0 0.0
    %4223 = vmatpush1.msra.mxu0 %v233
    %4224 = vmatprep.subr.mxu0 0.0
    %4225 = vmatpush1.msra.mxu0 %v234
    %4226 = vmatprep.mubr.f32.mxu0 %v4020
    %4227 = vmatmul.mubr.f32.gmra.mrb[0].mxu0 %v4019
    %v4228 = vpop.f32.mrb[0].mxu0
    %v4229 = vadd.f32 %v4159, %v4228
    %v4230 = vpop.f32.mrb[0].mxu0
    %4231 = vdwg.mxu0
    %4232 = vmatprep.subr.mxu0 0.0
    %4233 = vmatpush1.msra.mxu0 %v235
    %4234 = vmatprep.subr.mxu0 0.0
    %4235 = vmatpush1.msra.mxu0 %v236
    %4236 = vmatprep.subr.mxu0 0.0
    %4237 = vmatpush1.msra.mxu0 %v237
    %4238 = vmatprep.subr.mxu0 0.0
    %4239 = vmatpush1.msra.mxu0 %v238
    %4240 = vmatprep.subr.mxu0 0.0
    %4241 = vmatpush1.msra.mxu0 %v239
    %4242 = vmatprep.subr.mxu0 0.0
    %4243 = vmatpush1.msra.mxu0 %v240
    %4244 = vmatprep.subr.mxu0 0.0
    %4245 = vmatpush1.msra.mxu0 %v241
    %4246 = vmatprep.subr.mxu0 0.0
    %4247 = vmatpush1.msra.mxu0 %v242
    %4248 = vmatprep.subr.mxu0 0.0
    %4249 = vmatpush1.msra.mxu0 %v243
    %4250 = vmatprep.subr.mxu0 0.0
    %4251 = vmatpush1.msra.mxu0 %v244
    %4252 = vmatprep.subr.mxu0 0.0
    %4253 = vmatpush1.msra.mxu0 %v245
    %4254 = vmatprep.subr.mxu0 0.0
    %4255 = vmatpush1.msra.mxu0 %v246
    %4256 = vmatprep.subr.mxu0 0.0
    %4257 = vmatpush1.msra.mxu0 %v247
    %4258 = vmatprep.subr.mxu0 0.0
    %4259 = vmatpush1.msra.mxu0 %v248
    %4260 = vmatprep.subr.mxu0 0.0
    %4261 = vmatpush1.msra.mxu0 %v249
    %4262 = vmatprep.subr.mxu0 0.0
    %4263 = vmatpush1.msra.mxu0 %v250
    %4264 = vmatprep.subr.mxu0 0.0
    %4265 = vmatpush1.msra.mxu0 0.0
    %4266 = vmatprep.subr.mxu0 0.0
    %4267 = vmatpush1.msra.mxu0 0.0
    %4268 = vmatprep.subr.mxu0 0.0
    %4269 = vmatpush1.msra.mxu0 0.0
    %4270 = vmatprep.subr.mxu0 0.0
    %4271 = vmatpush1.msra.mxu0 0.0
    %4272 = vmatprep.subr.mxu0 0.0
    %4273 = vmatpush1.msra.mxu0 0.0
    %4274 = vmatprep.subr.mxu0 0.0
    %4275 = vmatpush1.msra.mxu0 0.0
    %4276 = vmatprep.subr.mxu0 0.0
    %4277 = vmatpush1.msra.mxu0 0.0
    %4278 = vmatprep.subr.mxu0 0.0
    %4279 = vmatpush1.msra.mxu0 0.0
    %4280 = vmatprep.subr.mxu0 0.0
    %4281 = vmatpush1.msra.mxu0 0.0
    %4282 = vmatprep.subr.mxu0 0.0
    %4283 = vmatpush1.msra.mxu0 0.0
    %4284 = vmatprep.subr.mxu0 0.0
    %4285 = vmatpush1.msra.mxu0 0.0
    %4286 = vmatprep.subr.mxu0 0.0
    %4287 = vmatpush1.msra.mxu0 0.0
    %4288 = vmatprep.subr.mxu0 0.0
    %4289 = vmatpush1.msra.mxu0 0.0
    %4290 = vmatprep.subr.mxu0 0.0
    %4291 = vmatpush1.msra.mxu0 0.0
    %4292 = vmatprep.subr.mxu0 0.0
    %4293 = vmatpush1.msra.mxu0 0.0
    %4294 = vmatprep.subr.mxu0 0.0
    %4295 = vmatpush1.msra.mxu0 0.0
    %4296 = vmatprep.mubr.f32.mxu0 0.0
    %4297 = vmatmul.mubr.f32.gmra.mrb[0].mxu0 %v4021
    %v4298 = vpop.f32.mrb[0].mxu0
    %v4299 = vadd.f32 %v4229, %v4298
    %v4300 = vpop.f32.mrb[0].mxu0
    %4301 = vdwg.mxu0
    %v4302 = vmax.f32 %v4299, 0.0
    %4303 = vst [vmem:[#allocation2 + $0x68] sm:$0xff] %v4302
    %v4304 = vld [vmem:[%s0 + $0x70] sm:$0xff]
    %v4305 = vld [vmem:[%s0 + $0x78] sm:$0xff]
    %v4306 = vld [vmem:[%s0 + $0x80] sm:$0xff]
    %v4307 = vld [vmem:[%s0 + $0x88] sm:$0xff]
    %v4308 = vld [vmem:[%s0 + $0x90] sm:$0xff]
    %v4309 = vld [vmem:[%s0 + $0x98] sm:$0xff]
    %v4310 = vld [vmem:[%s0 + $0xa0] sm:$0xff]
    %4311 = vmatprep.subr.mxu0 0.0
    %4312 = vmatpush1.msra.mxu0 %v139
    %4313 = vmatprep.subr.mxu0 0.0
    %4314 = vmatpush1.msra.mxu0 %v140
    %4315 = vmatprep.subr.mxu0 0.0
    %4316 = vmatpush1.msra.mxu0 %v141
    %4317 = vmatprep.subr.mxu0 0.0
    %4318 = vmatpush1.msra.mxu0 %v142
    %4319 = vmatprep.subr.mxu0 0.0
    %4320 = vmatpush1.msra.mxu0 %v143
    %4321 = vmatprep.subr.mxu0 0.0
    %4322 = vmatpush1.msra.mxu0 %v144
    %4323 = vmatprep.subr.mxu0 0.0
    %4324 = vmatpush1.msra.mxu0 %v145
    %4325 = vmatprep.subr.mxu0 0.0
    %4326 = vmatpush1.msra.mxu0 %v146
    %4327 = vmatprep.subr.mxu0 0.0
    %4328 = vmatpush1.msra.mxu0 %v147
    %4329 = vmatprep.subr.mxu0 0.0
    %4330 = vmatpush1.msra.mxu0 %v148
    %4331 = vmatprep.subr.mxu0 0.0
    %4332 = vmatpush1.msra.mxu0 %v149
    %4333 = vmatprep.subr.mxu0 0.0
    %4334 = vmatpush1.msra.mxu0 %v150
    %4335 = vmatprep.subr.mxu0 0.0
    %4336 = vmatpush1.msra.mxu0 %v151
    %4337 = vmatprep.subr.mxu0 0.0
    %4338 = vmatpush1.msra.mxu0 %v152
    %4339 = vmatprep.subr.mxu0 0.0
    %4340 = vmatpush1.msra.mxu0 %v153
    %4341 = vmatprep.subr.mxu0 0.0
    %4342 = vmatpush1.msra.mxu0 %v154
    %4343 = vmatprep.subr.mxu0 0.0
    %4344 = vmatpush1.msra.mxu0 %v155
    %4345 = vmatprep.subr.mxu0 0.0
    %4346 = vmatpush1.msra.mxu0 %v156
    %4347 = vmatprep.subr.mxu0 0.0
    %4348 = vmatpush1.msra.mxu0 %v157
    %4349 = vmatprep.subr.mxu0 0.0
    %4350 = vmatpush1.msra.mxu0 %v158
    %4351 = vmatprep.subr.mxu0 0.0
    %4352 = vmatpush1.msra.mxu0 %v159
    %4353 = vmatprep.subr.mxu0 0.0
    %4354 = vmatpush1.msra.mxu0 %v160
    %4355 = vmatprep.subr.mxu0 0.0
    %4356 = vmatpush1.msra.mxu0 %v161
    %4357 = vmatprep.subr.mxu0 0.0
    %4358 = vmatpush1.msra.mxu0 %v162
    %4359 = vmatprep.subr.mxu0 0.0
    %4360 = vmatpush1.msra.mxu0 %v163
    %4361 = vmatprep.subr.mxu0 0.0
    %4362 = vmatpush1.msra.mxu0 %v164
    %4363 = vmatprep.subr.mxu0 0.0
    %4364 = vmatpush1.msra.mxu0 %v165
    %4365 = vmatprep.subr.mxu0 0.0
    %4366 = vmatpush1.msra.mxu0 %v166
    %4367 = vmatprep.subr.mxu0 0.0
    %4368 = vmatpush1.msra.mxu0 %v167
    %4369 = vmatprep.subr.mxu0 0.0
    %4370 = vmatpush1.msra.mxu0 %v168
    %4371 = vmatprep.subr.mxu0 0.0
    %4372 = vmatpush1.msra.mxu0 %v169
    %4373 = vmatprep.subr.mxu0 0.0
    %4374 = vmatpush1.msra.mxu0 %v170
    %4375 = vmatprep.mubr.f32.mxu0 %v4305
    %4376 = vmatmul.mubr.f32.gmra.mrb[0].mxu0 %v4304
    %v4377 = vpop.f32.mrb[0].mxu0
    %v4378 = vadd.f32 %v263, %v4377
    %v4379 = vpop.f32.mrb[0].mxu0
    %4380 = vdwg.mxu0
    %4381 = vmatprep.subr.mxu0 0.0
    %4382 = vmatpush1.msra.mxu0 %v171
    %4383 = vmatprep.subr.mxu0 0.0
    %4384 = vmatpush1.msra.mxu0 %v172
    %4385 = vmatprep.subr.mxu0 0.0
    %4386 = vmatpush1.msra.mxu0 %v173
    %4387 = vmatprep.subr.mxu0 0.0
    %4388 = vmatpush1.msra.mxu0 %v174
    %4389 = vmatprep.subr.mxu0 0.0
    %4390 = vmatpush1.msra.mxu0 %v175
    %4391 = vmatprep.subr.mxu0 0.0
    %4392 = vmatpush1.msra.mxu0 %v176
    %4393 = vmatprep.subr.mxu0 0.0
    %4394 = vmatpush1.msra.mxu0 %v177
    %4395 = vmatprep.subr.mxu0 0.0
    %4396 = vmatpush1.msra.mxu0 %v178
    %4397 = vmatprep.subr.mxu0 0.0
    %4398 = vmatpush1.msra.mxu0 %v179
    %4399 = vmatprep.subr.mxu0 0.0
    %4400 = vmatpush1.msra.mxu0 %v180
    %4401 = vmatprep.subr.mxu0 0.0
    %4402 = vmatpush1.msra.mxu0 %v181
    %4403 = vmatprep.subr.mxu0 0.0
    %4404 = vmatpush1.msra.mxu0 %v182
    %4405 = vmatprep.subr.mxu0 0.0
    %4406 = vmatpush1.msra.mxu0 %v183
    %4407 = vmatprep.subr.mxu0 0.0
    %4408 = vmatpush1.msra.mxu0 %v184
    %4409 = vmatprep.subr.mxu0 0.0
    %4410 = vmatpush1.msra.mxu0 %v185
    %4411 = vmatprep.subr.mxu0 0.0
    %4412 = vmatpush1.msra.mxu0 %v186
    %4413 = vmatprep.subr.mxu0 0.0
    %4414 = vmatpush1.msra.mxu0 %v187
    %4415 = vmatprep.subr.mxu0 0.0
    %4416 = vmatpush1.msra.mxu0 %v188
    %4417 = vmatprep.subr.mxu0 0.0
    %4418 = vmatpush1.msra.mxu0 %v189
    %4419 = vmatprep.subr.mxu0 0.0
    %4420 = vmatpush1.msra.mxu0 %v190
    %4421 = vmatprep.subr.mxu0 0.0
    %4422 = vmatpush1.msra.mxu0 %v191
    %4423 = vmatprep.subr.mxu0 0.0
    %4424 = vmatpush1.msra.mxu0 %v192
    %4425 = vmatprep.subr.mxu0 0.0
    %4426 = vmatpush1.msra.mxu0 %v193
    %4427 = vmatprep.subr.mxu0 0.0
    %4428 = vmatpush1.msra.mxu0 %v194
    %4429 = vmatprep.subr.mxu0 0.0
    %4430 = vmatpush1.msra.mxu0 %v195
    %4431 = vmatprep.subr.mxu0 0.0
    %4432 = vmatpush1.msra.mxu0 %v196
    %4433 = vmatprep.subr.mxu0 0.0
    %4434 = vmatpush1.msra.mxu0 %v197
    %4435 = vmatprep.subr.mxu0 0.0
    %4436 = vmatpush1.msra.mxu0 %v198
    %4437 = vmatprep.subr.mxu0 0.0
    %4438 = vmatpush1.msra.mxu0 %v199
    %4439 = vmatprep.subr.mxu0 0.0
    %4440 = vmatpush1.msra.mxu0 %v200
    %4441 = vmatprep.subr.mxu0 0.0
    %4442 = vmatpush1.msra.mxu0 %v201
    %4443 = vmatprep.subr.mxu0 0.0
    %4444 = vmatpush1.msra.mxu0 %v202
    %4445 = vmatprep.mubr.f32.mxu0 %v4307
    %4446 = vmatmul.mubr.f32.gmra.mrb[0].mxu0 %v4306
    %v4447 = vpop.f32.mrb[0].mxu0
    %v4448 = vadd.f32 %v4378, %v4447
    %v4449 = vpop.f32.mrb[0].mxu0
    %4450 = vdwg.mxu0
    %4451 = vmatprep.subr.mxu0 0.0
    %4452 = vmatpush1.msra.mxu0 %v203
    %4453 = vmatprep.subr.mxu0 0.0
    %4454 = vmatpush1.msra.mxu0 %v204
    %4455 = vmatprep.subr.mxu0 0.0
    %4456 = vmatpush1.msra.mxu0 %v205
    %4457 = vmatprep.subr.mxu0 0.0
    %4458 = vmatpush1.msra.mxu0 %v206
    %4459 = vmatprep.subr.mxu0 0.0
    %4460 = vmatpush1.msra.mxu0 %v207
    %4461 = vmatprep.subr.mxu0 0.0
    %4462 = vmatpush1.msra.mxu0 %v208
    %4463 = vmatprep.subr.mxu0 0.0
    %4464 = vmatpush1.msra.mxu0 %v209
    %4465 = vmatprep.subr.mxu0 0.0
    %4466 = vmatpush1.msra.mxu0 %v210
    %4467 = vmatprep.subr.mxu0 0.0
    %4468 = vmatpush1.msra.mxu0 %v211
    %4469 = vmatprep.subr.mxu0 0.0
    %4470 = vmatpush1.msra.mxu0 %v212
    %4471 = vmatprep.subr.mxu0 0.0
    %4472 = vmatpush1.msra.mxu0 %v213
    %4473 = vmatprep.subr.mxu0 0.0
    %4474 = vmatpush1.msra.mxu0 %v214
    %4475 = vmatprep.subr.mxu0 0.0
    %4476 = vmatpush1.msra.mxu0 %v215
    %4477 = vmatprep.subr.mxu0 0.0
    %4478 = vmatpush1.msra.mxu0 %v216
    %4479 = vmatprep.subr.mxu0 0.0
    %4480 = vmatpush1.msra.mxu0 %v217
    %4481 = vmatprep.subr.mxu0 0.0
    %4482 = vmatpush1.msra.mxu0 %v218
    %4483 = vmatprep.subr.mxu0 0.0
    %4484 = vmatpush1.msra.mxu0 %v219
    %4485 = vmatprep.subr.mxu0 0.0
    %4486 = vmatpush1.msra.mxu0 %v220
    %4487 = vmatprep.subr.mxu0 0.0
    %4488 = vmatpush1.msra.mxu0 %v221
    %4489 = vmatprep.subr.mxu0 0.0
    %4490 = vmatpush1.msra.mxu0 %v222
    %4491 = vmatprep.subr.mxu0 0.0
    %4492 = vmatpush1.msra.mxu0 %v223
    %4493 = vmatprep.subr.mxu0 0.0
    %4494 = vmatpush1.msra.mxu0 %v224
    %4495 = vmatprep.subr.mxu0 0.0
    %4496 = vmatpush1.msra.mxu0 %v225
    %4497 = vmatprep.subr.mxu0 0.0
    %4498 = vmatpush1.msra.mxu0 %v226
    %4499 = vmatprep.subr.mxu0 0.0
    %4500 = vmatpush1.msra.mxu0 %v227
    %4501 = vmatprep.subr.mxu0 0.0
    %4502 = vmatpush1.msra.mxu0 %v228
    %4503 = vmatprep.subr.mxu0 0.0
    %4504 = vmatpush1.msra.mxu0 %v229
    %4505 = vmatprep.subr.mxu0 0.0
    %4506 = vmatpush1.msra.mxu0 %v230
    %4507 = vmatprep.subr.mxu0 0.0
    %4508 = vmatpush1.msra.mxu0 %v231
    %4509 = vmatprep.subr.mxu0 0.0
    %4510 = vmatpush1.msra.mxu0 %v232
    %4511 = vmatprep.subr.mxu0 0.0
    %4512 = vmatpush1.msra.mxu0 %v233
    %4513 = vmatprep.subr.mxu0 0.0
    %4514 = vmatpush1.msra.mxu0 %v234
    %4515 = vmatprep.mubr.f32.mxu0 %v4309
    %4516 = vmatmul.mubr.f32.gmra.mrb[0].mxu0 %v4308
    %v4517 = vpop.f32.mrb[0].mxu0
    %v4518 = vadd.f32 %v4448, %v4517
    %v4519 = vpop.f32.mrb[0].mxu0
    %4520 = vdwg.mxu0
    %4521 = vmatprep.subr.mxu0 0.0
    %4522 = vmatpush1.msra.mxu0 %v235
    %4523 = vmatprep.subr.mxu0 0.0
    %4524 = vmatpush1.msra.mxu0 %v236
    %4525 = vmatprep.subr.mxu0 0.0
    %4526 = vmatpush1.msra.mxu0 %v237
    %4527 = vmatprep.subr.mxu0 0.0
    %4528 = vmatpush1.msra.mxu0 %v238
    %4529 = vmatprep.subr.mxu0 0.0
    %4530 = vmatpush1.msra.mxu0 %v239
    %4531 = vmatprep.subr.mxu0 0.0
    %4532 = vmatpush1.msra.mxu0 %v240
    %4533 = vmatprep.subr.mxu0 0.0
    %4534 = vmatpush1.msra.mxu0 %v241
    %4535 = vmatprep.subr.mxu0 0.0
    %4536 = vmatpush1.msra.mxu0 %v242
    %4537 = vmatprep.subr.mxu0 0.0
    %4538 = vmatpush1.msra.mxu0 %v243
    %4539 = vmatprep.subr.mxu0 0.0
    %4540 = vmatpush1.msra.mxu0 %v244
    %4541 = vmatprep.subr.mxu0 0.0
    %4542 = vmatpush1.msra.mxu0 %v245
    %4543 = vmatprep.subr.mxu0 0.0
    %4544 = vmatpush1.msra.mxu0 %v246
    %4545 = vmatprep.subr.mxu0 0.0
    %4546 = vmatpush1.msra.mxu0 %v247
    %4547 = vmatprep.subr.mxu0 0.0
    %4548 = vmatpush1.msra.mxu0 %v248
    %4549 = vmatprep.subr.mxu0 0.0
    %4550 = vmatpush1.msra.mxu0 %v249
    %4551 = vmatprep.subr.mxu0 0.0
    %4552 = vmatpush1.msra.mxu0 %v250
    %4553 = vmatprep.subr.mxu0 0.0
    %4554 = vmatpush1.msra.mxu0 0.0
    %4555 = vmatprep.subr.mxu0 0.0
    %4556 = vmatpush1.msra.mxu0 0.0
    %4557 = vmatprep.subr.mxu0 0.0
    %4558 = vmatpush1.msra.mxu0 0.0
    %4559 = vmatprep.subr.mxu0 0.0
    %4560 = vmatpush1.msra.mxu0 0.0
    %4561 = vmatprep.subr.mxu0 0.0
    %4562 = vmatpush1.msra.mxu0 0.0
    %4563 = vmatprep.subr.mxu0 0.0
    %4564 = vmatpush1.msra.mxu0 0.0
    %4565 = vmatprep.subr.mxu0 0.0
    %4566 = vmatpush1.msra.mxu0 0.0
    %4567 = vmatprep.subr.mxu0 0.0
    %4568 = vmatpush1.msra.mxu0 0.0
    %4569 = vmatprep.subr.mxu0 0.0
    %4570 = vmatpush1.msra.mxu0 0.0
    %4571 = vmatprep.subr.mxu0 0.0
    %4572 = vmatpush1.msra.mxu0 0.0
    %4573 = vmatprep.subr.mxu0 0.0
    %4574 = vmatpush1.msra.mxu0 0.0
    %4575 = vmatprep.subr.mxu0 0.0
    %4576 = vmatpush1.msra.mxu0 0.0
    %4577 = vmatprep.subr.mxu0 0.0
    %4578 = vmatpush1.msra.mxu0 0.0
    %4579 = vmatprep.subr.mxu0 0.0
    %4580 = vmatpush1.msra.mxu0 0.0
    %4581 = vmatprep.subr.mxu0 0.0
    %4582 = vmatpush1.msra.mxu0 0.0
    %4583 = vmatprep.subr.mxu0 0.0
    %4584 = vmatpush1.msra.mxu0 0.0
    %4585 = vmatprep.mubr.f32.mxu0 0.0
    %4586 = vmatmul.mubr.f32.gmra.mrb[0].mxu0 %v4310
    %v4587 = vpop.f32.mrb[0].mxu0
    %v4588 = vadd.f32 %v4518, %v4587
    %v4589 = vpop.f32.mrb[0].mxu0
    %4590 = vdwg.mxu0
    %v4591 = vmax.f32 %v4588, 0.0
    %4592 = vst [vmem:[#allocation2 + $0x70] sm:$0xff] %v4591
    %v4593 = vld [vmem:[%s3] sm:$0xf]
    %v4594 = vld [vmem:[%s3 + $0x4] sm:$0xf]
    %v4595 = vld [vmem:[%s3 + $0x8] sm:$0xf]
    %v4596 = vld [vmem:[%s3 + $0xc] sm:$0xf]
    %v4597 = vld [vmem:[%s3 + $0x10] sm:$0xf]
    %v4598 = vld [vmem:[%s3 + $0x14] sm:$0xf]
    %v4599 = vld [vmem:[%s3 + $0x18] sm:$0xf]
    %v4600 = vld [vmem:[%s3 + $0x1c] sm:$0xf]
    %v4601 = vld [vmem:[%s3 + $0x20] sm:$0xf]
    %v4602 = vld [vmem:[%s3 + $0x24] sm:$0xf]
    %v4603 = vld [vmem:[%s3 + $0x28] sm:$0xf]
    %v4604 = vld [vmem:[%s3 + $0x2c] sm:$0xf]
    %v4605 = vld [vmem:[%s3 + $0x30] sm:$0xf]
    %v4606 = vld [vmem:[%s3 + $0x34] sm:$0xf]
    %v4607 = vld [vmem:[%s3 + $0x38] sm:$0xf]
    %v4608 = vld [vmem:[%s3 + $0x3c] sm:$0xf]
    %v4609 = vld [vmem:[%s3 + $0x40] sm:$0xf]
    %v4610 = vld [vmem:[%s3 + $0x44] sm:$0xf]
    %v4611 = vld [vmem:[%s3 + $0x48] sm:$0xf]
    %v4612 = vld [vmem:[%s3 + $0x4c] sm:$0xf]
    %v4613 = vld [vmem:[%s3 + $0x50] sm:$0xf]
    %v4614 = vld [vmem:[%s3 + $0x54] sm:$0xf]
    %v4615 = vld [vmem:[%s3 + $0x58] sm:$0xf]
    %v4616 = vld [vmem:[%s3 + $0x5c] sm:$0xf]
    %v4617 = vld [vmem:[%s3 + $0x60] sm:$0xf]
    %v4618 = vld [vmem:[%s3 + $0x64] sm:$0xf]
    %v4619 = vld [vmem:[%s3 + $0x68] sm:$0xf]
    %v4620 = vld [vmem:[%s3 + $0x6c] sm:$0xf]
    %v4621 = vld [vmem:[%s3 + $0x70] sm:$0xf]
    %v4622 = vld [vmem:[%s3 + $0x74] sm:$0xf]
    %v4623 = vld [vmem:[%s3 + $0x78] sm:$0xf]
    %v4624 = vld [vmem:[%s3 + $0x7c] sm:$0xf]
    %v4625 = vld [vmem:[%s3 + $0x80] sm:$0xf]
    %v4626 = vld [vmem:[%s3 + $0x84] sm:$0xf]
    %v4627 = vld [vmem:[%s3 + $0x88] sm:$0xf]
    %v4628 = vld [vmem:[%s3 + $0x8c] sm:$0xf]
    %v4629 = vld [vmem:[%s3 + $0x90] sm:$0xf]
    %v4630 = vld [vmem:[%s3 + $0x94] sm:$0xf]
    %v4631 = vld [vmem:[%s3 + $0x98] sm:$0xf]
    %v4632 = vld [vmem:[%s3 + $0x9c] sm:$0xf]
    %v4633 = vld [vmem:[%s3 + $0xa0] sm:$0xf]
    %v4634 = vld [vmem:[%s3 + $0xa4] sm:$0xf]
    %v4635 = vld [vmem:[%s3 + $0xa8] sm:$0xf]
    %v4636 = vld [vmem:[%s3 + $0xac] sm:$0xf]
    %v4637 = vld [vmem:[%s3 + $0xb0] sm:$0xf]
    %v4638 = vld [vmem:[%s3 + $0xb4] sm:$0xf]
    %v4639 = vld [vmem:[%s3 + $0xb8] sm:$0xf]
    %v4640 = vld [vmem:[%s3 + $0xbc] sm:$0xf]
    %v4641 = vld [vmem:[%s3 + $0xc0] sm:$0xf]
    %v4642 = vld [vmem:[%s3 + $0xc4] sm:$0xf]
    %v4643 = vld [vmem:[%s3 + $0xc8] sm:$0xf]
    %v4644 = vld [vmem:[%s3 + $0xcc] sm:$0xf]
    %v4645 = vld [vmem:[%s3 + $0xd0] sm:$0xf]
    %v4646 = vld [vmem:[%s3 + $0xd4] sm:$0xf]
    %v4647 = vld [vmem:[%s3 + $0xd8] sm:$0xf]
    %v4648 = vld [vmem:[%s3 + $0xdc] sm:$0xf]
    %v4649 = vld [vmem:[%s3 + $0xe0] sm:$0xf]
    %v4650 = vld [vmem:[%s3 + $0xe4] sm:$0xf]
    %v4651 = vld [vmem:[%s3 + $0xe8] sm:$0xf]
    %v4652 = vld [vmem:[%s3 + $0xec] sm:$0xf]
    %v4653 = vld [vmem:[%s3 + $0xf0] sm:$0xf]
    %v4654 = vld [vmem:[%s3 + $0xf4] sm:$0xf]
    %v4655 = vld [vmem:[%s3 + $0xf8] sm:$0xf]
    %v4656 = vld [vmem:[%s3 + $0xfc] sm:$0xf]
    %v4657 = vld [vmem:[%s3 + $0x100] sm:$0xf]
    %v4658 = vld [vmem:[%s3 + $0x104] sm:$0xf]
    %v4659 = vld [vmem:[%s3 + $0x108] sm:$0xf]
    %v4660 = vld [vmem:[%s3 + $0x10c] sm:$0xf]
    %v4661 = vld [vmem:[%s3 + $0x110] sm:$0xf]
    %v4662 = vld [vmem:[%s3 + $0x114] sm:$0xf]
    %v4663 = vld [vmem:[%s3 + $0x118] sm:$0xf]
    %v4664 = vld [vmem:[%s3 + $0x11c] sm:$0xf]
    %v4665 = vld [vmem:[%s3 + $0x120] sm:$0xf]
    %v4666 = vld [vmem:[%s3 + $0x124] sm:$0xf]
    %v4667 = vld [vmem:[%s3 + $0x128] sm:$0xf]
    %v4668 = vld [vmem:[%s3 + $0x12c] sm:$0xf]
    %v4669 = vld [vmem:[%s3 + $0x130] sm:$0xf]
    %v4670 = vld [vmem:[%s3 + $0x134] sm:$0xf]
    %v4671 = vld [vmem:[%s3 + $0x138] sm:$0xf]
    %v4672 = vld [vmem:[%s3 + $0x13c] sm:$0xf]
    %v4673 = vld [vmem:[%s3 + $0x140] sm:$0xf]
    %v4674 = vld [vmem:[%s3 + $0x144] sm:$0xf]
    %v4675 = vld [vmem:[%s3 + $0x148] sm:$0xf]
    %v4676 = vld [vmem:[%s3 + $0x14c] sm:$0xf]
    %v4677 = vld [vmem:[%s3 + $0x150] sm:$0xf]
    %v4678 = vld [vmem:[%s3 + $0x154] sm:$0xf]
    %v4679 = vld [vmem:[%s3 + $0x158] sm:$0xf]
    %v4680 = vld [vmem:[%s3 + $0x15c] sm:$0xf]
    %v4681 = vld [vmem:[%s3 + $0x160] sm:$0xf]
    %v4682 = vld [vmem:[%s3 + $0x164] sm:$0xf]
    %v4683 = vld [vmem:[%s3 + $0x168] sm:$0xf]
    %v4684 = vld [vmem:[%s3 + $0x16c] sm:$0xf]
    %v4685 = vld [vmem:[%s3 + $0x170] sm:$0xf]
    %v4686 = vld [vmem:[%s3 + $0x174] sm:$0xf]
    %v4687 = vld [vmem:[%s3 + $0x178] sm:$0xf]
    %v4688 = vld [vmem:[%s3 + $0x17c] sm:$0xf]
    %v4689 = vld [vmem:[%s3 + $0x180] sm:$0xf]
    %v4690 = vld [vmem:[%s3 + $0x184] sm:$0xf]
    %v4691 = vld [vmem:[%s3 + $0x188] sm:$0xf]
    %v4692 = vld [vmem:[%s3 + $0x18c] sm:$0xf]
    %v4693 = vld [vmem:[%s3 + $0x190] sm:$0xf]
    %v4694 = vld [vmem:[%s3 + $0x194] sm:$0xf]
    %v4695 = vld [vmem:[%s3 + $0x198] sm:$0xf]
    %v4696 = vld [vmem:[%s3 + $0x19c] sm:$0xf]
    %v4697 = vld [vmem:[%s3 + $0x1a0] sm:$0xf]
    %v4698 = vld [vmem:[%s3 + $0x1a4] sm:$0xf]
    %v4699 = vld [vmem:[%s3 + $0x1a8] sm:$0xf]
    %v4700 = vld [vmem:[%s3 + $0x1ac] sm:$0xf]
    %v4701 = vld [vmem:[%s3 + $0x1b0] sm:$0xf]
    %v4702 = vld [vmem:[%s3 + $0x1b4] sm:$0xf]
    %v4703 = vld [vmem:[%s3 + $0x1b8] sm:$0xf]
    %v4704 = vld [vmem:[%s3 + $0x1bc] sm:$0xf]
    %v4705 = vld [vmem:[%s3 + $0x1c0] sm:$0xf]
    %v4706 = vld [vmem:[%s3 + $0x1c4] sm:$0xf]
    %v4707 = vld [vmem:[%s3 + $0x1c8] sm:$0xf]
    %v4708 = vld [vmem:[%s3 + $0x1cc] sm:$0xf]
    %v4709 = vld [vmem:[%s3 + $0x1d0] sm:$0xf]
    %v4710 = vld [vmem:[%s3 + $0x1d4] sm:$0xf]
    %v4711 = vld [vmem:[%s3 + $0x1d8] sm:$0xf]
    %v4712 = vld [vmem:[%s3 + $0x1dc] sm:$0xf]
    %v4713 = vld [vmem:[%s3 + $0x1e0] sm:$0xf]
    %v4714 = vld [vmem:[%s3 + $0x1e4] sm:$0xf]
    %v4715 = vld [vmem:[%s3 + $0x1e8] sm:$0xf]
    %v4716 = vld [vmem:[%s3 + $0x1ec] sm:$0xf]
    %v4717 = vld [vmem:[%s3 + $0x1f0] sm:$0xf]
    %v4718 = vld [vmem:[%s3 + $0x1f4] sm:$0xf]
    %v4719 = vld [vmem:[%s3 + $0x1f8] sm:$0xf]
    %v4720 = vld [vmem:[%s3 + $0x1fc] sm:$0xf]
    %v4721 = vld [vmem:[%s3 + $0x200] sm:$0xf]
    %v4722 = vld [vmem:[%s3 + $0x204] sm:$0xf]
    %v4723 = vld [vmem:[%s3 + $0x208] sm:$0xf]
    %v4724 = vld [vmem:[%s3 + $0x20c] sm:$0xf]
    %v4725 = vld [vmem:[%s3 + $0x210] sm:$0xf]
    %v4726 = vld [vmem:[%s3 + $0x214] sm:$0xf]
    %v4727 = vld [vmem:[%s3 + $0x218] sm:$0xf]
    %v4728 = vld [vmem:[%s3 + $0x21c] sm:$0xf]
    %v4729 = vld [vmem:[%s3 + $0x220] sm:$0xf]
    %v4730 = vld [vmem:[%s3 + $0x224] sm:$0xf]
    %v4731 = vld [vmem:[%s3 + $0x228] sm:$0xf]
    %v4732 = vld [vmem:[%s3 + $0x22c] sm:$0xf]
    %v4733 = vld [vmem:[%s3 + $0x230] sm:$0xf]
    %v4734 = vld [vmem:[%s3 + $0x234] sm:$0xf]
    %v4735 = vld [vmem:[%s3 + $0x238] sm:$0xf]
    %v4736 = vld [vmem:[%s3 + $0x23c] sm:$0xf]
    %v4737 = vld [vmem:[%s3 + $0x240] sm:$0xf]
    %v4738 = vld [vmem:[%s3 + $0x244] sm:$0xf]
    %v4739 = vld [vmem:[%s3 + $0x248] sm:$0xf]
    %v4740 = vld [vmem:[%s3 + $0x24c] sm:$0xf]
    %v4741 = vld [vmem:[%s3 + $0x250] sm:$0xf]
    %v4742 = vld [vmem:[%s3 + $0x254] sm:$0xf]
    %v4743 = vld [vmem:[%s3 + $0x258] sm:$0xf]
    %v4744 = vld [vmem:[%s3 + $0x25c] sm:$0xf]
    %v4745 = vld [vmem:[%s3 + $0x260] sm:$0xf]
    %v4746 = vld [vmem:[%s3 + $0x264] sm:$0xf]
    %v4747 = vld [vmem:[%s3 + $0x268] sm:$0xf]
    %v4748 = vld [vmem:[%s3 + $0x26c] sm:$0xf]
    %v4749 = vld [vmem:[%s3 + $0x270] sm:$0xf]
    %v4750 = vld [vmem:[%s3 + $0x274] sm:$0xf]
    %v4751 = vld [vmem:[%s3 + $0x278] sm:$0xf]
    %v4752 = vld [vmem:[%s3 + $0x27c] sm:$0xf]
    %v4753 = vld [vmem:[%s3 + $0x280] sm:$0xf]
    %v4754 = vld [vmem:[%s3 + $0x284] sm:$0xf]
    %v4755 = vld [vmem:[%s3 + $0x288] sm:$0xf]
    %v4756 = vld [vmem:[%s3 + $0x28c] sm:$0xf]
    %v4757 = vld [vmem:[%s3 + $0x290] sm:$0xf]
    %v4758 = vld [vmem:[%s3 + $0x294] sm:$0xf]
    %v4759 = vld [vmem:[%s3 + $0x298] sm:$0xf]
    %v4760 = vld [vmem:[%s3 + $0x29c] sm:$0xf]
    %v4761 = vld [vmem:[%s3 + $0x2a0] sm:$0xf]
    %v4762 = vld [vmem:[%s3 + $0x2a4] sm:$0xf]
    %v4763 = vld [vmem:[%s3 + $0x2a8] sm:$0xf]
    %v4764 = vld [vmem:[%s3 + $0x2ac] sm:$0xf]
    %v4765 = vld [vmem:[%s3 + $0x2b0] sm:$0xf]
    %v4766 = vld [vmem:[%s3 + $0x2b4] sm:$0xf]
    %v4767 = vld [vmem:[%s3 + $0x2b8] sm:$0xf]
    %v4768 = vld [vmem:[%s3 + $0x2bc] sm:$0xf]
    %v4769 = vld [vmem:[%s3 + $0x2c0] sm:$0xf]
    %v4770 = vld [vmem:[%s3 + $0x2c4] sm:$0xf]
    %v4771 = vld [vmem:[%s3 + $0x2c8] sm:$0xf]
    %v4772 = vld [vmem:[%s3 + $0x2cc] sm:$0xf]
    %v4773 = vld [vmem:[%s3 + $0x2d0] sm:$0xf]
    %v4774 = vld [vmem:[%s3 + $0x2d4] sm:$0xf]
    %v4775 = vld [vmem:[%s3 + $0x2d8] sm:$0xf]
    %v4776 = vld [vmem:[%s3 + $0x2dc] sm:$0xf]
    %v4777 = vld [vmem:[%s3 + $0x2e0] sm:$0xf]
    %v4778 = vld [vmem:[%s3 + $0x2e4] sm:$0xf]
    %v4779 = vld [vmem:[%s3 + $0x2e8] sm:$0xf]
    %v4780 = vld [vmem:[%s3 + $0x2ec] sm:$0xf]
    %v4781 = vld [vmem:[%s3 + $0x2f0] sm:$0xf]
    %v4782 = vld [vmem:[%s3 + $0x2f4] sm:$0xf]
    %v4783 = vld [vmem:[%s3 + $0x2f8] sm:$0xf]
    %v4784 = vld [vmem:[%s3 + $0x2fc] sm:$0xf]
    %v4785 = vld [vmem:[%s3 + $0x300] sm:$0xf]
    %v4786 = vld [vmem:[%s3 + $0x304] sm:$0xf]
    %v4787 = vld [vmem:[%s3 + $0x308] sm:$0xf]
    %v4788 = vld [vmem:[%s3 + $0x30c] sm:$0xf]
    %v4789 = vld [vmem:[%s3 + $0x310] sm:$0xf]
    %v4790 = vld [vmem:[%s3 + $0x314] sm:$0xf]
    %v4791 = vld [vmem:[%s3 + $0x318] sm:$0xf]
    %v4792 = vld [vmem:[%s3 + $0x31c] sm:$0xf]
    %v4793 = vld [vmem:[%s3 + $0x320] sm:$0xf]
    %v4794 = vld [vmem:[%s3 + $0x324] sm:$0xf]
    %v4795 = vld [vmem:[%s3 + $0x328] sm:$0xf]
    %v4796 = vld [vmem:[%s3 + $0x32c] sm:$0xf]
    %v4797 = vld [vmem:[%s3 + $0x330] sm:$0xf]
    %v4798 = vld [vmem:[%s3 + $0x334] sm:$0xf]
    %v4799 = vld [vmem:[%s3 + $0x338] sm:$0xf]
    %v4800 = vld [vmem:[%s3 + $0x33c] sm:$0xf]
    %v4801 = vld [vmem:[%s3 + $0x340] sm:$0xf]
    %v4802 = vld [vmem:[%s3 + $0x344] sm:$0xf]
    %v4803 = vld [vmem:[%s3 + $0x348] sm:$0xf]
    %v4804 = vld [vmem:[%s3 + $0x34c] sm:$0xf]
    %v4805 = vld [vmem:[%s3 + $0x350] sm:$0xf]
    %v4806 = vld [vmem:[%s3 + $0x354] sm:$0xf]
    %v4807 = vld [vmem:[%s3 + $0x358] sm:$0xf]
    %v4808 = vld [vmem:[%s3 + $0x35c] sm:$0xf]
    %v4809 = vld [vmem:[%s3 + $0x360] sm:$0xf]
    %v4810 = vld [vmem:[%s3 + $0x364] sm:$0xf]
    %v4811 = vld [vmem:[%s3 + $0x368] sm:$0xf]
    %v4812 = vld [vmem:[%s3 + $0x36c] sm:$0xf]
    %v4813 = vld [vmem:[%s3 + $0x370] sm:$0xf]
    %v4814 = vld [vmem:[%s3 + $0x374] sm:$0xf]
    %v4815 = vld [vmem:[%s3 + $0x378] sm:$0xf]
    %v4816 = vld [vmem:[%s3 + $0x37c] sm:$0xf]
    %v4817 = vld [vmem:[%s3 + $0x380] sm:$0xf]
    %v4818 = vld [vmem:[%s3 + $0x384] sm:$0xf]
    %v4819 = vld [vmem:[%s3 + $0x388] sm:$0xf]
    %v4820 = vld [vmem:[%s3 + $0x38c] sm:$0xf]
    %v4821 = vld [vmem:[%s3 + $0x390] sm:$0xf]
    %v4822 = vld [vmem:[%s3 + $0x394] sm:$0xf]
    %v4823 = vld [vmem:[%s3 + $0x398] sm:$0xf]
    %v4824 = vld [vmem:[%s3 + $0x39c] sm:$0xf]
    %v4825 = vld [vmem:[%s3 + $0x3a0] sm:$0xf]
    %v4826 = vld [vmem:[%s3 + $0x3a4] sm:$0xf]
    %v4827 = vld [vmem:[%s3 + $0x3a8] sm:$0xf]
    %v4828 = vld [vmem:[%s3 + $0x3ac] sm:$0xf]
    %v4829 = vld [vmem:[%s3 + $0x3b0] sm:$0xf]
    %v4830 = vld [vmem:[%s3 + $0x3b4] sm:$0xf]
    %v4831 = vld [vmem:[%s3 + $0x3b8] sm:$0xf]
    %v4832 = vld [vmem:[%s3 + $0x3bc] sm:$0xf]
    %v4833 = vunpack.c.l.bf16 %v4593
    %v4834 = vunpack.c.l.bf16 %v4594
    %v4835 = vunpack.c.l.bf16 %v4595
    %v4836 = vunpack.c.l.bf16 %v4596
    %v4837 = vunpack.c.l.bf16 %v4597
    %v4838 = vunpack.c.l.bf16 %v4598
    %v4839 = vunpack.c.l.bf16 %v4599
    %v4840 = vunpack.c.l.bf16 %v4600
    %v4841 = vunpack.c.l.bf16 %v4601
    %v4842 = vunpack.c.l.bf16 %v4602
    %v4843 = vunpack.c.l.bf16 %v4603
    %v4844 = vunpack.c.l.bf16 %v4604
    %v4845 = vunpack.c.l.bf16 %v4605
    %v4846 = vunpack.c.l.bf16 %v4606
    %v4847 = vunpack.c.l.bf16 %v4607
    %v4848 = vunpack.c.l.bf16 %v4608
    %v4849 = vunpack.c.l.bf16 %v4609
    %v4850 = vunpack.c.l.bf16 %v4610
    %v4851 = vunpack.c.l.bf16 %v4611
    %v4852 = vunpack.c.l.bf16 %v4612
    %v4853 = vunpack.c.l.bf16 %v4613
    %v4854 = vunpack.c.l.bf16 %v4614
    %v4855 = vunpack.c.l.bf16 %v4615
    %v4856 = vunpack.c.l.bf16 %v4616
    %v4857 = vunpack.c.l.bf16 %v4617
    %v4858 = vunpack.c.l.bf16 %v4618
    %v4859 = vunpack.c.l.bf16 %v4619
    %v4860 = vunpack.c.l.bf16 %v4620
    %v4861 = vunpack.c.l.bf16 %v4621
    %v4862 = vunpack.c.l.bf16 %v4622
    %v4863 = vunpack.c.l.bf16 %v4623
    %v4864 = vunpack.c.l.bf16 %v4624
    %v4865 = vunpack.c.l.bf16 %v4625
    %v4866 = vunpack.c.l.bf16 %v4626
    %v4867 = vunpack.c.l.bf16 %v4627
    %v4868 = vunpack.c.l.bf16 %v4628
    %v4869 = vunpack.c.l.bf16 %v4629
    %v4870 = vunpack.c.l.bf16 %v4630
    %v4871 = vunpack.c.l.bf16 %v4631
    %v4872 = vunpack.c.l.bf16 %v4632
    %v4873 = vunpack.c.l.bf16 %v4633
    %v4874 = vunpack.c.l.bf16 %v4634
    %v4875 = vunpack.c.l.bf16 %v4635
    %v4876 = vunpack.c.l.bf16 %v4636
    %v4877 = vunpack.c.l.bf16 %v4637
    %v4878 = vunpack.c.l.bf16 %v4638
    %v4879 = vunpack.c.l.bf16 %v4639
    %v4880 = vunpack.c.l.bf16 %v4640
    %v4881 = vunpack.c.l.bf16 %v4641
    %v4882 = vunpack.c.l.bf16 %v4642
    %v4883 = vunpack.c.l.bf16 %v4643
    %v4884 = vunpack.c.l.bf16 %v4644
    %v4885 = vunpack.c.l.bf16 %v4645
    %v4886 = vunpack.c.l.bf16 %v4646
    %v4887 = vunpack.c.l.bf16 %v4647
    %v4888 = vunpack.c.l.bf16 %v4648
    %v4889 = vunpack.c.l.bf16 %v4649
    %v4890 = vunpack.c.l.bf16 %v4650
    %v4891 = vunpack.c.l.bf16 %v4651
    %v4892 = vunpack.c.l.bf16 %v4652
    %v4893 = vunpack.c.l.bf16 %v4653
    %v4894 = vunpack.c.l.bf16 %v4654
    %v4895 = vunpack.c.l.bf16 %v4655
    %v4896 = vunpack.c.l.bf16 %v4656
    %v4897 = vunpack.c.l.bf16 %v4657
    %v4898 = vunpack.c.l.bf16 %v4658
    %v4899 = vunpack.c.l.bf16 %v4659
    %v4900 = vunpack.c.l.bf16 %v4660
    %v4901 = vunpack.c.l.bf16 %v4661
    %v4902 = vunpack.c.l.bf16 %v4662
    %v4903 = vunpack.c.l.bf16 %v4663
    %v4904 = vunpack.c.l.bf16 %v4664
    %v4905 = vunpack.c.l.bf16 %v4665
    %v4906 = vunpack.c.l.bf16 %v4666
    %v4907 = vunpack.c.l.bf16 %v4667
    %v4908 = vunpack.c.l.bf16 %v4668
    %v4909 = vunpack.c.l.bf16 %v4669
    %v4910 = vunpack.c.l.bf16 %v4670
    %v4911 = vunpack.c.l.bf16 %v4671
    %v4912 = vunpack.c.l.bf16 %v4672
    %v4913 = vunpack.c.l.bf16 %v4673
    %v4914 = vunpack.c.l.bf16 %v4674
    %v4915 = vunpack.c.l.bf16 %v4675
    %v4916 = vunpack.c.l.bf16 %v4676
    %v4917 = vunpack.c.l.bf16 %v4677
    %v4918 = vunpack.c.l.bf16 %v4678
    %v4919 = vunpack.c.l.bf16 %v4679
    %v4920 = vunpack.c.l.bf16 %v4680
    %v4921 = vunpack.c.l.bf16 %v4681
    %v4922 = vunpack.c.l.bf16 %v4682
    %v4923 = vunpack.c.l.bf16 %v4683
    %v4924 = vunpack.c.l.bf16 %v4684
    %v4925 = vunpack.c.l.bf16 %v4685
    %v4926 = vunpack.c.l.bf16 %v4686
    %v4927 = vunpack.c.l.bf16 %v4687
    %v4928 = vunpack.c.l.bf16 %v4688
    %v4929 = vunpack.c.l.bf16 %v4689
    %v4930 = vunpack.c.l.bf16 %v4690
    %v4931 = vunpack.c.l.bf16 %v4691
    %v4932 = vunpack.c.l.bf16 %v4692
    %v4933 = vunpack.c.l.bf16 %v4693
    %v4934 = vunpack.c.l.bf16 %v4694
    %v4935 = vunpack.c.l.bf16 %v4695
    %v4936 = vunpack.c.l.bf16 %v4696
    %v4937 = vunpack.c.l.bf16 %v4697
    %v4938 = vunpack.c.l.bf16 %v4698
    %v4939 = vunpack.c.l.bf16 %v4699
    %v4940 = vunpack.c.l.bf16 %v4700
    %v4941 = vunpack.c.l.bf16 %v4701
    %v4942 = vunpack.c.l.bf16 %v4702
    %v4943 = vunpack.c.l.bf16 %v4703
    %v4944 = vunpack.c.l.bf16 %v4704
    %v4945 = vunpack.c.l.bf16 %v4705
    %v4946 = vunpack.c.l.bf16 %v4706
    %v4947 = vunpack.c.l.bf16 %v4707
    %v4948 = vunpack.c.l.bf16 %v4708
    %v4949 = vunpack.c.l.bf16 %v4709
    %v4950 = vunpack.c.l.bf16 %v4710
    %v4951 = vunpack.c.l.bf16 %v4711
    %v4952 = vunpack.c.l.bf16 %v4712
    %v4953 = vunpack.c.l.bf16 %v4713
    %v4954 = vunpack.c.l.bf16 %v4714
    %v4955 = vunpack.c.l.bf16 %v4715
    %v4956 = vunpack.c.l.bf16 %v4716
    %v4957 = vunpack.c.l.bf16 %v4717
    %v4958 = vunpack.c.l.bf16 %v4718
    %v4959 = vunpack.c.l.bf16 %v4719
    %v4960 = vunpack.c.l.bf16 %v4720
    %v4961 = vunpack.c.l.bf16 %v4721
    %v4962 = vunpack.c.l.bf16 %v4722
    %v4963 = vunpack.c.l.bf16 %v4723
    %v4964 = vunpack.c.l.bf16 %v4724
    %v4965 = vunpack.c.l.bf16 %v4725
    %v4966 = vunpack.c.l.bf16 %v4726
    %v4967 = vunpack.c.l.bf16 %v4727
    %v4968 = vunpack.c.l.bf16 %v4728
    %v4969 = vunpack.c.l.bf16 %v4729
    %v4970 = vunpack.c.l.bf16 %v4730
    %v4971 = vunpack.c.l.bf16 %v4731
    %v4972 = vunpack.c.l.bf16 %v4732
    %v4973 = vunpack.c.l.bf16 %v4733
    %v4974 = vunpack.c.l.bf16 %v4734
    %v4975 = vunpack.c.l.bf16 %v4735
    %v4976 = vunpack.c.l.bf16 %v4736
    %v4977 = vunpack.c.l.bf16 %v4737
    %v4978 = vunpack.c.l.bf16 %v4738
    %v4979 = vunpack.c.l.bf16 %v4739
    %v4980 = vunpack.c.l.bf16 %v4740
    %v4981 = vunpack.c.l.bf16 %v4741
    %v4982 = vunpack.c.l.bf16 %v4742
    %v4983 = vunpack.c.l.bf16 %v4743
    %v4984 = vunpack.c.l.bf16 %v4744
    %v4985 = vunpack.c.l.bf16 %v4745
    %v4986 = vunpack.c.l.bf16 %v4746
    %v4987 = vunpack.c.l.bf16 %v4747
    %v4988 = vunpack.c.l.bf16 %v4748
    %v4989 = vunpack.c.l.bf16 %v4749
    %v4990 = vunpack.c.l.bf16 %v4750
    %v4991 = vunpack.c.l.bf16 %v4751
    %v4992 = vunpack.c.l.bf16 %v4752
    %v4993 = vunpack.c.l.bf16 %v4753
    %v4994 = vunpack.c.l.bf16 %v4754
    %v4995 = vunpack.c.l.bf16 %v4755
    %v4996 = vunpack.c.l.bf16 %v4756
    %v4997 = vunpack.c.l.bf16 %v4757
    %v4998 = vunpack.c.l.bf16 %v4758
    %v4999 = vunpack.c.l.bf16 %v4759
    %v5000 = vunpack.c.l.bf16 %v4760
    %v5001 = vunpack.c.l.bf16 %v4761
    %v5002 = vunpack.c.l.bf16 %v4762
    %v5003 = vunpack.c.l.bf16 %v4763
    %v5004 = vunpack.c.l.bf16 %v4764
    %v5005 = vunpack.c.l.bf16 %v4765
    %v5006 = vunpack.c.l.bf16 %v4766
    %v5007 = vunpack.c.l.bf16 %v4767
    %v5008 = vunpack.c.l.bf16 %v4768
    %v5009 = vunpack.c.l.bf16 %v4769
    %v5010 = vunpack.c.l.bf16 %v4770
    %v5011 = vunpack.c.l.bf16 %v4771
    %v5012 = vunpack.c.l.bf16 %v4772
    %v5013 = vunpack.c.l.bf16 %v4773
    %v5014 = vunpack.c.l.bf16 %v4774
    %v5015 = vunpack.c.l.bf16 %v4775
    %v5016 = vunpack.c.l.bf16 %v4776
    %v5017 = vunpack.c.l.bf16 %v4777
    %v5018 = vunpack.c.l.bf16 %v4778
    %v5019 = vunpack.c.l.bf16 %v4779
    %v5020 = vunpack.c.l.bf16 %v4780
    %v5021 = vunpack.c.l.bf16 %v4781
    %v5022 = vunpack.c.l.bf16 %v4782
    %v5023 = vunpack.c.l.bf16 %v4783
    %v5024 = vunpack.c.l.bf16 %v4784
    %v5025 = vunpack.c.l.bf16 %v4785
    %v5026 = vunpack.c.l.bf16 %v4786
    %v5027 = vunpack.c.l.bf16 %v4787
    %v5028 = vunpack.c.l.bf16 %v4788
    %v5029 = vunpack.c.l.bf16 %v4789
    %v5030 = vunpack.c.l.bf16 %v4790
    %v5031 = vunpack.c.l.bf16 %v4791
    %v5032 = vunpack.c.l.bf16 %v4792
    %v5033 = vunpack.c.l.bf16 %v4793
    %v5034 = vunpack.c.l.bf16 %v4794
    %v5035 = vunpack.c.l.bf16 %v4795
    %v5036 = vunpack.c.l.bf16 %v4796
    %v5037 = vunpack.c.l.bf16 %v4797
    %v5038 = vunpack.c.l.bf16 %v4798
    %v5039 = vunpack.c.l.bf16 %v4799
    %v5040 = vunpack.c.l.bf16 %v4800
    %v5041 = vunpack.c.l.bf16 %v4801
    %v5042 = vunpack.c.l.bf16 %v4802
    %v5043 = vunpack.c.l.bf16 %v4803
    %v5044 = vunpack.c.l.bf16 %v4804
    %v5045 = vunpack.c.l.bf16 %v4805
    %v5046 = vunpack.c.l.bf16 %v4806
    %v5047 = vunpack.c.l.bf16 %v4807
    %v5048 = vunpack.c.l.bf16 %v4808
    %v5049 = vunpack.c.l.bf16 %v4809
    %v5050 = vunpack.c.l.bf16 %v4810
    %v5051 = vunpack.c.l.bf16 %v4811
    %v5052 = vunpack.c.l.bf16 %v4812
    %v5053 = vunpack.c.l.bf16 %v4813
    %v5054 = vunpack.c.l.bf16 %v4814
    %v5055 = vunpack.c.l.bf16 %v4815
    %v5056 = vunpack.c.l.bf16 %v4816
    %v5057 = vunpack.c.l.bf16 %v4817
    %v5058 = vunpack.c.l.bf16 %v4818
    %v5059 = vunpack.c.l.bf16 %v4819
    %v5060 = vunpack.c.l.bf16 %v4820
    %v5061 = vunpack.c.l.bf16 %v4821
    %v5062 = vunpack.c.l.bf16 %v4822
    %v5063 = vunpack.c.l.bf16 %v4823
    %v5064 = vunpack.c.l.bf16 %v4824
    %v5065 = vunpack.c.l.bf16 %v4825
    %v5066 = vunpack.c.l.bf16 %v4826
    %v5067 = vunpack.c.l.bf16 %v4827
    %v5068 = vunpack.c.l.bf16 %v4828
    %v5069 = vunpack.c.l.bf16 %v4829
    %v5070 = vunpack.c.l.bf16 %v4830
    %v5071 = vunpack.c.l.bf16 %v4831
    %v5072 = vunpack.c.l.bf16 %v4832
    %v5073 = vld [vmem:[#allocation2] sm:$0xff]
    %v5074 = vld [vmem:[#allocation2 + $0x8] sm:$0xff]
    %v5075 = vld [vmem:[#allocation2 + $0x10] sm:$0xff]
    %v5076 = vld [vmem:[#allocation2 + $0x18] sm:$0xff]
    %v5077 = vld [vmem:[#allocation2 + $0x20] sm:$0xff]
    %v5078 = vld [vmem:[#allocation2 + $0x28] sm:$0xff]
    %v5079 = vld [vmem:[#allocation2 + $0x30] sm:$0xff]
    %v5080 = vld [vmem:[#allocation2 + $0x38] sm:$0xff]
    %v5081 = vld [vmem:[#allocation2 + $0x40] sm:$0xff]
    %v5082 = vld [vmem:[#allocation2 + $0x48] sm:$0xff]
    %v5083 = vld [vmem:[#allocation2 + $0x50] sm:$0xff]
    %v5084 = vld [vmem:[#allocation2 + $0x58] sm:$0xff]
    %v5085 = vld [vmem:[#allocation2 + $0x60] sm:$0xff]
    %v5086 = vld [vmem:[#allocation2 + $0x68] sm:$0xff]
    %v5087 = vld [vmem:[#allocation2 + $0x70] sm:$0xff]
    %v5088 = vld [vmem:[%s4] sm:$0x1]
    %v5090 = vlaneseq
    %v5091 = vshrl.u32 %v5090, 7
    %v5092 = vsub.s32 0, %v5091
    %v5093 = vrot.slane %v5088, %v5092
    %5095 = vmatprep.subr.mxu0 0.0
    %5096 = vmatpush1.msra.mxu0 %v4833
    %5097 = vmatprep.subr.mxu0 0.0
    %5098 = vmatpush1.msra.mxu0 %v4834
    %5099 = vmatprep.subr.mxu0 0.0
    %5100 = vmatpush1.msra.mxu0 %v4835
    %5101 = vmatprep.subr.mxu0 0.0
    %5102 = vmatpush1.msra.mxu0 %v4836
    %5103 = vmatprep.subr.mxu0 0.0
    %5104 = vmatpush1.msra.mxu0 %v4837
    %5105 = vmatprep.subr.mxu0 0.0
    %5106 = vmatpush1.msra.mxu0 %v4838
    %5107 = vmatprep.subr.mxu0 0.0
    %5108 = vmatpush1.msra.mxu0 %v4839
    %5109 = vmatprep.subr.mxu0 0.0
    %5110 = vmatpush1.msra.mxu0 %v4840
    %5111 = vmatprep.subr.mxu0 0.0
    %5112 = vmatpush1.msra.mxu0 %v4841
    %5113 = vmatprep.subr.mxu0 0.0
    %5114 = vmatpush1.msra.mxu0 %v4842
    %5115 = vmatprep.subr.mxu0 0.0
    %5116 = vmatpush1.msra.mxu0 %v4843
    %5117 = vmatprep.subr.mxu0 0.0
    %5118 = vmatpush1.msra.mxu0 %v4844
    %5119 = vmatprep.subr.mxu0 0.0
    %5120 = vmatpush1.msra.mxu0 %v4845
    %5121 = vmatprep.subr.mxu0 0.0
    %5122 = vmatpush1.msra.mxu0 %v4846
    %5123 = vmatprep.subr.mxu0 0.0
    %5124 = vmatpush1.msra.mxu0 %v4847
    %5125 = vmatprep.subr.mxu0 0.0
    %5126 = vmatpush1.msra.mxu0 %v4848
    %5127 = vmatprep.subr.mxu0 0.0
    %5128 = vmatpush1.msra.mxu0 %v4849
    %5129 = vmatprep.subr.mxu0 0.0
    %5130 = vmatpush1.msra.mxu0 %v4850
    %5131 = vmatprep.subr.mxu0 0.0
    %5132 = vmatpush1.msra.mxu0 %v4851
    %5133 = vmatprep.subr.mxu0 0.0
    %5134 = vmatpush1.msra.mxu0 %v4852
    %5135 = vmatprep.subr.mxu0 0.0
    %5136 = vmatpush1.msra.mxu0 %v4853
    %5137 = vmatprep.subr.mxu0 0.0
    %5138 = vmatpush1.msra.mxu0 %v4854
    %5139 = vmatprep.subr.mxu0 0.0
    %5140 = vmatpush1.msra.mxu0 %v4855
    %5141 = vmatprep.subr.mxu0 0.0
    %5142 = vmatpush1.msra.mxu0 %v4856
    %5143 = vmatprep.subr.mxu0 0.0
    %5144 = vmatpush1.msra.mxu0 %v4857
    %5145 = vmatprep.subr.mxu0 0.0
    %5146 = vmatpush1.msra.mxu0 %v4858
    %5147 = vmatprep.subr.mxu0 0.0
    %5148 = vmatpush1.msra.mxu0 %v4859
    %5149 = vmatprep.subr.mxu0 0.0
    %5150 = vmatpush1.msra.mxu0 %v4860
    %5151 = vmatprep.subr.mxu0 0.0
    %5152 = vmatpush1.msra.mxu0 %v4861
    %5153 = vmatprep.subr.mxu0 0.0
    %5154 = vmatpush1.msra.mxu0 %v4862
    %5155 = vmatprep.subr.mxu0 0.0
    %5156 = vmatpush1.msra.mxu0 %v4863
    %5157 = vmatprep.subr.mxu0 0.0
    %5158 = vmatpush1.msra.mxu0 %v4864
    %5159 = vmatprep.mubr.f32.mxu0 %v5074
    %5160 = vmatmul.mubr.f32.gmra.mrb[0].mxu0 %v5073
    %v5161 = vpop.f32.mrb[0].mxu0
    %v5162 = vadd.f32 %v5093, %v5161
    %v5163 = vpop.f32.mrb[0].mxu0
    %5164 = vdwg.mxu0
    %5165 = vmatprep.subr.mxu0 0.0
    %5166 = vmatpush1.msra.mxu0 %v4865
    %5167 = vmatprep.subr.mxu0 0.0
    %5168 = vmatpush1.msra.mxu0 %v4866
    %5169 = vmatprep.subr.mxu0 0.0
    %5170 = vmatpush1.msra.mxu0 %v4867
    %5171 = vmatprep.subr.mxu0 0.0
    %5172 = vmatpush1.msra.mxu0 %v4868
    %5173 = vmatprep.subr.mxu0 0.0
    %5174 = vmatpush1.msra.mxu0 %v4869
    %5175 = vmatprep.subr.mxu0 0.0
    %5176 = vmatpush1.msra.mxu0 %v4870
    %5177 = vmatprep.subr.mxu0 0.0
    %5178 = vmatpush1.msra.mxu0 %v4871
    %5179 = vmatprep.subr.mxu0 0.0
    %5180 = vmatpush1.msra.mxu0 %v4872
    %5181 = vmatprep.subr.mxu0 0.0
    %5182 = vmatpush1.msra.mxu0 %v4873
    %5183 = vmatprep.subr.mxu0 0.0
    %5184 = vmatpush1.msra.mxu0 %v4874
    %5185 = vmatprep.subr.mxu0 0.0
    %5186 = vmatpush1.msra.mxu0 %v4875
    %5187 = vmatprep.subr.mxu0 0.0
    %5188 = vmatpush1.msra.mxu0 %v4876
    %5189 = vmatprep.subr.mxu0 0.0
    %5190 = vmatpush1.msra.mxu0 %v4877
    %5191 = vmatprep.subr.mxu0 0.0
    %5192 = vmatpush1.msra.mxu0 %v4878
    %5193 = vmatprep.subr.mxu0 0.0
    %5194 = vmatpush1.msra.mxu0 %v4879
    %5195 = vmatprep.subr.mxu0 0.0
    %5196 = vmatpush1.msra.mxu0 %v4880
    %5197 = vmatprep.subr.mxu0 0.0
    %5198 = vmatpush1.msra.mxu0 %v4881
    %5199 = vmatprep.subr.mxu0 0.0
    %5200 = vmatpush1.msra.mxu0 %v4882
    %5201 = vmatprep.subr.mxu0 0.0
    %5202 = vmatpush1.msra.mxu0 %v4883
    %5203 = vmatprep.subr.mxu0 0.0
    %5204 = vmatpush1.msra.mxu0 %v4884
    %5205 = vmatprep.subr.mxu0 0.0
    %5206 = vmatpush1.msra.mxu0 %v4885
    %5207 = vmatprep.subr.mxu0 0.0
    %5208 = vmatpush1.msra.mxu0 %v4886
    %5209 = vmatprep.subr.mxu0 0.0
    %5210 = vmatpush1.msra.mxu0 %v4887
    %5211 = vmatprep.subr.mxu0 0.0
    %5212 = vmatpush1.msra.mxu0 %v4888
    %5213 = vmatprep.subr.mxu0 0.0
    %5214 = vmatpush1.msra.mxu0 %v4889
    %5215 = vmatprep.subr.mxu0 0.0
    %5216 = vmatpush1.msra.mxu0 %v4890
    %5217 = vmatprep.subr.mxu0 0.0
    %5218 = vmatpush1.msra.mxu0 %v4891
    %5219 = vmatprep.subr.mxu0 0.0
    %5220 = vmatpush1.msra.mxu0 %v4892
    %5221 = vmatprep.subr.mxu0 0.0
    %5222 = vmatpush1.msra.mxu0 %v4893
    %5223 = vmatprep.subr.mxu0 0.0
    %5224 = vmatpush1.msra.mxu0 %v4894
    %5225 = vmatprep.subr.mxu0 0.0
    %5226 = vmatpush1.msra.mxu0 %v4895
    %5227 = vmatprep.subr.mxu0 0.0
    %5228 = vmatpush1.msra.mxu0 %v4896
    %5229 = vmatprep.mubr.f32.mxu0 %v5076
    %5230 = vmatmul.mubr.f32.gmra.mrb[0].mxu0 %v5075
    %v5231 = vpop.f32.mrb[0].mxu0
    %v5232 = vadd.f32 %v5162, %v5231
    %v5233 = vpop.f32.mrb[0].mxu0
    %5234 = vdwg.mxu0
    %5235 = vmatprep.subr.mxu0 0.0
    %5236 = vmatpush1.msra.mxu0 %v4897
    %5237 = vmatprep.subr.mxu0 0.0
    %5238 = vmatpush1.msra.mxu0 %v4898
    %5239 = vmatprep.subr.mxu0 0.0
    %5240 = vmatpush1.msra.mxu0 %v4899
    %5241 = vmatprep.subr.mxu0 0.0
    %5242 = vmatpush1.msra.mxu0 %v4900
    %5243 = vmatprep.subr.mxu0 0.0
    %5244 = vmatpush1.msra.mxu0 %v4901
    %5245 = vmatprep.subr.mxu0 0.0
    %5246 = vmatpush1.msra.mxu0 %v4902
    %5247 = vmatprep.subr.mxu0 0.0
    %5248 = vmatpush1.msra.mxu0 %v4903
    %5249 = vmatprep.subr.mxu0 0.0
    %5250 = vmatpush1.msra.mxu0 %v4904
    %5251 = vmatprep.subr.mxu0 0.0
    %5252 = vmatpush1.msra.mxu0 %v4905
    %5253 = vmatprep.subr.mxu0 0.0
    %5254 = vmatpush1.msra.mxu0 %v4906
    %5255 = vmatprep.subr.mxu0 0.0
    %5256 = vmatpush1.msra.mxu0 %v4907
    %5257 = vmatprep.subr.mxu0 0.0
    %5258 = vmatpush1.msra.mxu0 %v4908
    %5259 = vmatprep.subr.mxu0 0.0
    %5260 = vmatpush1.msra.mxu0 %v4909
    %5261 = vmatprep.subr.mxu0 0.0
    %5262 = vmatpush1.msra.mxu0 %v4910
    %5263 = vmatprep.subr.mxu0 0.0
    %5264 = vmatpush1.msra.mxu0 %v4911
    %5265 = vmatprep.subr.mxu0 0.0
    %5266 = vmatpush1.msra.mxu0 %v4912
    %5267 = vmatprep.subr.mxu0 0.0
    %5268 = vmatpush1.msra.mxu0 %v4913
    %5269 = vmatprep.subr.mxu0 0.0
    %5270 = vmatpush1.msra.mxu0 %v4914
    %5271 = vmatprep.subr.mxu0 0.0
    %5272 = vmatpush1.msra.mxu0 %v4915
    %5273 = vmatprep.subr.mxu0 0.0
    %5274 = vmatpush1.msra.mxu0 %v4916
    %5275 = vmatprep.subr.mxu0 0.0
    %5276 = vmatpush1.msra.mxu0 %v4917
    %5277 = vmatprep.subr.mxu0 0.0
    %5278 = vmatpush1.msra.mxu0 %v4918
    %5279 = vmatprep.subr.mxu0 0.0
    %5280 = vmatpush1.msra.mxu0 %v4919
    %5281 = vmatprep.subr.mxu0 0.0
    %5282 = vmatpush1.msra.mxu0 %v4920
    %5283 = vmatprep.subr.mxu0 0.0
    %5284 = vmatpush1.msra.mxu0 %v4921
    %5285 = vmatprep.subr.mxu0 0.0
    %5286 = vmatpush1.msra.mxu0 %v4922
    %5287 = vmatprep.subr.mxu0 0.0
    %5288 = vmatpush1.msra.mxu0 %v4923
    %5289 = vmatprep.subr.mxu0 0.0
    %5290 = vmatpush1.msra.mxu0 %v4924
    %5291 = vmatprep.subr.mxu0 0.0
    %5292 = vmatpush1.msra.mxu0 %v4925
    %5293 = vmatprep.subr.mxu0 0.0
    %5294 = vmatpush1.msra.mxu0 %v4926
    %5295 = vmatprep.subr.mxu0 0.0
    %5296 = vmatpush1.msra.mxu0 %v4927
    %5297 = vmatprep.subr.mxu0 0.0
    %5298 = vmatpush1.msra.mxu0 %v4928
    %5299 = vmatprep.mubr.f32.mxu0 %v5078
    %5300 = vmatmul.mubr.f32.gmra.mrb[0].mxu0 %v5077
    %v5301 = vpop.f32.mrb[0].mxu0
    %v5302 = vadd.f32 %v5232, %v5301
    %v5303 = vpop.f32.mrb[0].mxu0
    %5304 = vdwg.mxu0
    %5305 = vmatprep.subr.mxu0 0.0
    %5306 = vmatpush1.msra.mxu0 %v4929
    %5307 = vmatprep.subr.mxu0 0.0
    %5308 = vmatpush1.msra.mxu0 %v4930
    %5309 = vmatprep.subr.mxu0 0.0
    %5310 = vmatpush1.msra.mxu0 %v4931
    %5311 = vmatprep.subr.mxu0 0.0
    %5312 = vmatpush1.msra.mxu0 %v4932
    %5313 = vmatprep.subr.mxu0 0.0
    %5314 = vmatpush1.msra.mxu0 %v4933
    %5315 = vmatprep.subr.mxu0 0.0
    %5316 = vmatpush1.msra.mxu0 %v4934
    %5317 = vmatprep.subr.mxu0 0.0
    %5318 = vmatpush1.msra.mxu0 %v4935
    %5319 = vmatprep.subr.mxu0 0.0
    %5320 = vmatpush1.msra.mxu0 %v4936
    %5321 = vmatprep.subr.mxu0 0.0
    %5322 = vmatpush1.msra.mxu0 %v4937
    %5323 = vmatprep.subr.mxu0 0.0
    %5324 = vmatpush1.msra.mxu0 %v4938
    %5325 = vmatprep.subr.mxu0 0.0
    %5326 = vmatpush1.msra.mxu0 %v4939
    %5327 = vmatprep.subr.mxu0 0.0
    %5328 = vmatpush1.msra.mxu0 %v4940
    %5329 = vmatprep.subr.mxu0 0.0
    %5330 = vmatpush1.msra.mxu0 %v4941
    %5331 = vmatprep.subr.mxu0 0.0
    %5332 = vmatpush1.msra.mxu0 %v4942
    %5333 = vmatprep.subr.mxu0 0.0
    %5334 = vmatpush1.msra.mxu0 %v4943
    %5335 = vmatprep.subr.mxu0 0.0
    %5336 = vmatpush1.msra.mxu0 %v4944
    %5337 = vmatprep.subr.mxu0 0.0
    %5338 = vmatpush1.msra.mxu0 %v4945
    %5339 = vmatprep.subr.mxu0 0.0
    %5340 = vmatpush1.msra.mxu0 %v4946
    %5341 = vmatprep.subr.mxu0 0.0
    %5342 = vmatpush1.msra.mxu0 %v4947
    %5343 = vmatprep.subr.mxu0 0.0
    %5344 = vmatpush1.msra.mxu0 %v4948
    %5345 = vmatprep.subr.mxu0 0.0
    %5346 = vmatpush1.msra.mxu0 %v4949
    %5347 = vmatprep.subr.mxu0 0.0
    %5348 = vmatpush1.msra.mxu0 %v4950
    %5349 = vmatprep.subr.mxu0 0.0
    %5350 = vmatpush1.msra.mxu0 %v4951
    %5351 = vmatprep.subr.mxu0 0.0
    %5352 = vmatpush1.msra.mxu0 %v4952
    %5353 = vmatprep.subr.mxu0 0.0
    %5354 = vmatpush1.msra.mxu0 %v4953
    %5355 = vmatprep.subr.mxu0 0.0
    %5356 = vmatpush1.msra.mxu0 %v4954
    %5357 = vmatprep.subr.mxu0 0.0
    %5358 = vmatpush1.msra.mxu0 %v4955
    %5359 = vmatprep.subr.mxu0 0.0
    %5360 = vmatpush1.msra.mxu0 %v4956
    %5361 = vmatprep.subr.mxu0 0.0
    %5362 = vmatpush1.msra.mxu0 %v4957
    %5363 = vmatprep.subr.mxu0 0.0
    %5364 = vmatpush1.msra.mxu0 %v4958
    %5365 = vmatprep.subr.mxu0 0.0
    %5366 = vmatpush1.msra.mxu0 %v4959
    %5367 = vmatprep.subr.mxu0 0.0
    %5368 = vmatpush1.msra.mxu0 %v4960
    %5369 = vmatprep.mubr.f32.mxu0 %v5080
    %5370 = vmatmul.mubr.f32.gmra.mrb[0].mxu0 %v5079
    %v5371 = vpop.f32.mrb[0].mxu0
    %v5372 = vadd.f32 %v5302, %v5371
    %v5373 = vpop.f32.mrb[0].mxu0
    %5374 = vdwg.mxu0
    %5375 = vmatprep.subr.mxu0 0.0
    %5376 = vmatpush1.msra.mxu0 %v4961
    %5377 = vmatprep.subr.mxu0 0.0
    %5378 = vmatpush1.msra.mxu0 %v4962
    %5379 = vmatprep.subr.mxu0 0.0
    %5380 = vmatpush1.msra.mxu0 %v4963
    %5381 = vmatprep.subr.mxu0 0.0
    %5382 = vmatpush1.msra.mxu0 %v4964
    %5383 = vmatprep.subr.mxu0 0.0
    %5384 = vmatpush1.msra.mxu0 %v4965
    %5385 = vmatprep.subr.mxu0 0.0
    %5386 = vmatpush1.msra.mxu0 %v4966
    %5387 = vmatprep.subr.mxu0 0.0
    %5388 = vmatpush1.msra.mxu0 %v4967
    %5389 = vmatprep.subr.mxu0 0.0
    %5390 = vmatpush1.msra.mxu0 %v4968
    %5391 = vmatprep.subr.mxu0 0.0
    %5392 = vmatpush1.msra.mxu0 %v4969
    %5393 = vmatprep.subr.mxu0 0.0
    %5394 = vmatpush1.msra.mxu0 %v4970
    %5395 = vmatprep.subr.mxu0 0.0
    %5396 = vmatpush1.msra.mxu0 %v4971
    %5397 = vmatprep.subr.mxu0 0.0
    %5398 = vmatpush1.msra.mxu0 %v4972
    %5399 = vmatprep.subr.mxu0 0.0
    %5400 = vmatpush1.msra.mxu0 %v4973
    %5401 = vmatprep.subr.mxu0 0.0
    %5402 = vmatpush1.msra.mxu0 %v4974
    %5403 = vmatprep.subr.mxu0 0.0
    %5404 = vmatpush1.msra.mxu0 %v4975
    %5405 = vmatprep.subr.mxu0 0.0
    %5406 = vmatpush1.msra.mxu0 %v4976
    %5407 = vmatprep.subr.mxu0 0.0
    %5408 = vmatpush1.msra.mxu0 %v4977
    %5409 = vmatprep.subr.mxu0 0.0
    %5410 = vmatpush1.msra.mxu0 %v4978
    %5411 = vmatprep.subr.mxu0 0.0
    %5412 = vmatpush1.msra.mxu0 %v4979
    %5413 = vmatprep.subr.mxu0 0.0
    %5414 = vmatpush1.msra.mxu0 %v4980
    %5415 = vmatprep.subr.mxu0 0.0
    %5416 = vmatpush1.msra.mxu0 %v4981
    %5417 = vmatprep.subr.mxu0 0.0
    %5418 = vmatpush1.msra.mxu0 %v4982
    %5419 = vmatprep.subr.mxu0 0.0
    %5420 = vmatpush1.msra.mxu0 %v4983
    %5421 = vmatprep.subr.mxu0 0.0
    %5422 = vmatpush1.msra.mxu0 %v4984
    %5423 = vmatprep.subr.mxu0 0.0
    %5424 = vmatpush1.msra.mxu0 %v4985
    %5425 = vmatprep.subr.mxu0 0.0
    %5426 = vmatpush1.msra.mxu0 %v4986
    %5427 = vmatprep.subr.mxu0 0.0
    %5428 = vmatpush1.msra.mxu0 %v4987
    %5429 = vmatprep.subr.mxu0 0.0
    %5430 = vmatpush1.msra.mxu0 %v4988
    %5431 = vmatprep.subr.mxu0 0.0
    %5432 = vmatpush1.msra.mxu0 %v4989
    %5433 = vmatprep.subr.mxu0 0.0
    %5434 = vmatpush1.msra.mxu0 %v4990
    %5435 = vmatprep.subr.mxu0 0.0
    %5436 = vmatpush1.msra.mxu0 %v4991
    %5437 = vmatprep.subr.mxu0 0.0
    %5438 = vmatpush1.msra.mxu0 %v4992
    %5439 = vmatprep.mubr.f32.mxu0 %v5082
    %5440 = vmatmul.mubr.f32.gmra.mrb[0].mxu0 %v5081
    %v5441 = vpop.f32.mrb[0].mxu0
    %v5442 = vadd.f32 %v5372, %v5441
    %v5443 = vpop.f32.mrb[0].mxu0
    %5444 = vdwg.mxu0
    %5445 = vmatprep.subr.mxu0 0.0
    %5446 = vmatpush1.msra.mxu0 %v4993
    %5447 = vmatprep.subr.mxu0 0.0
    %5448 = vmatpush1.msra.mxu0 %v4994
    %5449 = vmatprep.subr.mxu0 0.0
    %5450 = vmatpush1.msra.mxu0 %v4995
    %5451 = vmatprep.subr.mxu0 0.0
    %5452 = vmatpush1.msra.mxu0 %v4996
    %5453 = vmatprep.subr.mxu0 0.0
    %5454 = vmatpush1.msra.mxu0 %v4997
    %5455 = vmatprep.subr.mxu0 0.0
    %5456 = vmatpush1.msra.mxu0 %v4998
    %5457 = vmatprep.subr.mxu0 0.0
    %5458 = vmatpush1.msra.mxu0 %v4999
    %5459 = vmatprep.subr.mxu0 0.0
    %5460 = vmatpush1.msra.mxu0 %v5000
    %5461 = vmatprep.subr.mxu0 0.0
    %5462 = vmatpush1.msra.mxu0 %v5001
    %5463 = vmatprep.subr.mxu0 0.0
    %5464 = vmatpush1.msra.mxu0 %v5002
    %5465 = vmatprep.subr.mxu0 0.0
    %5466 = vmatpush1.msra.mxu0 %v5003
    %5467 = vmatprep.subr.mxu0 0.0
    %5468 = vmatpush1.msra.mxu0 %v5004
    %5469 = vmatprep.subr.mxu0 0.0
    %5470 = vmatpush1.msra.mxu0 %v5005
    %5471 = vmatprep.subr.mxu0 0.0
    %5472 = vmatpush1.msra.mxu0 %v5006
    %5473 = vmatprep.subr.mxu0 0.0
    %5474 = vmatpush1.msra.mxu0 %v5007
    %5475 = vmatprep.subr.mxu0 0.0
    %5476 = vmatpush1.msra.mxu0 %v5008
    %5477 = vmatprep.subr.mxu0 0.0
    %5478 = vmatpush1.msra.mxu0 %v5009
    %5479 = vmatprep.subr.mxu0 0.0
    %5480 = vmatpush1.msra.mxu0 %v5010
    %5481 = vmatprep.subr.mxu0 0.0
    %5482 = vmatpush1.msra.mxu0 %v5011
    %5483 = vmatprep.subr.mxu0 0.0
    %5484 = vmatpush1.msra.mxu0 %v5012
    %5485 = vmatprep.subr.mxu0 0.0
    %5486 = vmatpush1.msra.mxu0 %v5013
    %5487 = vmatprep.subr.mxu0 0.0
    %5488 = vmatpush1.msra.mxu0 %v5014
    %5489 = vmatprep.subr.mxu0 0.0
    %5490 = vmatpush1.msra.mxu0 %v5015
    %5491 = vmatprep.subr.mxu0 0.0
    %5492 = vmatpush1.msra.mxu0 %v5016
    %5493 = vmatprep.subr.mxu0 0.0
    %5494 = vmatpush1.msra.mxu0 %v5017
    %5495 = vmatprep.subr.mxu0 0.0
    %5496 = vmatpush1.msra.mxu0 %v5018
    %5497 = vmatprep.subr.mxu0 0.0
    %5498 = vmatpush1.msra.mxu0 %v5019
    %5499 = vmatprep.subr.mxu0 0.0
    %5500 = vmatpush1.msra.mxu0 %v5020
    %5501 = vmatprep.subr.mxu0 0.0
    %5502 = vmatpush1.msra.mxu0 %v5021
    %5503 = vmatprep.subr.mxu0 0.0
    %5504 = vmatpush1.msra.mxu0 %v5022
    %5505 = vmatprep.subr.mxu0 0.0
    %5506 = vmatpush1.msra.mxu0 %v5023
    %5507 = vmatprep.subr.mxu0 0.0
    %5508 = vmatpush1.msra.mxu0 %v5024
    %5509 = vmatprep.mubr.f32.mxu0 %v5084
    %5510 = vmatmul.mubr.f32.gmra.mrb[0].mxu0 %v5083
    %v5511 = vpop.f32.mrb[0].mxu0
    %v5512 = vadd.f32 %v5442, %v5511
    %v5513 = vpop.f32.mrb[0].mxu0
    %5514 = vdwg.mxu0
    %5515 = vmatprep.subr.mxu0 0.0
    %5516 = vmatpush1.msra.mxu0 %v5025
    %5517 = vmatprep.subr.mxu0 0.0
    %5518 = vmatpush1.msra.mxu0 %v5026
    %5519 = vmatprep.subr.mxu0 0.0
    %5520 = vmatpush1.msra.mxu0 %v5027
    %5521 = vmatprep.subr.mxu0 0.0
    %5522 = vmatpush1.msra.mxu0 %v5028
    %5523 = vmatprep.subr.mxu0 0.0
    %5524 = vmatpush1.msra.mxu0 %v5029
    %5525 = vmatprep.subr.mxu0 0.0
    %5526 = vmatpush1.msra.mxu0 %v5030
    %5527 = vmatprep.subr.mxu0 0.0
    %5528 = vmatpush1.msra.mxu0 %v5031
    %5529 = vmatprep.subr.mxu0 0.0
    %5530 = vmatpush1.msra.mxu0 %v5032
    %5531 = vmatprep.subr.mxu0 0.0
    %5532 = vmatpush1.msra.mxu0 %v5033
    %5533 = vmatprep.subr.mxu0 0.0
    %5534 = vmatpush1.msra.mxu0 %v5034
    %5535 = vmatprep.subr.mxu0 0.0
    %5536 = vmatpush1.msra.mxu0 %v5035
    %5537 = vmatprep.subr.mxu0 0.0
    %5538 = vmatpush1.msra.mxu0 %v5036
    %5539 = vmatprep.subr.mxu0 0.0
    %5540 = vmatpush1.msra.mxu0 %v5037
    %5541 = vmatprep.subr.mxu0 0.0
    %5542 = vmatpush1.msra.mxu0 %v5038
    %5543 = vmatprep.subr.mxu0 0.0
    %5544 = vmatpush1.msra.mxu0 %v5039
    %5545 = vmatprep.subr.mxu0 0.0
    %5546 = vmatpush1.msra.mxu0 %v5040
    %5547 = vmatprep.subr.mxu0 0.0
    %5548 = vmatpush1.msra.mxu0 %v5041
    %5549 = vmatprep.subr.mxu0 0.0
    %5550 = vmatpush1.msra.mxu0 %v5042
    %5551 = vmatprep.subr.mxu0 0.0
    %5552 = vmatpush1.msra.mxu0 %v5043
    %5553 = vmatprep.subr.mxu0 0.0
    %5554 = vmatpush1.msra.mxu0 %v5044
    %5555 = vmatprep.subr.mxu0 0.0
    %5556 = vmatpush1.msra.mxu0 %v5045
    %5557 = vmatprep.subr.mxu0 0.0
    %5558 = vmatpush1.msra.mxu0 %v5046
    %5559 = vmatprep.subr.mxu0 0.0
    %5560 = vmatpush1.msra.mxu0 %v5047
    %5561 = vmatprep.subr.mxu0 0.0
    %5562 = vmatpush1.msra.mxu0 %v5048
    %5563 = vmatprep.subr.mxu0 0.0
    %5564 = vmatpush1.msra.mxu0 %v5049
    %5565 = vmatprep.subr.mxu0 0.0
    %5566 = vmatpush1.msra.mxu0 %v5050
    %5567 = vmatprep.subr.mxu0 0.0
    %5568 = vmatpush1.msra.mxu0 %v5051
    %5569 = vmatprep.subr.mxu0 0.0
    %5570 = vmatpush1.msra.mxu0 %v5052
    %5571 = vmatprep.subr.mxu0 0.0
    %5572 = vmatpush1.msra.mxu0 %v5053
    %5573 = vmatprep.subr.mxu0 0.0
    %5574 = vmatpush1.msra.mxu0 %v5054
    %5575 = vmatprep.subr.mxu0 0.0
    %5576 = vmatpush1.msra.mxu0 %v5055
    %5577 = vmatprep.subr.mxu0 0.0
    %5578 = vmatpush1.msra.mxu0 %v5056
    %5579 = vmatprep.mubr.f32.mxu0 %v5086
    %5580 = vmatmul.mubr.f32.gmra.mrb[0].mxu0 %v5085
    %v5581 = vpop.f32.mrb[0].mxu0
    %v5582 = vadd.f32 %v5512, %v5581
    %v5583 = vpop.f32.mrb[0].mxu0
    %5584 = vdwg.mxu0
    %5585 = vmatprep.subr.mxu0 0.0
    %5586 = vmatpush1.msra.mxu0 %v5057
    %5587 = vmatprep.subr.mxu0 0.0
    %5588 = vmatpush1.msra.mxu0 %v5058
    %5589 = vmatprep.subr.mxu0 0.0
    %5590 = vmatpush1.msra.mxu0 %v5059
    %5591 = vmatprep.subr.mxu0 0.0
    %5592 = vmatpush1.msra.mxu0 %v5060
    %5593 = vmatprep.subr.mxu0 0.0
    %5594 = vmatpush1.msra.mxu0 %v5061
    %5595 = vmatprep.subr.mxu0 0.0
    %5596 = vmatpush1.msra.mxu0 %v5062
    %5597 = vmatprep.subr.mxu0 0.0
    %5598 = vmatpush1.msra.mxu0 %v5063
    %5599 = vmatprep.subr.mxu0 0.0
    %5600 = vmatpush1.msra.mxu0 %v5064
    %5601 = vmatprep.subr.mxu0 0.0
    %5602 = vmatpush1.msra.mxu0 %v5065
    %5603 = vmatprep.subr.mxu0 0.0
    %5604 = vmatpush1.msra.mxu0 %v5066
    %5605 = vmatprep.subr.mxu0 0.0
    %5606 = vmatpush1.msra.mxu0 %v5067
    %5607 = vmatprep.subr.mxu0 0.0
    %5608 = vmatpush1.msra.mxu0 %v5068
    %5609 = vmatprep.subr.mxu0 0.0
    %5610 = vmatpush1.msra.mxu0 %v5069
    %5611 = vmatprep.subr.mxu0 0.0
    %5612 = vmatpush1.msra.mxu0 %v5070
    %5613 = vmatprep.subr.mxu0 0.0
    %5614 = vmatpush1.msra.mxu0 %v5071
    %5615 = vmatprep.subr.mxu0 0.0
    %5616 = vmatpush1.msra.mxu0 %v5072
    %5617 = vmatprep.subr.mxu0 0.0
    %5618 = vmatpush1.msra.mxu0 0.0
    %5619 = vmatprep.subr.mxu0 0.0
    %5620 = vmatpush1.msra.mxu0 0.0
    %5621 = vmatprep.subr.mxu0 0.0
    %5622 = vmatpush1.msra.mxu0 0.0
    %5623 = vmatprep.subr.mxu0 0.0
    %5624 = vmatpush1.msra.mxu0 0.0
    %5625 = vmatprep.subr.mxu0 0.0
    %5626 = vmatpush1.msra.mxu0 0.0
    %5627 = vmatprep.subr.mxu0 0.0
    %5628 = vmatpush1.msra.mxu0 0.0
    %5629 = vmatprep.subr.mxu0 0.0
    %5630 = vmatpush1.msra.mxu0 0.0
    %5631 = vmatprep.subr.mxu0 0.0
    %5632 = vmatpush1.msra.mxu0 0.0
    %5633 = vmatprep.subr.mxu0 0.0
    %5634 = vmatpush1.msra.mxu0 0.0
    %5635 = vmatprep.subr.mxu0 0.0
    %5636 = vmatpush1.msra.mxu0 0.0
    %5637 = vmatprep.subr.mxu0 0.0
    %5638 = vmatpush1.msra.mxu0 0.0
    %5639 = vmatprep.subr.mxu0 0.0
    %5640 = vmatpush1.msra.mxu0 0.0
    %5641 = vmatprep.subr.mxu0 0.0
    %5642 = vmatpush1.msra.mxu0 0.0
    %5643 = vmatprep.subr.mxu0 0.0
    %5644 = vmatpush1.msra.mxu0 0.0
    %5645 = vmatprep.subr.mxu0 0.0
    %5646 = vmatpush1.msra.mxu0 0.0
    %5647 = vmatprep.subr.mxu0 0.0
    %5648 = vmatpush1.msra.mxu0 0.0
    %5649 = vmatprep.mubr.f32.mxu0 0.0
    %5650 = vmatmul.mubr.f32.gmra.mrb[0].mxu0 %v5087
    %v5651 = vpop.f32.mrb[0].mxu0
    %v5652 = vadd.f32 %v5582, %v5651
    %v5653 = vpop.f32.mrb[0].mxu0
    %5654 = vdwg.mxu0
    %v5655 = vmax.f32 %v5652, 0.0
    %v5656 = vld [vmem:[%s5] sm:$0xff]
    %v5657 = vld [vmem:[%s5 + $0x8] sm:$0xff]
    %v5658 = vld [vmem:[%s5 + $0x10] sm:$0xff]
    %v5659 = vld [vmem:[%s5 + $0x18] sm:$0xff]
    %v5660 = vld [vmem:[%s5 + $0x20] sm:$0xff]
    %v5661 = vld [vmem:[%s5 + $0x28] sm:$0xff]
    %v5662 = vld [vmem:[%s5 + $0x30] sm:$0xff]
    %v5663 = vld [vmem:[%s5 + $0x38] sm:$0xff]
    %v5664 = vld [vmem:[%s6] sm:$0x1]
    %v5666 = vlaneseq
    %v5667 = vshrl.u32 %v5666, 7
    %v5668 = vsub.s32 0, %v5667
    %v5669 = vrot.slane %v5664, %v5668
    %vm5671 = vcmask 523264
    %v5673 = vsel %vm5671, %v5655, 0
    %5675 = vmatprep.subr.mxu0 0.0
    %5676 = vmatpush1.msra.mxu0 %v5656
    %5677 = vmatprep.subr.mxu0 0.0
    %5678 = vmatpush1.msra.mxu0 %v5657
    %5679 = vmatprep.subr.mxu0 0.0
    %5680 = vmatpush1.msra.mxu0 %v5658
    %5681 = vmatprep.subr.mxu0 0.0
    %5682 = vmatpush1.msra.mxu0 %v5659
    %5683 = vmatprep.subr.mxu0 0.0
    %5684 = vmatpush1.msra.mxu0 %v5660
    %5685 = vmatprep.subr.mxu0 0.0
    %5686 = vmatpush1.msra.mxu0 %v5661
    %5687 = vmatprep.subr.mxu0 0.0
    %5688 = vmatpush1.msra.mxu0 %v5662
    %5689 = vmatprep.subr.mxu0 0.0
    %5690 = vmatpush1.msra.mxu0 %v5663
    %5691 = vmatprep.subr.mxu0 0.0
    %5692 = vmatpush1.msra.mxu0 0.0
    %5693 = vmatprep.subr.mxu0 0.0
    %5694 = vmatpush1.msra.mxu0 0.0
    %5695 = vmatprep.subr.mxu0 0.0
    %5696 = vmatpush1.msra.mxu0 0.0
    %5697 = vmatprep.subr.mxu0 0.0
    %5698 = vmatpush1.msra.mxu0 0.0
    %5699 = vmatprep.subr.mxu0 0.0
    %5700 = vmatpush1.msra.mxu0 0.0
    %5701 = vmatprep.subr.mxu0 0.0
    %5702 = vmatpush1.msra.mxu0 0.0
    %5703 = vmatprep.subr.mxu0 0.0
    %5704 = vmatpush1.msra.mxu0 0.0
    %5705 = vmatprep.subr.mxu0 0.0
    %5706 = vmatpush1.msra.mxu0 0.0
    %5707 = vmatprep.subr.mxu0 0.0
    %5708 = vmatpush1.msra.mxu0 0.0
    %5709 = vmatprep.subr.mxu0 0.0
    %5710 = vmatpush1.msra.mxu0 0.0
    %5711 = vmatprep.subr.mxu0 0.0
    %5712 = vmatpush1.msra.mxu0 0.0
    %5713 = vmatprep.subr.mxu0 0.0
    %5714 = vmatpush1.msra.mxu0 0.0
    %5715 = vmatprep.subr.mxu0 0.0
    %5716 = vmatpush1.msra.mxu0 0.0
    %5717 = vmatprep.subr.mxu0 0.0
    %5718 = vmatpush1.msra.mxu0 0.0
    %5719 = vmatprep.subr.mxu0 0.0
    %5720 = vmatpush1.msra.mxu0 0.0
    %5721 = vmatprep.subr.mxu0 0.0
    %5722 = vmatpush1.msra.mxu0 0.0
    %5723 = vmatprep.subr.mxu0 0.0
    %5724 = vmatpush1.msra.mxu0 0.0
    %5725 = vmatprep.subr.mxu0 0.0
    %5726 = vmatpush1.msra.mxu0 0.0
    %5727 = vmatprep.subr.mxu0 0.0
    %5728 = vmatpush1.msra.mxu0 0.0
    %5729 = vmatprep.subr.mxu0 0.0
    %5730 = vmatpush1.msra.mxu0 0.0
    %5731 = vmatprep.subr.mxu0 0.0
    %5732 = vmatpush1.msra.mxu0 0.0
    %5733 = vmatprep.subr.mxu0 0.0
    %5734 = vmatpush1.msra.mxu0 0.0
    %5735 = vmatprep.subr.mxu0 0.0
    %5736 = vmatpush1.msra.mxu0 0.0
    %5737 = vmatprep.subr.mxu0 0.0
    %5738 = vmatpush1.msra.mxu0 0.0
    %5739 = vmatprep.mubr.f32.mxu0 0.0
    %5740 = vmatmul.mubr.f32.gmra.mrb[0].mxu0 %v5673
    %v5741 = vpop.f32.mrb[0].mxu0
    %v5742 = vadd.f32 %v5669, %v5741
    %v5743 = vpop.f32.mrb[0].mxu0
    %5744 = vdwg.mxu0
    %v5745 = vtanh.pop %v5742
    %vm5746 = vcmask 64512
    %5747 = vst.msk [vmem:[#allocation3] sm:$0xff] %vm5746, %v5745
    // Predicated region
    $region30: #{cnn_forward.1} parent=1 // pred_check
      _
    $region31: #{cnn_forward.1} parent=1 // pred_check_branch
      %5749 = sbr.rel (0) target = $region33
    $region32: #{cnn_forward.1} parent=1 // pred_region
      %s5751 = ssub.s32 128, 128
      %5752 = vsyncadd [#allocation4], %s5751
      %s5754 = sshll.u32 [#allocation3], 4
      %s5755 = int_to_ptr.vmem [resolvable:$true] %s5754
      %5757 = dma.vmem_to_hbm [thread:$0]  %s5755, 128, %s7, [#allocation4]
    $region33: #{cnn_forward.1} parent=1 // pred_fallthru
      _
    // Predicated region
    $region34: #{cnn_forward.1} parent=1 // pred_check
      _
    $region35: #{cnn_forward.1} parent=1 // pred_check_branch
      %5759 = sbr.rel (0) target = $region37
    $region36: #{cnn_forward.1} parent=1 // pred_region
      %5760 = dma.done [#allocation4], 128
    $region37: #{cnn_forward.1} parent=1 // pred_fallthru
      _
    %5761 = vsyncpa [#allocation4], 1

</llo_original>
